<compile_context>
chip_gen: v7x
topology: tpu7x:2x2x1
jax: 0.10.0
libtpu: 0.0.40
codegen_flags: <defaults>
</compile_context>

<pallas_src>
import functools

import jax
import jax.numpy as jnp
import numpy as np
from jax.experimental import pallas as pl
from jax.experimental.pallas import tpu as pltpu


def _round_up(x, m):
    return ((x + m - 1) // m) * m


def _neighbors_conv_kernel(geo_at_ref, geo_b_ref, feat_t_ref, w2s_ref,
                           w1_ref, b1_ref, out_ref,
                           *, radius_sq, cin, cout, hidden):
    """One (batch, center-tile, neighbor-tile) grid step.

    geo_at_ref : (1, 3, TA)     center geometry, transposed (xyz on sublanes)
    geo_b_ref  : (1, TB, 3)     neighbor geometry (original layout)
    feat_t_ref : (1, cin, TB)   neighbor features, transposed (lane-dense)
    w2s_ref    : (H*cout, cin)  VMEM: row q*cout+o = W2[q, o, :], pre-scaled by
                                1/sqrt(n_norm)
    w1_ref     : (3, H)  SMEM   first MLP layer weights (scalar reads)
    b1_ref     : (1, H)  SMEM   first MLP layer bias
    out_ref    : (1, cout, TA)  lane-dense output block; resident across the
                                neighbor grid axis -> used directly as accumulator
    """
    b_step = pl.program_id(2)

    @pl.when(b_step == 0)
    def _init():
        out_ref[...] = jnp.zeros_like(out_ref)

    ga = geo_at_ref[0]          # [3, TA]
    gb = geo_b_ref[0]           # [TB, 3]
    ft = feat_t_ref[0]          # [cin, TB]

    # Pairwise relative positions as three dense [TB, TA] planes (no gathers,
    # no [P, 3] lane-padded tensors): diff[b, a] = x_b - x_a.
    dx = gb[:, 0:1] - ga[0:1, :]
    dy = gb[:, 1:2] - ga[1:2, :]
    dz = gb[:, 2:3] - ga[2:3, :]

    # Radius mask with squared distance (no sqrt): ||diff||^2 < radius^2.
    d2 = dx * dx + dy * dy + dz * dz
    mask = (d2 < radius_sq).astype(jnp.float32)                       # [TB, TA]

    # g[q*cout + o, b] = sum_c W2[q, o, c] * f[b, c].  K = cin is tiny, so do it
    # on the VPU with lane-dense broadcasts instead of a padded-K MXU matmul.
    g = w2s_ref[:, 0:1] * ft[0:1, :]                                  # [H*cout, TB]
    for c in range(1, cin):
        g = g + w2s_ref[:, c:c + 1] * ft[c:c + 1, :]

    # First MLP layer: 3 scalar FMAs per hidden unit on the VPU, tanh on the EUP,
    # radius mask folded in, then one MXU matmul per hidden unit fuses the channel
    # contraction AND the neighbor reduction:
    #   acc[o, a] += sum_b g_q[o, b] * (mask * h_q)[b, a]
    acc = None
    for q in range(hidden):                     # hidden is small & static: unroll
        pre = (dx * w1_ref[0, q] + dy * w1_ref[1, q] + dz * w1_ref[2, q]
               + b1_ref[0, q])
        mh = jnp.tanh(pre) * mask                                     # [TB, TA]
        t = jnp.dot(g[q * cout:(q + 1) * cout, :], mh,
                    preferred_element_type=jnp.float32)               # [cout, TA]
        acc = t if acc is None else acc + t

    out_ref[0] = out_ref[0] + acc


def neighbors_convolution(features, geometry, w1, b1, w2, *, radius, n_norm=1.0):
    """features [batch, n, cin], geometry [batch, n, 3] -> [batch, n, cout]."""
    assert features.shape[:2] == geometry.shape[:2], (features.shape, geometry.shape)
    batch, n, cin = features.shape
    hidden, qdim = w2.shape
    assert qdim % cin == 0
    cout = qdim // cin

    features = features.astype(jnp.float32)
    geometry = geometry.astype(jnp.float32)

    # Tile sizes.  Lane-dim blocks must be multiples of 128 (or span the full
    # padded point axis).  TODO(synk): grow TA further on 128-MiB-VMEM parts.
    if n <= 128:
        ta = tb = _round_up(n, 8)
        n_pad = ta
    elif n <= 256:
        ta = tb = 128
        n_pad = _round_up(n, 128)
    else:
        ta, tb = 256, 128
        n_pad = _round_up(n, 256)

    # Pad with a sentinel that is guaranteed to be > radius away (per axis) from
    # every real point, so padded neighbors are masked out; padded center rows
    # are sliced off below.  Padded features are zero.
    pad = n_pad - n
    if pad:
        sentinel = jnp.max(geometry) + jnp.float32(2.0 * float(radius) + 1.0)
        pad_geo = jnp.broadcast_to(sentinel, (batch, pad, 3)).astype(jnp.float32)
        geometry = jnp.concatenate([geometry, pad_geo], axis=1)
        features = jnp.pad(features, ((0, 0), (0, pad), (0, 0)))

    # Lane-dense input layouts: centers as [batch, 3, n_pad], neighbor features
    # as [batch, cin, n_pad].  Neighbor geometry stays [batch, n_pad, 3] because
    # the kernel needs it as [TB, 1] columns for the broadcast subtract.
    geometry_t = jnp.transpose(geometry, (0, 2, 1))
    features_t = jnp.transpose(features, (0, 2, 1))

    # Fold 1/sqrt(n_norm) into W2 and reshape so row q*cout + o, col c == W2[q][o, c].
    scale = jnp.float32(1.0 / (float(n_norm) ** 0.5))
    w2s = (w2.astype(jnp.float32) * scale).reshape(hidden * cout, cin)
    w1 = w1.astype(jnp.float32).reshape(3, hidden)
    b1 = b1.astype(jnp.float32).reshape(1, hidden)

    kernel = functools.partial(_neighbors_conv_kernel,
                               radius_sq=float(radius) ** 2,
                               cin=cin, cout=cout, hidden=hidden)

    grid = (batch, n_pad // ta, n_pad // tb)

    out_t = pl.pallas_call(
        kernel,
        out_shape=jax.ShapeDtypeStruct((batch, cout, n_pad), jnp.float32),
        grid_spec=pltpu.PrefetchScalarGridSpec(
            num_scalar_prefetch=0,
            grid=grid,
            in_specs=[
                pl.BlockSpec((1, 3, ta), lambda z, a, b: (z, 0, a)),        # centers (T)
                pl.BlockSpec((1, tb, 3), lambda z, a, b: (z, b, 0)),        # neighbors
                pl.BlockSpec((1, cin, tb), lambda z, a, b: (z, 0, b)),      # feats (T)
                pl.BlockSpec((hidden * cout, cin), lambda z, a, b: (0, 0)),  # W2 scaled
                pl.BlockSpec(memory_space=pltpu.MemorySpace.SMEM),          # W1
                pl.BlockSpec(memory_space=pltpu.MemorySpace.SMEM),          # b1
            ],
            out_specs=pl.BlockSpec((1, cout, ta), lambda z, a, b: (z, 0, a)),
        ),
        compiler_params=pltpu.CompilerParams(
            dimension_semantics=("parallel", "parallel", "arbitrary"),
            vmem_limit_bytes=32 * 1024 * 1024,
        ),
    )(geometry_t, geometry, features_t, w2s, w1, b1)

    # Lane-dense kernel output [batch, cout, n_pad] -> [batch, n, cout].
    return jnp.transpose(out_t, (0, 2, 1))[:, :n, :]


def _reference(features, geometry, w1, b1, w2, *, radius, n_norm=1.0):
    """Plain-JAX replica of the PyTorch forward (dense-mask formulation)."""
    batch, n, cin = features.shape
    cout = w2.shape[1] // cin
    rb = geometry[:, None, :, :]            # [z, 1, b, 3]
    ra = geometry[:, :, None, :]            # [z, a, 1, 3]
    diff = rb - ra                          # [z, a, b, 3]
    dist = jnp.sqrt(jnp.sum(diff * diff, axis=-1))
    mask = (dist < radius).astype(jnp.float32)
    h = jnp.tanh(jnp.einsum('zabx,xh->zabh', diff, w1) + b1.reshape(-1))
    k = jnp.einsum('zabh,hq->zabq', h, w2).reshape(batch, n, n, cout, cin)
    k = k / (n_norm ** 0.5)
    return jnp.einsum('zab,zabij,zbj->zai', mask, k, features)


if __name__ == "__main__":
    batch, n, cin, cout, hidden = 2, 150, 4, 8, 16
    radius = 0.8
    n_norm = 3.0

    key = jax.random.PRNGKey(0)
    k_geo, k_feat, k_w1, k_b1, k_w2 = jax.random.split(key, 5)

    geometry = jax.random.uniform(k_geo, (batch, n, 3), dtype=jnp.float32)
    features = jax.random.normal(k_feat, (batch, n, cin), dtype=jnp.float32)

    # Deterministic synthetic "Kernel(Rs_in, Rs_out)" parameters (2-layer MLP).
    w1 = 0.5 * jax.random.normal(k_w1, (3, hidden), dtype=jnp.float32)
    b1 = 0.1 * jax.random.normal(k_b1, (1, hidden), dtype=jnp.float32)
    w2 = 0.5 * jax.random.normal(k_w2, (hidden, cout * cin), dtype=jnp.float32)

    out = neighbors_convolution(features, geometry, w1, b1, w2,
                                radius=radius, n_norm=n_norm)
    out = jax.block_until_ready(out)

    ref = jax.block_until_ready(
        _reference(features, geometry, w1, b1, w2, radius=radius, n_norm=n_norm))

    assert out.shape == (batch, n, cout), out.shape
    np.testing.assert_allclose(np.asarray(out), np.asarray(ref),
                               rtol=1e-3, atol=1e-3)
    print("KERNEL_OK")
</pallas_src>

<mosaic_0001>
module attributes {stable_mosaic.version = 11 : i64} {
  func.func @_neighbors_conv_kernel(%arg0: i32, %arg1: i32, %arg2: i32, %arg3: memref<1x3x128xf32, #tpu.memory_space<vmem>>, %arg4: memref<1x128x3xf32, #tpu.memory_space<vmem>>, %arg5: memref<1x4x128xf32, #tpu.memory_space<vmem>>, %arg6: memref<128x4xf32, #tpu.memory_space<vmem>>, %arg7: memref<3x16xf32, #tpu.memory_space<smem>>, %arg8: memref<1x16xf32, #tpu.memory_space<smem>>, %arg9: memref<1x8x128xf32, #tpu.memory_space<vmem>>) attributes {dimension_semantics = [#tpu.dimension_semantics<parallel>, #tpu.dimension_semantics<parallel>, #tpu.dimension_semantics<arbitrary>], iteration_bounds = array<i64: 2, 2, 2>, scalar_prefetch = 0 : i64, scratch_operands = 0 : i64, tpu.core_type = #tpu.core_type<tc>, window_params = [{transform_indices = @transform_0, window_bounds = array<i64: 1, 3, 128>}, {transform_indices = @transform_1, window_bounds = array<i64: 1, 128, 3>}, {transform_indices = @transform_2, window_bounds = array<i64: 1, 4, 128>}, {pipeline_mode = #tpu.pipeline_mode<synchronous>, transform_indices = @transform_3, window_bounds = array<i64: 128, 4>}, {transform_indices = @transform_4, window_bounds = array<i64: 3, 16>}, {transform_indices = @transform_5, window_bounds = array<i64: 1, 16>}, {transform_indices = @transform_6, window_bounds = array<i64: 1, 8, 128>}]} {
    %c0_i32 = arith.constant 0 : i32
    %0 = arith.cmpi eq, %arg2, %c0_i32 : i32
    %1 = arith.extui %0 : i1 to i32
    %c0_i32_0 = arith.constant 0 : i32
    %2 = arith.cmpi ne, %1, %c0_i32_0 : i32
    scf.if %2 {
      %cst_152 = arith.constant 0.000000e+00 : f32
      %365 = vector.broadcast %cst_152 : f32 to vector<1x8x128xf32>
      %c0_153 = arith.constant 0 : index
      %c0_154 = arith.constant 0 : index
      %c0_155 = arith.constant 0 : index
      %366 = vector.load %arg9[%c0_153, %c0_154, %c0_155] : memref<1x8x128xf32, #tpu.memory_space<vmem>>, vector<1x8x128xf32>
      tpu.vector_store %arg9[%c0_153, %c0_154, %c0_155], %365 {strides = array<i32>} : memref<1x8x128xf32, #tpu.memory_space<vmem>>, vector<1x8x128xf32>,
    } else {
    }
    %c0 = arith.constant 0 : index
    %c0_1 = arith.constant 0 : index
    %c0_2 = arith.constant 0 : index
    %3 = vector.load %arg3[%c0, %c0_1, %c0_2] : memref<1x3x128xf32, #tpu.memory_space<vmem>>, vector<1x3x128xf32>
    %4 = vector.shape_cast %3 : vector<1x3x128xf32> to vector<3x128xf32>
    %c0_3 = arith.constant 0 : index
    %c0_4 = arith.constant 0 : index
    %c0_5 = arith.constant 0 : index
    %5 = vector.load %arg4[%c0_3, %c0_4, %c0_5] : memref<1x128x3xf32, #tpu.memory_space<vmem>>, vector<1x128x3xf32>
    %6 = vector.shape_cast %5 : vector<1x128x3xf32> to vector<128x3xf32>
    %c0_6 = arith.constant 0 : index
    %c0_7 = arith.constant 0 : index
    %c0_8 = arith.constant 0 : index
    %7 = vector.load %arg5[%c0_6, %c0_7, %c0_8] : memref<1x4x128xf32, #tpu.memory_space<vmem>>, vector<1x4x128xf32>
    %8 = vector.shape_cast %7 : vector<1x4x128xf32> to vector<4x128xf32>
    %9 = vector.extract_strided_slice %6 {offsets = [0, 0], sizes = [128, 1], strides = [1, 1]} : vector<128x3xf32> to vector<128x1xf32>
    %10 = vector.extract_strided_slice %4 {offsets = [0, 0], sizes = [1, 128], strides = [1, 1]} : vector<3x128xf32> to vector<1x128xf32>
    %11 = vector.broadcast %9 : vector<128x1xf32> to vector<128x128xf32>
    %12 = vector.broadcast %10 : vector<1x128xf32> to vector<128x128xf32>
    %13 = arith.subf %11, %12 : vector<128x128xf32>
    %14 = vector.extract_strided_slice %6 {offsets = [0, 1], sizes = [128, 1], strides = [1, 1]} : vector<128x3xf32> to vector<128x1xf32>
    %15 = vector.extract_strided_slice %4 {offsets = [1, 0], sizes = [1, 128], strides = [1, 1]} : vector<3x128xf32> to vector<1x128xf32>
    %16 = vector.broadcast %14 : vector<128x1xf32> to vector<128x128xf32>
    %17 = vector.broadcast %15 : vector<1x128xf32> to vector<128x128xf32>
    %18 = arith.subf %16, %17 : vector<128x128xf32>
    %19 = vector.extract_strided_slice %6 {offsets = [0, 2], sizes = [128, 1], strides = [1, 1]} : vector<128x3xf32> to vector<128x1xf32>
    %20 = vector.extract_strided_slice %4 {offsets = [2, 0], sizes = [1, 128], strides = [1, 1]} : vector<3x128xf32> to vector<1x128xf32>
    %21 = vector.broadcast %19 : vector<128x1xf32> to vector<128x128xf32>
    %22 = vector.broadcast %20 : vector<1x128xf32> to vector<128x128xf32>
    %23 = arith.subf %21, %22 : vector<128x128xf32>
    %24 = arith.mulf %13, %13 : vector<128x128xf32>
    %25 = arith.mulf %18, %18 : vector<128x128xf32>
    %26 = arith.addf %24, %25 : vector<128x128xf32>
    %27 = arith.mulf %23, %23 : vector<128x128xf32>
    %28 = arith.addf %26, %27 : vector<128x128xf32>
    %cst = arith.constant 6.400000e-01 : f32
    %29 = vector.broadcast %cst : f32 to vector<128x128xf32>
    %30 = arith.cmpf olt, %28, %29 : vector<128x128xf32>
    %31 = arith.extui %30 : vector<128x128xi1> to vector<128x128xi32>
    %32 = arith.sitofp %31 : vector<128x128xi32> to vector<128x128xf32>
    %c0_9 = arith.constant 0 : index
    %c0_10 = arith.constant 0 : index
    %33 = vector.load %arg6[%c0_9, %c0_10] : memref<128x4xf32, #tpu.memory_space<vmem>>, vector<128x1xf32>
    %34 = vector.extract_strided_slice %8 {offsets = [0, 0], sizes = [1, 128], strides = [1, 1]} : vector<4x128xf32> to vector<1x128xf32>
    %35 = vector.broadcast %33 : vector<128x1xf32> to vector<128x128xf32>
    %36 = vector.broadcast %34 : vector<1x128xf32> to vector<128x128xf32>
    %37 = arith.mulf %35, %36 : vector<128x128xf32>
    %c0_11 = arith.constant 0 : index
    %c1 = arith.constant 1 : index
    %38 = vector.load %arg6[%c0_11, %c1] : memref<128x4xf32, #tpu.memory_space<vmem>>, vector<128x1xf32>
    %39 = vector.extract_strided_slice %8 {offsets = [1, 0], sizes = [1, 128], strides = [1, 1]} : vector<4x128xf32> to vector<1x128xf32>
    %40 = vector.broadcast %38 : vector<128x1xf32> to vector<128x128xf32>
    %41 = vector.broadcast %39 : vector<1x128xf32> to vector<128x128xf32>
    %42 = arith.mulf %40, %41 : vector<128x128xf32>
    %43 = arith.addf %37, %42 : vector<128x128xf32>
    %c0_12 = arith.constant 0 : index
    %c2 = arith.constant 2 : index
    %44 = vector.load %arg6[%c0_12, %c2] : memref<128x4xf32, #tpu.memory_space<vmem>>, vector<128x1xf32>
    %45 = vector.extract_strided_slice %8 {offsets = [2, 0], sizes = [1, 128], strides = [1, 1]} : vector<4x128xf32> to vector<1x128xf32>
    %46 = vector.broadcast %44 : vector<128x1xf32> to vector<128x128xf32>
    %47 = vector.broadcast %45 : vector<1x128xf32> to vector<128x128xf32>
    %48 = arith.mulf %46, %47 : vector<128x128xf32>
    %49 = arith.addf %43, %48 : vector<128x128xf32>
    %c0_13 = arith.constant 0 : index
    %c3 = arith.constant 3 : index
    %50 = vector.load %arg6[%c0_13, %c3] : memref<128x4xf32, #tpu.memory_space<vmem>>, vector<128x1xf32>
    %51 = vector.extract_strided_slice %8 {offsets = [3, 0], sizes = [1, 128], strides = [1, 1]} : vector<4x128xf32> to vector<1x128xf32>
    %52 = vector.broadcast %50 : vector<128x1xf32> to vector<128x128xf32>
    %53 = vector.broadcast %51 : vector<1x128xf32> to vector<128x128xf32>
    %54 = arith.mulf %52, %53 : vector<128x128xf32>
    %55 = arith.addf %49, %54 : vector<128x128xf32>
    %c0_14 = arith.constant 0 : index
    %c0_15 = arith.constant 0 : index
    %56 = memref.load %arg7[%c0_14, %c0_15] : memref<3x16xf32, #tpu.memory_space<smem>>
    %57 = vector.broadcast %56 : f32 to vector<128x128xf32>
    %58 = arith.mulf %13, %57 : vector<128x128xf32>
    %c1_16 = arith.constant 1 : index
    %c0_17 = arith.constant 0 : index
    %59 = memref.load %arg7[%c1_16, %c0_17] : memref<3x16xf32, #tpu.memory_space<smem>>
    %60 = vector.broadcast %59 : f32 to vector<128x128xf32>
    %61 = arith.mulf %18, %60 : vector<128x128xf32>
    %62 = arith.addf %58, %61 : vector<128x128xf32>
    %c2_18 = arith.constant 2 : index
    %c0_19 = arith.constant 0 : index
    %63 = memref.load %arg7[%c2_18, %c0_19] : memref<3x16xf32, #tpu.memory_space<smem>>
    %64 = vector.broadcast %63 : f32 to vector<128x128xf32>
    %65 = arith.mulf %23, %64 : vector<128x128xf32>
    %66 = arith.addf %62, %65 : vector<128x128xf32>
    %c0_20 = arith.constant 0 : index
    %c0_21 = arith.constant 0 : index
    %67 = memref.load %arg8[%c0_20, %c0_21] : memref<1x16xf32, #tpu.memory_space<smem>>
    %68 = vector.broadcast %67 : f32 to vector<128x128xf32>
    %69 = arith.addf %66, %68 : vector<128x128xf32>
    %70 = math.tanh %69 : vector<128x128xf32>
    %71 = arith.mulf %70, %32 : vector<128x128xf32>
    %72 = vector.extract_strided_slice %55 {offsets = [0, 0], sizes = [8, 128], strides = [1, 1]} : vector<128x128xf32> to vector<8x128xf32>
    %cst_22 = arith.constant dense<0.000000e+00> : vector<8x128xf32>
    %73 = tpu.matmul %72, %71, %cst_22 {dimension_numbers = #tpu.dot_dimension_numbers<[1], [0], [0], [1], [0, 0, 1, 1], [], []>} : vector<8x128xf32>, vector<128x128xf32>, vector<8x128xf32> -> vector<8x128xf32>
    %c0_23 = arith.constant 0 : index
    %c1_24 = arith.constant 1 : index
    %74 = memref.load %arg7[%c0_23, %c1_24] : memref<3x16xf32, #tpu.memory_space<smem>>
    %75 = vector.broadcast %74 : f32 to vector<128x128xf32>
    %76 = arith.mulf %13, %75 : vector<128x128xf32>
    %c1_25 = arith.constant 1 : index
    %c1_26 = arith.constant 1 : index
    %77 = memref.load %arg7[%c1_25, %c1_26] : memref<3x16xf32, #tpu.memory_space<smem>>
    %78 = vector.broadcast %77 : f32 to vector<128x128xf32>
    %79 = arith.mulf %18, %78 : vector<128x128xf32>
    %80 = arith.addf %76, %79 : vector<128x128xf32>
    %c2_27 = arith.constant 2 : index
    %c1_28 = arith.constant 1 : index
    %81 = memref.load %arg7[%c2_27, %c1_28] : memref<3x16xf32, #tpu.memory_space<smem>>
    %82 = vector.broadcast %81 : f32 to vector<128x128xf32>
    %83 = arith.mulf %23, %82 : vector<128x128xf32>
    %84 = arith.addf %80, %83 : vector<128x128xf32>
    %c0_29 = arith.constant 0 : index
    %c1_30 = arith.constant 1 : index
    %85 = memref.load %arg8[%c0_29, %c1_30] : memref<1x16xf32, #tpu.memory_space<smem>>
    %86 = vector.broadcast %85 : f32 to vector<128x128xf32>
    %87 = arith.addf %84, %86 : vector<128x128xf32>
    %88 = math.tanh %87 : vector<128x128xf32>
    %89 = arith.mulf %88, %32 : vector<128x128xf32>
    %90 = vector.extract_strided_slice %55 {offsets = [8, 0], sizes = [8, 128], strides = [1, 1]} : vector<128x128xf32> to vector<8x128xf32>
    %cst_31 = arith.constant dense<0.000000e+00> : vector<8x128xf32>
    %91 = tpu.matmul %90, %89, %cst_31 {dimension_numbers = #tpu.dot_dimension_numbers<[1], [0], [0], [1], [0, 0, 1, 1], [], []>} : vector<8x128xf32>, vector<128x128xf32>, vector<8x128xf32> -> vector<8x128xf32>
    %92 = arith.addf %73, %91 : vector<8x128xf32>
    %c0_32 = arith.constant 0 : index
    %c2_33 = arith.constant 2 : index
    %93 = memref.load %arg7[%c0_32, %c2_33] : memref<3x16xf32, #tpu.memory_space<smem>>
    %94 = vector.broadcast %93 : f32 to vector<128x128xf32>
    %95 = arith.mulf %13, %94 : vector<128x128xf32>
    %c1_34 = arith.constant 1 : index
    %c2_35 = arith.constant 2 : index
    %96 = memref.load %arg7[%c1_34, %c2_35] : memref<3x16xf32, #tpu.memory_space<smem>>
    %97 = vector.broadcast %96 : f32 to vector<128x128xf32>
    %98 = arith.mulf %18, %97 : vector<128x128xf32>
    %99 = arith.addf %95, %98 : vector<128x128xf32>
    %c2_36 = arith.constant 2 : index
    %c2_37 = arith.constant 2 : index
    %100 = memref.load %arg7[%c2_36, %c2_37] : memref<3x16xf32, #tpu.memory_space<smem>>
    %101 = vector.broadcast %100 : f32 to vector<128x128xf32>
    %102 = arith.mulf %23, %101 : vector<128x128xf32>
    %103 = arith.addf %99, %102 : vector<128x128xf32>
    %c0_38 = arith.constant 0 : index
    %c2_39 = arith.constant 2 : index
    %104 = memref.load %arg8[%c0_38, %c2_39] : memref<1x16xf32, #tpu.memory_space<smem>>
    %105 = vector.broadcast %104 : f32 to vector<128x128xf32>
    %106 = arith.addf %103, %105 : vector<128x128xf32>
    %107 = math.tanh %106 : vector<128x128xf32>
    %108 = arith.mulf %107, %32 : vector<128x128xf32>
    %109 = vector.extract_strided_slice %55 {offsets = [16, 0], sizes = [8, 128], strides = [1, 1]} : vector<128x128xf32> to vector<8x128xf32>
    %cst_40 = arith.constant dense<0.000000e+00> : vector<8x128xf32>
    %110 = tpu.matmul %109, %108, %cst_40 {dimension_numbers = #tpu.dot_dimension_numbers<[1], [0], [0], [1], [0, 0, 1, 1], [], []>} : vector<8x128xf32>, vector<128x128xf32>, vector<8x128xf32> -> vector<8x128xf32>
    %111 = arith.addf %92, %110 : vector<8x128xf32>
    %c0_41 = arith.constant 0 : index
    %c3_42 = arith.constant 3 : index
    %112 = memref.load %arg7[%c0_41, %c3_42] : memref<3x16xf32, #tpu.memory_space<smem>>
    %113 = vector.broadcast %112 : f32 to vector<128x128xf32>
    %114 = arith.mulf %13, %113 : vector<128x128xf32>
    %c1_43 = arith.constant 1 : index
    %c3_44 = arith.constant 3 : index
    %115 = memref.load %arg7[%c1_43, %c3_44] : memref<3x16xf32, #tpu.memory_space<smem>>
    %116 = vector.broadcast %115 : f32 to vector<128x128xf32>
    %117 = arith.mulf %18, %116 : vector<128x128xf32>
    %118 = arith.addf %114, %117 : vector<128x128xf32>
    %c2_45 = arith.constant 2 : index
    %c3_46 = arith.constant 3 : index
    %119 = memref.load %arg7[%c2_45, %c3_46] : memref<3x16xf32, #tpu.memory_space<smem>>
    %120 = vector.broadcast %119 : f32 to vector<128x128xf32>
    %121 = arith.mulf %23, %120 : vector<128x128xf32>
    %122 = arith.addf %118, %121 : vector<128x128xf32>
    %c0_47 = arith.constant 0 : index
    %c3_48 = arith.constant 3 : index
    %123 = memref.load %arg8[%c0_47, %c3_48] : memref<1x16xf32, #tpu.memory_space<smem>>
    %124 = vector.broadcast %123 : f32 to vector<128x128xf32>
    %125 = arith.addf %122, %124 : vector<128x128xf32>
    %126 = math.tanh %125 : vector<128x128xf32>
    %127 = arith.mulf %126, %32 : vector<128x128xf32>
    %128 = vector.extract_strided_slice %55 {offsets = [24, 0], sizes = [8, 128], strides = [1, 1]} : vector<128x128xf32> to vector<8x128xf32>
    %cst_49 = arith.constant dense<0.000000e+00> : vector<8x128xf32>
    %129 = tpu.matmul %128, %127, %cst_49 {dimension_numbers = #tpu.dot_dimension_numbers<[1], [0], [0], [1], [0, 0, 1, 1], [], []>} : vector<8x128xf32>, vector<128x128xf32>, vector<8x128xf32> -> vector<8x128xf32>
    %130 = arith.addf %111, %129 : vector<8x128xf32>
    %c0_50 = arith.constant 0 : index
    %c4 = arith.constant 4 : index
    %131 = memref.load %arg7[%c0_50, %c4] : memref<3x16xf32, #tpu.memory_space<smem>>
    %132 = vector.broadcast %131 : f32 to vector<128x128xf32>
    %133 = arith.mulf %13, %132 : vector<128x128xf32>
    %c1_51 = arith.constant 1 : index
    %c4_52 = arith.constant 4 : index
    %134 = memref.load %arg7[%c1_51, %c4_52] : memref<3x16xf32, #tpu.memory_space<smem>>
    %135 = vector.broadcast %134 : f32 to vector<128x128xf32>
    %136 = arith.mulf %18, %135 : vector<128x128xf32>
    %137 = arith.addf %133, %136 : vector<128x128xf32>
    %c2_53 = arith.constant 2 : index
    %c4_54 = arith.constant 4 : index
    %138 = memref.load %arg7[%c2_53, %c4_54] : memref<3x16xf32, #tpu.memory_space<smem>>
    %139 = vector.broadcast %138 : f32 to vector<128x128xf32>
    %140 = arith.mulf %23, %139 : vector<128x128xf32>
    %141 = arith.addf %137, %140 : vector<128x128xf32>
    %c0_55 = arith.constant 0 : index
    %c4_56 = arith.constant 4 : index
    %142 = memref.load %arg8[%c0_55, %c4_56] : memref<1x16xf32, #tpu.memory_space<smem>>
    %143 = vector.broadcast %142 : f32 to vector<128x128xf32>
    %144 = arith.addf %141, %143 : vector<128x128xf32>
    %145 = math.tanh %144 : vector<128x128xf32>
    %146 = arith.mulf %145, %32 : vector<128x128xf32>
    %147 = vector.extract_strided_slice %55 {offsets = [32, 0], sizes = [8, 128], strides = [1, 1]} : vector<128x128xf32> to vector<8x128xf32>
    %cst_57 = arith.constant dense<0.000000e+00> : vector<8x128xf32>
    %148 = tpu.matmul %147, %146, %cst_57 {dimension_numbers = #tpu.dot_dimension_numbers<[1], [0], [0], [1], [0, 0, 1, 1], [], []>} : vector<8x128xf32>, vector<128x128xf32>, vector<8x128xf32> -> vector<8x128xf32>
    %149 = arith.addf %130, %148 : vector<8x128xf32>
    %c0_58 = arith.constant 0 : index
    %c5 = arith.constant 5 : index
    %150 = memref.load %arg7[%c0_58, %c5] : memref<3x16xf32, #tpu.memory_space<smem>>
    %151 = vector.broadcast %150 : f32 to vector<128x128xf32>
    %152 = arith.mulf %13, %151 : vector<128x128xf32>
    %c1_59 = arith.constant 1 : index
    %c5_60 = arith.constant 5 : index
    %153 = memref.load %arg7[%c1_59, %c5_60] : memref<3x16xf32, #tpu.memory_space<smem>>
    %154 = vector.broadcast %153 : f32 to vector<128x128xf32>
    %155 = arith.mulf %18, %154 : vector<128x128xf32>
    %156 = arith.addf %152, %155 : vector<128x128xf32>
    %c2_61 = arith.constant 2 : index
    %c5_62 = arith.constant 5 : index
    %157 = memref.load %arg7[%c2_61, %c5_62] : memref<3x16xf32, #tpu.memory_space<smem>>
    %158 = vector.broadcast %157 : f32 to vector<128x128xf32>
    %159 = arith.mulf %23, %158 : vector<128x128xf32>
    %160 = arith.addf %156, %159 : vector<128x128xf32>
    %c0_63 = arith.constant 0 : index
    %c5_64 = arith.constant 5 : index
    %161 = memref.load %arg8[%c0_63, %c5_64] : memref<1x16xf32, #tpu.memory_space<smem>>
    %162 = vector.broadcast %161 : f32 to vector<128x128xf32>
    %163 = arith.addf %160, %162 : vector<128x128xf32>
    %164 = math.tanh %163 : vector<128x128xf32>
    %165 = arith.mulf %164, %32 : vector<128x128xf32>
    %166 = vector.extract_strided_slice %55 {offsets = [40, 0], sizes = [8, 128], strides = [1, 1]} : vector<128x128xf32> to vector<8x128xf32>
    %cst_65 = arith.constant dense<0.000000e+00> : vector<8x128xf32>
    %167 = tpu.matmul %166, %165, %cst_65 {dimension_numbers = #tpu.dot_dimension_numbers<[1], [0], [0], [1], [0, 0, 1, 1], [], []>} : vector<8x128xf32>, vector<128x128xf32>, vector<8x128xf32> -> vector<8x128xf32>
    %168 = arith.addf %149, %167 : vector<8x128xf32>
    %c0_66 = arith.constant 0 : index
    %c6 = arith.constant 6 : index
    %169 = memref.load %arg7[%c0_66, %c6] : memref<3x16xf32, #tpu.memory_space<smem>>
    %170 = vector.broadcast %169 : f32 to vector<128x128xf32>
    %171 = arith.mulf %13, %170 : vector<128x128xf32>
    %c1_67 = arith.constant 1 : index
    %c6_68 = arith.constant 6 : index
    %172 = memref.load %arg7[%c1_67, %c6_68] : memref<3x16xf32, #tpu.memory_space<smem>>
    %173 = vector.broadcast %172 : f32 to vector<128x128xf32>
    %174 = arith.mulf %18, %173 : vector<128x128xf32>
    %175 = arith.addf %171, %174 : vector<128x128xf32>
    %c2_69 = arith.constant 2 : index
    %c6_70 = arith.constant 6 : index
    %176 = memref.load %arg7[%c2_69, %c6_70] : memref<3x16xf32, #tpu.memory_space<smem>>
    %177 = vector.broadcast %176 : f32 to vector<128x128xf32>
    %178 = arith.mulf %23, %177 : vector<128x128xf32>
    %179 = arith.addf %175, %178 : vector<128x128xf32>
    %c0_71 = arith.constant 0 : index
    %c6_72 = arith.constant 6 : index
    %180 = memref.load %arg8[%c0_71, %c6_72] : memref<1x16xf32, #tpu.memory_space<smem>>
    %181 = vector.broadcast %180 : f32 to vector<128x128xf32>
    %182 = arith.addf %179, %181 : vector<128x128xf32>
    %183 = math.tanh %182 : vector<128x128xf32>
    %184 = arith.mulf %183, %32 : vector<128x128xf32>
    %185 = vector.extract_strided_slice %55 {offsets = [48, 0], sizes = [8, 128], strides = [1, 1]} : vector<128x128xf32> to vector<8x128xf32>
    %cst_73 = arith.constant dense<0.000000e+00> : vector<8x128xf32>
    %186 = tpu.matmul %185, %184, %cst_73 {dimension_numbers = #tpu.dot_dimension_numbers<[1], [0], [0], [1], [0, 0, 1, 1], [], []>} : vector<8x128xf32>, vector<128x128xf32>, vector<8x128xf32> -> vector<8x128xf32>
    %187 = arith.addf %168, %186 : vector<8x128xf32>
    %c0_74 = arith.constant 0 : index
    %c7 = arith.constant 7 : index
    %188 = memref.load %arg7[%c0_74, %c7] : memref<3x16xf32, #tpu.memory_space<smem>>
    %189 = vector.broadcast %188 : f32 to vector<128x128xf32>
    %190 = arith.mulf %13, %189 : vector<128x128xf32>
    %c1_75 = arith.constant 1 : index
    %c7_76 = arith.constant 7 : index
    %191 = memref.load %arg7[%c1_75, %c7_76] : memref<3x16xf32, #tpu.memory_space<smem>>
    %192 = vector.broadcast %191 : f32 to vector<128x128xf32>
    %193 = arith.mulf %18, %192 : vector<128x128xf32>
    %194 = arith.addf %190, %193 : vector<128x128xf32>
    %c2_77 = arith.constant 2 : index
    %c7_78 = arith.constant 7 : index
    %195 = memref.load %arg7[%c2_77, %c7_78] : memref<3x16xf32, #tpu.memory_space<smem>>
    %196 = vector.broadcast %195 : f32 to vector<128x128xf32>
    %197 = arith.mulf %23, %196 : vector<128x128xf32>
    %198 = arith.addf %194, %197 : vector<128x128xf32>
    %c0_79 = arith.constant 0 : index
    %c7_80 = arith.constant 7 : index
    %199 = memref.load %arg8[%c0_79, %c7_80] : memref<1x16xf32, #tpu.memory_space<smem>>
    %200 = vector.broadcast %199 : f32 to vector<128x128xf32>
    %201 = arith.addf %198, %200 : vector<128x128xf32>
    %202 = math.tanh %201 : vector<128x128xf32>
    %203 = arith.mulf %202, %32 : vector<128x128xf32>
    %204 = vector.extract_strided_slice %55 {offsets = [56, 0], sizes = [8, 128], strides = [1, 1]} : vector<128x128xf32> to vector<8x128xf32>
    %cst_81 = arith.constant dense<0.000000e+00> : vector<8x128xf32>
    %205 = tpu.matmul %204, %203, %cst_81 {dimension_numbers = #tpu.dot_dimension_numbers<[1], [0], [0], [1], [0, 0, 1, 1], [], []>} : vector<8x128xf32>, vector<128x128xf32>, vector<8x128xf32> -> vector<8x128xf32>
    %206 = arith.addf %187, %205 : vector<8x128xf32>
    %c0_82 = arith.constant 0 : index
    %c8 = arith.constant 8 : index
    %207 = memref.load %arg7[%c0_82, %c8] : memref<3x16xf32, #tpu.memory_space<smem>>
    %208 = vector.broadcast %207 : f32 to vector<128x128xf32>
    %209 = arith.mulf %13, %208 : vector<128x128xf32>
    %c1_83 = arith.constant 1 : index
    %c8_84 = arith.constant 8 : index
    %210 = memref.load %arg7[%c1_83, %c8_84] : memref<3x16xf32, #tpu.memory_space<smem>>
    %211 = vector.broadcast %210 : f32 to vector<128x128xf32>
    %212 = arith.mulf %18, %211 : vector<128x128xf32>
    %213 = arith.addf %209, %212 : vector<128x128xf32>
    %c2_85 = arith.constant 2 : index
    %c8_86 = arith.constant 8 : index
    %214 = memref.load %arg7[%c2_85, %c8_86] : memref<3x16xf32, #tpu.memory_space<smem>>
    %215 = vector.broadcast %214 : f32 to vector<128x128xf32>
    %216 = arith.mulf %23, %215 : vector<128x128xf32>
    %217 = arith.addf %213, %216 : vector<128x128xf32>
    %c0_87 = arith.constant 0 : index
    %c8_88 = arith.constant 8 : index
    %218 = memref.load %arg8[%c0_87, %c8_88] : memref<1x16xf32, #tpu.memory_space<smem>>
    %219 = vector.broadcast %218 : f32 to vector<128x128xf32>
    %220 = arith.addf %217, %219 : vector<128x128xf32>
    %221 = math.tanh %220 : vector<128x128xf32>
    %222 = arith.mulf %221, %32 : vector<128x128xf32>
    %223 = vector.extract_strided_slice %55 {offsets = [64, 0], sizes = [8, 128], strides = [1, 1]} : vector<128x128xf32> to vector<8x128xf32>
    %cst_89 = arith.constant dense<0.000000e+00> : vector<8x128xf32>
    %224 = tpu.matmul %223, %222, %cst_89 {dimension_numbers = #tpu.dot_dimension_numbers<[1], [0], [0], [1], [0, 0, 1, 1], [], []>} : vector<8x128xf32>, vector<128x128xf32>, vector<8x128xf32> -> vector<8x128xf32>
    %225 = arith.addf %206, %224 : vector<8x128xf32>
    %c0_90 = arith.constant 0 : index
    %c9 = arith.constant 9 : index
    %226 = memref.load %arg7[%c0_90, %c9] : memref<3x16xf32, #tpu.memory_space<smem>>
    %227 = vector.broadcast %226 : f32 to vector<128x128xf32>
    %228 = arith.mulf %13, %227 : vector<128x128xf32>
    %c1_91 = arith.constant 1 : index
    %c9_92 = arith.constant 9 : index
    %229 = memref.load %arg7[%c1_91, %c9_92] : memref<3x16xf32, #tpu.memory_space<smem>>
    %230 = vector.broadcast %229 : f32 to vector<128x128xf32>
    %231 = arith.mulf %18, %230 : vector<128x128xf32>
    %232 = arith.addf %228, %231 : vector<128x128xf32>
    %c2_93 = arith.constant 2 : index
    %c9_94 = arith.constant 9 : index
    %233 = memref.load %arg7[%c2_93, %c9_94] : memref<3x16xf32, #tpu.memory_space<smem>>
    %234 = vector.broadcast %233 : f32 to vector<128x128xf32>
    %235 = arith.mulf %23, %234 : vector<128x128xf32>
    %236 = arith.addf %232, %235 : vector<128x128xf32>
    %c0_95 = arith.constant 0 : index
    %c9_96 = arith.constant 9 : index
    %237 = memref.load %arg8[%c0_95, %c9_96] : memref<1x16xf32, #tpu.memory_space<smem>>
    %238 = vector.broadcast %237 : f32 to vector<128x128xf32>
    %239 = arith.addf %236, %238 : vector<128x128xf32>
    %240 = math.tanh %239 : vector<128x128xf32>
    %241 = arith.mulf %240, %32 : vector<128x128xf32>
    %242 = vector.extract_strided_slice %55 {offsets = [72, 0], sizes = [8, 128], strides = [1, 1]} : vector<128x128xf32> to vector<8x128xf32>
    %cst_97 = arith.constant dense<0.000000e+00> : vector<8x128xf32>
    %243 = tpu.matmul %242, %241, %cst_97 {dimension_numbers = #tpu.dot_dimension_numbers<[1], [0], [0], [1], [0, 0, 1, 1], [], []>} : vector<8x128xf32>, vector<128x128xf32>, vector<8x128xf32> -> vector<8x128xf32>
    %244 = arith.addf %225, %243 : vector<8x128xf32>
    %c0_98 = arith.constant 0 : index
    %c10 = arith.constant 10 : index
    %245 = memref.load %arg7[%c0_98, %c10] : memref<3x16xf32, #tpu.memory_space<smem>>
    %246 = vector.broadcast %245 : f32 to vector<128x128xf32>
    %247 = arith.mulf %13, %246 : vector<128x128xf32>
    %c1_99 = arith.constant 1 : index
    %c10_100 = arith.constant 10 : index
    %248 = memref.load %arg7[%c1_99, %c10_100] : memref<3x16xf32, #tpu.memory_space<smem>>
    %249 = vector.broadcast %248 : f32 to vector<128x128xf32>
    %250 = arith.mulf %18, %249 : vector<128x128xf32>
    %251 = arith.addf %247, %250 : vector<128x128xf32>
    %c2_101 = arith.constant 2 : index
    %c10_102 = arith.constant 10 : index
    %252 = memref.load %arg7[%c2_101, %c10_102] : memref<3x16xf32, #tpu.memory_space<smem>>
    %253 = vector.broadcast %252 : f32 to vector<128x128xf32>
    %254 = arith.mulf %23, %253 : vector<128x128xf32>
    %255 = arith.addf %251, %254 : vector<128x128xf32>
    %c0_103 = arith.constant 0 : index
    %c10_104 = arith.constant 10 : index
    %256 = memref.load %arg8[%c0_103, %c10_104] : memref<1x16xf32, #tpu.memory_space<smem>>
    %257 = vector.broadcast %256 : f32 to vector<128x128xf32>
    %258 = arith.addf %255, %257 : vector<128x128xf32>
    %259 = math.tanh %258 : vector<128x128xf32>
    %260 = arith.mulf %259, %32 : vector<128x128xf32>
    %261 = vector.extract_strided_slice %55 {offsets = [80, 0], sizes = [8, 128], strides = [1, 1]} : vector<128x128xf32> to vector<8x128xf32>
    %cst_105 = arith.constant dense<0.000000e+00> : vector<8x128xf32>
    %262 = tpu.matmul %261, %260, %cst_105 {dimension_numbers = #tpu.dot_dimension_numbers<[1], [0], [0], [1], [0, 0, 1, 1], [], []>} : vector<8x128xf32>, vector<128x128xf32>, vector<8x128xf32> -> vector<8x128xf32>
    %263 = arith.addf %244, %262 : vector<8x128xf32>
    %c0_106 = arith.constant 0 : index
    %c11 = arith.constant 11 : index
    %264 = memref.load %arg7[%c0_106, %c11] : memref<3x16xf32, #tpu.memory_space<smem>>
    %265 = vector.broadcast %264 : f32 to vector<128x128xf32>
    %266 = arith.mulf %13, %265 : vector<128x128xf32>
    %c1_107 = arith.constant 1 : index
    %c11_108 = arith.constant 11 : index
    %267 = memref.load %arg7[%c1_107, %c11_108] : memref<3x16xf32, #tpu.memory_space<smem>>
    %268 = vector.broadcast %267 : f32 to vector<128x128xf32>
    %269 = arith.mulf %18, %268 : vector<128x128xf32>
    %270 = arith.addf %266, %269 : vector<128x128xf32>
    %c2_109 = arith.constant 2 : index
    %c11_110 = arith.constant 11 : index
    %271 = memref.load %arg7[%c2_109, %c11_110] : memref<3x16xf32, #tpu.memory_space<smem>>
    %272 = vector.broadcast %271 : f32 to vector<128x128xf32>
    %273 = arith.mulf %23, %272 : vector<128x128xf32>
    %274 = arith.addf %270, %273 : vector<128x128xf32>
    %c0_111 = arith.constant 0 : index
    %c11_112 = arith.constant 11 : index
    %275 = memref.load %arg8[%c0_111, %c11_112] : memref<1x16xf32, #tpu.memory_space<smem>>
    %276 = vector.broadcast %275 : f32 to vector<128x128xf32>
    %277 = arith.addf %274, %276 : vector<128x128xf32>
    %278 = math.tanh %277 : vector<128x128xf32>
    %279 = arith.mulf %278, %32 : vector<128x128xf32>
    %280 = vector.extract_strided_slice %55 {offsets = [88, 0], sizes = [8, 128], strides = [1, 1]} : vector<128x128xf32> to vector<8x128xf32>
    %cst_113 = arith.constant dense<0.000000e+00> : vector<8x128xf32>
    %281 = tpu.matmul %280, %279, %cst_113 {dimension_numbers = #tpu.dot_dimension_numbers<[1], [0], [0], [1], [0, 0, 1, 1], [], []>} : vector<8x128xf32>, vector<128x128xf32>, vector<8x128xf32> -> vector<8x128xf32>
    %282 = arith.addf %263, %281 : vector<8x128xf32>
    %c0_114 = arith.constant 0 : index
    %c12 = arith.constant 12 : index
    %283 = memref.load %arg7[%c0_114, %c12] : memref<3x16xf32, #tpu.memory_space<smem>>
    %284 = vector.broadcast %283 : f32 to vector<128x128xf32>
    %285 = arith.mulf %13, %284 : vector<128x128xf32>
    %c1_115 = arith.constant 1 : index
    %c12_116 = arith.constant 12 : index
    %286 = memref.load %arg7[%c1_115, %c12_116] : memref<3x16xf32, #tpu.memory_space<smem>>
    %287 = vector.broadcast %286 : f32 to vector<128x128xf32>
    %288 = arith.mulf %18, %287 : vector<128x128xf32>
    %289 = arith.addf %285, %288 : vector<128x128xf32>
    %c2_117 = arith.constant 2 : index
    %c12_118 = arith.constant 12 : index
    %290 = memref.load %arg7[%c2_117, %c12_118] : memref<3x16xf32, #tpu.memory_space<smem>>
    %291 = vector.broadcast %290 : f32 to vector<128x128xf32>
    %292 = arith.mulf %23, %291 : vector<128x128xf32>
    %293 = arith.addf %289, %292 : vector<128x128xf32>
    %c0_119 = arith.constant 0 : index
    %c12_120 = arith.constant 12 : index
    %294 = memref.load %arg8[%c0_119, %c12_120] : memref<1x16xf32, #tpu.memory_space<smem>>
    %295 = vector.broadcast %294 : f32 to vector<128x128xf32>
    %296 = arith.addf %293, %295 : vector<128x128xf32>
    %297 = math.tanh %296 : vector<128x128xf32>
    %298 = arith.mulf %297, %32 : vector<128x128xf32>
    %299 = vector.extract_strided_slice %55 {offsets = [96, 0], sizes = [8, 128], strides = [1, 1]} : vector<128x128xf32> to vector<8x128xf32>
    %cst_121 = arith.constant dense<0.000000e+00> : vector<8x128xf32>
    %300 = tpu.matmul %299, %298, %cst_121 {dimension_numbers = #tpu.dot_dimension_numbers<[1], [0], [0], [1], [0, 0, 1, 1], [], []>} : vector<8x128xf32>, vector<128x128xf32>, vector<8x128xf32> -> vector<8x128xf32>
    %301 = arith.addf %282, %300 : vector<8x128xf32>
    %c0_122 = arith.constant 0 : index
    %c13 = arith.constant 13 : index
    %302 = memref.load %arg7[%c0_122, %c13] : memref<3x16xf32, #tpu.memory_space<smem>>
    %303 = vector.broadcast %302 : f32 to vector<128x128xf32>
    %304 = arith.mulf %13, %303 : vector<128x128xf32>
    %c1_123 = arith.constant 1 : index
    %c13_124 = arith.constant 13 : index
    %305 = memref.load %arg7[%c1_123, %c13_124] : memref<3x16xf32, #tpu.memory_space<smem>>
    %306 = vector.broadcast %305 : f32 to vector<128x128xf32>
    %307 = arith.mulf %18, %306 : vector<128x128xf32>
    %308 = arith.addf %304, %307 : vector<128x128xf32>
    %c2_125 = arith.constant 2 : index
    %c13_126 = arith.constant 13 : index
    %309 = memref.load %arg7[%c2_125, %c13_126] : memref<3x16xf32, #tpu.memory_space<smem>>
    %310 = vector.broadcast %309 : f32 to vector<128x128xf32>
    %311 = arith.mulf %23, %310 : vector<128x128xf32>
    %312 = arith.addf %308, %311 : vector<128x128xf32>
    %c0_127 = arith.constant 0 : index
    %c13_128 = arith.constant 13 : index
    %313 = memref.load %arg8[%c0_127, %c13_128] : memref<1x16xf32, #tpu.memory_space<smem>>
    %314 = vector.broadcast %313 : f32 to vector<128x128xf32>
    %315 = arith.addf %312, %314 : vector<128x128xf32>
    %316 = math.tanh %315 : vector<128x128xf32>
    %317 = arith.mulf %316, %32 : vector<128x128xf32>
    %318 = vector.extract_strided_slice %55 {offsets = [104, 0], sizes = [8, 128], strides = [1, 1]} : vector<128x128xf32> to vector<8x128xf32>
    %cst_129 = arith.constant dense<0.000000e+00> : vector<8x128xf32>
    %319 = tpu.matmul %318, %317, %cst_129 {dimension_numbers = #tpu.dot_dimension_numbers<[1], [0], [0], [1], [0, 0, 1, 1], [], []>} : vector<8x128xf32>, vector<128x128xf32>, vector<8x128xf32> -> vector<8x128xf32>
    %320 = arith.addf %301, %319 : vector<8x128xf32>
    %c0_130 = arith.constant 0 : index
    %c14 = arith.constant 14 : index
    %321 = memref.load %arg7[%c0_130, %c14] : memref<3x16xf32, #tpu.memory_space<smem>>
    %322 = vector.broadcast %321 : f32 to vector<128x128xf32>
    %323 = arith.mulf %13, %322 : vector<128x128xf32>
    %c1_131 = arith.constant 1 : index
    %c14_132 = arith.constant 14 : index
    %324 = memref.load %arg7[%c1_131, %c14_132] : memref<3x16xf32, #tpu.memory_space<smem>>
    %325 = vector.broadcast %324 : f32 to vector<128x128xf32>
    %326 = arith.mulf %18, %325 : vector<128x128xf32>
    %327 = arith.addf %323, %326 : vector<128x128xf32>
    %c2_133 = arith.constant 2 : index
    %c14_134 = arith.constant 14 : index
    %328 = memref.load %arg7[%c2_133, %c14_134] : memref<3x16xf32, #tpu.memory_space<smem>>
    %329 = vector.broadcast %328 : f32 to vector<128x128xf32>
    %330 = arith.mulf %23, %329 : vector<128x128xf32>
    %331 = arith.addf %327, %330 : vector<128x128xf32>
    %c0_135 = arith.constant 0 : index
    %c14_136 = arith.constant 14 : index
    %332 = memref.load %arg8[%c0_135, %c14_136] : memref<1x16xf32, #tpu.memory_space<smem>>
    %333 = vector.broadcast %332 : f32 to vector<128x128xf32>
    %334 = arith.addf %331, %333 : vector<128x128xf32>
    %335 = math.tanh %334 : vector<128x128xf32>
    %336 = arith.mulf %335, %32 : vector<128x128xf32>
    %337 = vector.extract_strided_slice %55 {offsets = [112, 0], sizes = [8, 128], strides = [1, 1]} : vector<128x128xf32> to vector<8x128xf32>
    %cst_137 = arith.constant dense<0.000000e+00> : vector<8x128xf32>
    %338 = tpu.matmul %337, %336, %cst_137 {dimension_numbers = #tpu.dot_dimension_numbers<[1], [0], [0], [1], [0, 0, 1, 1], [], []>} : vector<8x128xf32>, vector<128x128xf32>, vector<8x128xf32> -> vector<8x128xf32>
    %339 = arith.addf %320, %338 : vector<8x128xf32>
    %c0_138 = arith.constant 0 : index
    %c15 = arith.constant 15 : index
    %340 = memref.load %arg7[%c0_138, %c15] : memref<3x16xf32, #tpu.memory_space<smem>>
    %341 = vector.broadcast %340 : f32 to vector<128x128xf32>
    %342 = arith.mulf %13, %341 : vector<128x128xf32>
    %c1_139 = arith.constant 1 : index
    %c15_140 = arith.constant 15 : index
    %343 = memref.load %arg7[%c1_139, %c15_140] : memref<3x16xf32, #tpu.memory_space<smem>>
    %344 = vector.broadcast %343 : f32 to vector<128x128xf32>
    %345 = arith.mulf %18, %344 : vector<128x128xf32>
    %346 = arith.addf %342, %345 : vector<128x128xf32>
    %c2_141 = arith.constant 2 : index
    %c15_142 = arith.constant 15 : index
    %347 = memref.load %arg7[%c2_141, %c15_142] : memref<3x16xf32, #tpu.memory_space<smem>>
    %348 = vector.broadcast %347 : f32 to vector<128x128xf32>
    %349 = arith.mulf %23, %348 : vector<128x128xf32>
    %350 = arith.addf %346, %349 : vector<128x128xf32>
    %c0_143 = arith.constant 0 : index
    %c15_144 = arith.constant 15 : index
    %351 = memref.load %arg8[%c0_143, %c15_144] : memref<1x16xf32, #tpu.memory_space<smem>>
    %352 = vector.broadcast %351 : f32 to vector<128x128xf32>
    %353 = arith.addf %350, %352 : vector<128x128xf32>
    %354 = math.tanh %353 : vector<128x128xf32>
    %355 = arith.mulf %354, %32 : vector<128x128xf32>
    %356 = vector.extract_strided_slice %55 {offsets = [120, 0], sizes = [8, 128], strides = [1, 1]} : vector<128x128xf32> to vector<8x128xf32>
    %cst_145 = arith.constant dense<0.000000e+00> : vector<8x128xf32>
    %357 = tpu.matmul %356, %355, %cst_145 {dimension_numbers = #tpu.dot_dimension_numbers<[1], [0], [0], [1], [0, 0, 1, 1], [], []>} : vector<8x128xf32>, vector<128x128xf32>, vector<8x128xf32> -> vector<8x128xf32>
    %358 = arith.addf %339, %357 : vector<8x128xf32>
    %c0_146 = arith.constant 0 : index
    %c0_147 = arith.constant 0 : index
    %c0_148 = arith.constant 0 : index
    %359 = vector.load %arg9[%c0_146, %c0_147, %c0_148] : memref<1x8x128xf32, #tpu.memory_space<vmem>>, vector<1x8x128xf32>
    %360 = vector.shape_cast %359 : vector<1x8x128xf32> to vector<8x128xf32>
    %361 = arith.addf %360, %358 : vector<8x128xf32>
    %c0_149 = arith.constant 0 : index
    %c0_150 = arith.constant 0 : index
    %c0_151 = arith.constant 0 : index
    %362 = vector.load %arg9[%c0_149, %c0_150, %c0_151] : memref<1x8x128xf32, #tpu.memory_space<vmem>>, vector<1x8x128xf32>
    %363 = vector.shape_cast %362 : vector<1x8x128xf32> to vector<8x128xf32>
    %364 = vector.shape_cast %361 : vector<8x128xf32> to vector<1x8x128xf32>
    tpu.vector_store %arg9[%c0_149, %c0_150, %c0_151], %364 {strides = array<i32>} : memref<1x8x128xf32, #tpu.memory_space<vmem>>, vector<1x8x128xf32>,
    return
  }
  func.func @transform_0(%arg0: i32, %arg1: i32, %arg2: i32) -> (i32, i32, i32) {
    %c0_i32 = arith.constant 0 : i32
    %c0_i32_0 = arith.constant 0 : i32
    return %arg0, %c0_i32, %arg1 : i32, i32, i32
  }
  func.func @transform_1(%arg0: i32, %arg1: i32, %arg2: i32) -> (i32, i32, i32) {
    %c0_i32 = arith.constant 0 : i32
    %c0_i32_0 = arith.constant 0 : i32
    return %arg0, %arg2, %c0_i32 : i32, i32, i32
  }
  func.func @transform_2(%arg0: i32, %arg1: i32, %arg2: i32) -> (i32, i32, i32) {
    %c0_i32 = arith.constant 0 : i32
    %c0_i32_0 = arith.constant 0 : i32
    return %arg0, %c0_i32, %arg2 : i32, i32, i32
  }
  func.func @transform_3(%arg0: i32, %arg1: i32, %arg2: i32) -> (i32, i32) {
    %c0_i32 = arith.constant 0 : i32
    %c0_i32_0 = arith.constant 0 : i32
    %c0_i32_1 = arith.constant 0 : i32
    return %c0_i32, %c0_i32_0 : i32, i32
  }
  func.func @transform_4(%arg0: i32, %arg1: i32, %arg2: i32) -> (i32, i32) {
    %c0_i32 = arith.constant 0 : i32
    %c0_i32_0 = arith.constant 0 : i32
    %c0_i32_1 = arith.constant 0 : i32
    return %c0_i32, %c0_i32_0 : i32, i32
  }
  func.func @transform_5(%arg0: i32, %arg1: i32, %arg2: i32) -> (i32, i32) {
    %c0_i32 = arith.constant 0 : i32
    %c0_i32_0 = arith.constant 0 : i32
    %c0_i32_1 = arith.constant 0 : i32
    return %c0_i32, %c0_i32_0 : i32, i32
  }
  func.func @transform_6(%arg0: i32, %arg1: i32, %arg2: i32) -> (i32, i32, i32) {
    %c0_i32 = arith.constant 0 : i32
    %c0_i32_0 = arith.constant 0 : i32
    return %arg0, %c0_i32, %arg1 : i32, i32, i32
  }
}

</mosaic_0001>

<llo_original>
// kernel: tpu_custom_call.1
$region0: #{tpu_custom_call.1}
  #allocation0 [shape = 'u32[]', space=smem, size = 0x4, offset = 0x4, fixed_abs, tag = 'smem constant byte address 0x4 - core index']
  #allocation1 [shape = 'u32[144,128]{1,0:T(1,128)}', space=vmem, size = 0x12000, scoped, tag = 'internal scratch']
  %s0 = inlined_call_operand.vmem [shape: f32[2,3,256], index: 0, kind: input, shape index: {}]
  %s1 = inlined_call_operand.vmem [shape: f32[2,256,3], index: 1, kind: input, shape index: {}]
  %s2 = inlined_call_operand.vmem [shape: f32[2,4,256], index: 2, kind: input, shape index: {}]
  %s3 = inlined_call_operand.vmem [shape: f32[128,4], index: 3, kind: input, shape index: {}]
  %s4 = inlined_call_operand.vmem [shape: f32[3,16], index: 4, kind: input, shape index: {}]
  %s5 = inlined_call_operand.vmem [shape: f32[1,16], index: 5, kind: input, shape index: {}]
  %s6 = inlined_call_operand.hbm [shape: f32[2,8,256], index: 6, kind: output, shape index: {}]
  %s7 = sld [smem:[#allocation0]]
  $region69: #{tpu_custom_call.1} parent=0
    _
  %s9 = ssub.s32 1, %s7
  %s10 = scalar_select 0, %s9, %s7
  $region1: #{tpu_custom_call.1} parent=0
    #allocation2 [shape = 'u8[2048]{0}', space=smem, size = 0x800, scoped, tag = 'input window, operand 4, single buffered']
    #allocation3 [shape = 's32[2]{0}', space=sflag, size = 0x8, scoped, tag = 'scoped memory for tpu_custom_call.1']
    #allocation4 [shape = 's32[2]{0}', space=sflag, size = 0x8, scoped, tag = 'scoped memory for tpu_custom_call.1']
    #allocation5 [shape = 'u8[512]{0}', space=smem, size = 0x200, scoped, tag = 'input window, operand 5, single buffered']
    #allocation6 [shape = 's32[1]{0}', space=sflag, size = 0x4, scoped, tag = 'scoped memory for tpu_custom_call.1']
    #allocation7 [shape = 'u8[8192]{0}', space=vmem, size = 0x2000, scoped, tag = 'output window, operand 0']
    %11 = vsyncpa [#allocation4], 0
    %12 = vsyncpa [#allocation6], 0
    %13 = vsyncpa [#allocation3], 0
    %s14 = scalar_lea.sflag [#allocation3], 1
    %15 = vsyncpa %s14, 0
    loop: start=0, step=1, limit=10
    $region2: #{tpu_custom_call.1} parent=1 // loop_pre_header
      _
    $region3: #{tpu_custom_call.1} parent=1 // loop_header
      %s17 = sphi 0, %s21
      %p18 = scmp.ge.s32.totalorder %s17, 10
      %s24 = sphi 0, %s43
      %s25 = sphi 0, %s39
      %s26 = sphi 0, %s35
      %s27 = sphi 0, %s24
      %s28 = sphi 0, %s25
      %s29 = sphi 0, %s26
      %s30 = sphi 0, %s27
      %s31 = sphi 0, %s28
      %s32 = sphi 0, %s29
      %s48 = sphi 0, %s50
      %s51 = sphi 0, %s48
      %s52 = sphi 0, %s51
      %s68 = sphi 0, %s52
      %s76 = sphi 0, %s78
      %s79 = sphi 0, %s76
      %s80 = sphi 0, %s79
      %s96 = sphi 0, %s80
      %s104 = sphi 0, %s106
      %s107 = sphi 0, %s104
      %s108 = sphi 0, %s107
      %s124 = sphi 0, %s108
      %s128 = sphi 0, %s128
      %s130 = sphi 0, %s128
      %s131 = sphi 0, %s130
      %s145 = sphi 0, %s131
      %s149 = sphi 0, %s149
      %s151 = sphi 0, %s149
      %s152 = sphi 0, %s151
      %s166 = sphi 0, %s152
      %s170 = sphi 0, %s170
      %s172 = sphi 0, %s170
      %s173 = sphi 0, %s172
      %s187 = sphi 0, %s173
      %s195 = sphi 0, %s197
      %s198 = sphi 0, %s195
      %s199 = sphi 0, %s198
      %s215 = sphi 0, %s199
    $region4: #{tpu_custom_call.1} parent=1 // loop_header_branch
      %20 = sbr.rel (%p18) target = $region8
    $region5: #{tpu_custom_call.1} parent=1 // loop_body
      %s22 = ssub.s32 %s17, 1
      %s23 = ssub.s32 %s17, 2
      %s33 = sadd.s32 1, %s26
      %p34 = scmp.ge.s32.totalorder %s33, 2
      %s35 = scalar_select %p34, 0, %s33
      %s36 = sadd.s32 1, %s25
      %s37 = scalar_select %p34, %s36, %s25
      %p38 = scmp.ge.s32.totalorder %s37, 2
      %s39 = scalar_select %p38, 0, %s37
      %s40 = sadd.s32 1, %s24
      %s41 = scalar_select %p38, %s40, %s24
      %p42 = scmp.ge.s32.totalorder %s41, 2
      %s43 = scalar_select %p42, 0, %s41
      %s44 = ssub.s32 %s24, %s43
      %s45 = ssub.s32 %s25, %s39
      %s46 = sor.u32 %s44, %s45
      %p47 = scmp.eq.s32.totalorder %s46, 0
      %s49 = sadd.s32 %s48, 1
      %s50 = scalar_select %p47, %s48, %s49
      %p53 = pneg %p47
      %p54 = scmp.eq.s32.totalorder %s17, 7
      %p55 = por %p53, %p54
      %p56 = scmp.ne.s32.totalorder %s48, %s51
      %p57 = scmp.eq.s32.totalorder %s17, 0
      %p58 = por %p56, %p57
      %p59 = scmp.ne.s32.totalorder %s48, %s51
      %p60 = scmp.eq.s32.totalorder %s22, 7
      %p61 = por %p59, %p60
      %p62 = scmp.ne.s32.totalorder %s51, %s52
      %p63 = scmp.eq.s32.totalorder %s22, 0
      %p64 = por %p62, %p63
      %p65 = scmp.ne.s32.totalorder %s51, %s52
      %p66 = scmp.eq.s32.totalorder %s23, 7
      %p67 = por %p65, %p66
      %p69 = scmp.ne.s32.totalorder %s52, %s68
      %p70 = scmp.eq.s32.totalorder %s23, 0
      %p71 = por %p69, %p70
      %s72 = ssub.s32 %s24, %s43
      %s73 = ssub.s32 %s26, %s35
      %s74 = sor.u32 %s72, %s73
      %p75 = scmp.eq.s32.totalorder %s74, 0
      %s77 = sadd.s32 %s76, 1
      %s78 = scalar_select %p75, %s76, %s77
      %p81 = pneg %p75
      %p82 = scmp.eq.s32.totalorder %s17, 7
      %p83 = por %p81, %p82
      %p84 = scmp.ne.s32.totalorder %s76, %s79
      %p85 = scmp.eq.s32.totalorder %s17, 0
      %p86 = por %p84, %p85
      %p87 = scmp.ne.s32.totalorder %s76, %s79
      %p88 = scmp.eq.s32.totalorder %s22, 7
      %p89 = por %p87, %p88
      %p90 = scmp.ne.s32.totalorder %s79, %s80
      %p91 = scmp.eq.s32.totalorder %s22, 0
      %p92 = por %p90, %p91
      %p93 = scmp.ne.s32.totalorder %s79, %s80
      %p94 = scmp.eq.s32.totalorder %s23, 7
      %p95 = por %p93, %p94
      %p97 = scmp.ne.s32.totalorder %s80, %s96
      %p98 = scmp.eq.s32.totalorder %s23, 0
      %p99 = por %p97, %p98
      %s100 = ssub.s32 %s24, %s43
      %s101 = ssub.s32 %s26, %s35
      %s102 = sor.u32 %s100, %s101
      %p103 = scmp.eq.s32.totalorder %s102, 0
      %s105 = sadd.s32 %s104, 1
      %s106 = scalar_select %p103, %s104, %s105
      %p109 = pneg %p103
      %p110 = scmp.eq.s32.totalorder %s17, 7
      %p111 = por %p109, %p110
      %p112 = scmp.ne.s32.totalorder %s104, %s107
      %p113 = scmp.eq.s32.totalorder %s17, 0
      %p114 = por %p112, %p113
      %p115 = scmp.ne.s32.totalorder %s104, %s107
      %p116 = scmp.eq.s32.totalorder %s22, 7
      %p117 = por %p115, %p116
      %p118 = scmp.ne.s32.totalorder %s107, %s108
      %p119 = scmp.eq.s32.totalorder %s22, 0
      %p120 = por %p118, %p119
      %p121 = scmp.ne.s32.totalorder %s107, %s108
      %p122 = scmp.eq.s32.totalorder %s23, 7
      %p123 = por %p121, %p122
      %p125 = scmp.ne.s32.totalorder %s108, %s124
      %p126 = scmp.eq.s32.totalorder %s23, 0
      %p127 = por %p125, %p126
      %s129 = sadd.s32 %s128, 1
      %p132 = scmp.eq.s32.totalorder %s17, 7
      %p133 = scmp.ne.s32.totalorder %s128, %s130
      %p134 = scmp.eq.s32.totalorder %s17, 0
      %p135 = por %p133, %p134
      %p136 = scmp.ne.s32.totalorder %s128, %s130
      %p137 = scmp.eq.s32.totalorder %s22, 7
      %p138 = por %p136, %p137
      %p139 = scmp.ne.s32.totalorder %s130, %s131
      %p140 = scmp.eq.s32.totalorder %s22, 0
      %p141 = por %p139, %p140
      %p142 = scmp.ne.s32.totalorder %s130, %s131
      %p143 = scmp.eq.s32.totalorder %s23, 7
      %p144 = por %p142, %p143
      %p146 = scmp.ne.s32.totalorder %s131, %s145
      %p147 = scmp.eq.s32.totalorder %s23, 0
      %p148 = por %p146, %p147
      %s150 = sadd.s32 %s149, 1
      %p153 = scmp.eq.s32.totalorder %s17, 7
      %p154 = scmp.ne.s32.totalorder %s149, %s151
      %p155 = scmp.eq.s32.totalorder %s17, 0
      %p156 = por %p154, %p155
      %p157 = scmp.ne.s32.totalorder %s149, %s151
      %p158 = scmp.eq.s32.totalorder %s22, 7
      %p159 = por %p157, %p158
      %p160 = scmp.ne.s32.totalorder %s151, %s152
      %p161 = scmp.eq.s32.totalorder %s22, 0
      %p162 = por %p160, %p161
      %p163 = scmp.ne.s32.totalorder %s151, %s152
      %p164 = scmp.eq.s32.totalorder %s23, 7
      %p165 = por %p163, %p164
      %p167 = scmp.ne.s32.totalorder %s152, %s166
      %p168 = scmp.eq.s32.totalorder %s23, 0
      %p169 = por %p167, %p168
      %s171 = sadd.s32 %s170, 1
      %p174 = scmp.eq.s32.totalorder %s17, 7
      %p175 = scmp.ne.s32.totalorder %s170, %s172
      %p176 = scmp.eq.s32.totalorder %s17, 0
      %p177 = por %p175, %p176
      %p178 = scmp.ne.s32.totalorder %s170, %s172
      %p179 = scmp.eq.s32.totalorder %s22, 7
      %p180 = por %p178, %p179
      %p181 = scmp.ne.s32.totalorder %s172, %s173
      %p182 = scmp.eq.s32.totalorder %s22, 0
      %p183 = por %p181, %p182
      %p184 = scmp.ne.s32.totalorder %s172, %s173
      %p185 = scmp.eq.s32.totalorder %s23, 7
      %p186 = por %p184, %p185
      %p188 = scmp.ne.s32.totalorder %s173, %s187
      %p189 = scmp.eq.s32.totalorder %s23, 0
      %p190 = por %p188, %p189
      %s191 = ssub.s32 %s24, %s43
      %s192 = ssub.s32 %s25, %s39
      %s193 = sor.u32 %s191, %s192
      %p194 = scmp.eq.s32.totalorder %s193, 0
      %s196 = sadd.s32 %s195, 1
      %s197 = scalar_select %p194, %s195, %s196
      %p200 = pneg %p194
      %p201 = scmp.eq.s32.totalorder %s17, 7
      %p202 = por %p200, %p201
      %p203 = scmp.ne.s32.totalorder %s195, %s198
      %p204 = scmp.eq.s32.totalorder %s17, 0
      %p205 = por %p203, %p204
      %p206 = scmp.ne.s32.totalorder %s195, %s198
      %p207 = scmp.eq.s32.totalorder %s22, 7
      %p208 = por %p206, %p207
      %p209 = scmp.ne.s32.totalorder %s198, %s199
      %p210 = scmp.eq.s32.totalorder %s22, 0
      %p211 = por %p209, %p210
      %p212 = scmp.ne.s32.totalorder %s198, %s199
      %p213 = scmp.eq.s32.totalorder %s23, 7
      %p214 = por %p212, %p213
      %p216 = scmp.ne.s32.totalorder %s199, %s215
      %p217 = scmp.eq.s32.totalorder %s23, 0
      %p218 = por %p216, %p217
      %p219 = scmp.le.s32.totalorder 1, %s17
      %p220 = scmp.lt.s32.totalorder %s17, 9
      %p221 = pnand %p219, %p220
      %p222 = pneg %p221
      // Predicated region
      $region9: #{tpu_custom_call.1} parent=5 // pred_check
        _
      $region10: #{tpu_custom_call.1} parent=5 // pred_check_branch
        %224 = sbr.rel (%p221) target = $region12
      $region11: #{tpu_custom_call.1} parent=5 // pred_region
        %s225 = ssub.s32 %s17, 1
        // Predicated region
        $region13: #{tpu_custom_call.1} parent=11 // pred_check
          %p226 = pneg %p141
        $region14: #{tpu_custom_call.1} parent=11 // pred_check_branch
          %228 = sbr.rel (%p226) target = $region16
        $region15: #{tpu_custom_call.1} parent=11 // pred_region
          _
        $region16: #{tpu_custom_call.1} parent=11 // pred_fallthru
          _
        // Predicated region
        $region17: #{tpu_custom_call.1} parent=11 // pred_check
          %p229 = pneg %p162
        $region18: #{tpu_custom_call.1} parent=11 // pred_check_branch
          %231 = sbr.rel (%p229) target = $region20
        $region19: #{tpu_custom_call.1} parent=11 // pred_region
          %s233 = ssub.s32 64, 64
          %234 = vsyncadd [#allocation4], %s233
          %s236 = sshll.u32 %s4, 4
          %s237 = int_to_ptr.vmem [resolvable:$true] %s236
          %239 = dma.vmem_to_smem %s237, 64, [#allocation2], [#allocation4]
        $region20: #{tpu_custom_call.1} parent=11 // pred_fallthru
          _
        // Predicated region
        $region21: #{tpu_custom_call.1} parent=11 // pred_check
          %p240 = pneg %p183
        $region22: #{tpu_custom_call.1} parent=11 // pred_check_branch
          %242 = sbr.rel (%p240) target = $region24
        $region23: #{tpu_custom_call.1} parent=11 // pred_region
          %s244 = ssub.s32 16, 16
          %245 = vsyncadd [#allocation6], %s244
          %s247 = sshll.u32 %s5, 4
          %s248 = int_to_ptr.vmem [resolvable:$true] %s247
          %250 = dma.vmem_to_smem %s248, 16, [#allocation5], [#allocation6]
        $region24: #{tpu_custom_call.1} parent=11 // pred_fallthru
          _
      $region12: #{tpu_custom_call.1} parent=5 // pred_fallthru
        _
      %p251 = scmp.lt.s32.totalorder %s17, 8
      // Predicated region
      $region25: #{tpu_custom_call.1} parent=5 // pred_check
        %p252 = pneg %p251
      $region26: #{tpu_custom_call.1} parent=5 // pred_check_branch
        %254 = sbr.rel (%p252) target = $region28
      $region27: #{tpu_custom_call.1} parent=5 // pred_region
        // Predicated region
        $region29: #{tpu_custom_call.1} parent=27 // pred_check
          %p255 = pneg %p58
        $region30: #{tpu_custom_call.1} parent=27 // pred_check_branch
          %257 = sbr.rel (%p255) target = $region32
        $region31: #{tpu_custom_call.1} parent=27 // pred_region
          %p258 = scmp.lt.s32.totalorder %s24, 1
          %s259 = scalar_select %p258, %s24, 1
          %p260 = scmp.lt.s32.totalorder %s25, 1
          %s261 = scalar_select %p260, %s25, 1
          %s262 = smul.addr %s259, 2
          %s263 = sadd.s32 %s261, %s262
          %s264 = smul.addr %s263, 4
          %s265 = scalar_lea.vmem %s0, %s264
        $region32: #{tpu_custom_call.1} parent=27 // pred_fallthru
          _
        // Predicated region
        $region33: #{tpu_custom_call.1} parent=27 // pred_check
          %p266 = pneg %p86
        $region34: #{tpu_custom_call.1} parent=27 // pred_check_branch
          %268 = sbr.rel (%p266) target = $region36
        $region35: #{tpu_custom_call.1} parent=27 // pred_region
          %s269 = smul.u32 16, %s26
          %p270 = scmp.lt.s32.totalorder %s24, 1
          %s271 = scalar_select %p270, %s24, 1
          %p272 = scmp.lt.s32.totalorder %s269, 31
          %s273 = scalar_select %p272, %s269, 31
          %s274 = smul.addr %s271, 32
          %s275 = sadd.s32 %s273, %s274
          %s276 = smul.addr %s275, 8
          %s277 = scalar_lea.vmem %s1, %s276
          %s278 = smul.u32 16, %s26
        $region36: #{tpu_custom_call.1} parent=27 // pred_fallthru
          _
        // Predicated region
        $region37: #{tpu_custom_call.1} parent=27 // pred_check
          %p279 = pneg %p114
        $region38: #{tpu_custom_call.1} parent=27 // pred_check_branch
          %281 = sbr.rel (%p279) target = $region40
        $region39: #{tpu_custom_call.1} parent=27 // pred_region
          %p282 = scmp.lt.s32.totalorder %s24, 1
          %s283 = scalar_select %p282, %s24, 1
          %p284 = scmp.lt.s32.totalorder %s26, 1
          %s285 = scalar_select %p284, %s26, 1
          %s286 = smul.addr %s283, 2
          %s287 = sadd.s32 %s285, %s286
          %s288 = smul.addr %s287, 4
          %s289 = scalar_lea.vmem %s2, %s288
        $region40: #{tpu_custom_call.1} parent=27 // pred_fallthru
          _
      $region28: #{tpu_custom_call.1} parent=5 // pred_fallthru
        _
      %p290 = scmp.le.s32.totalorder 1, %s17
      %p291 = scmp.lt.s32.totalorder %s17, 9
      %p292 = pnand %p290, %p291
      %p293 = pneg %p292
      // Predicated region
      $region41: #{tpu_custom_call.1} parent=5 // pred_check
        _
      $region42: #{tpu_custom_call.1} parent=5 // pred_check_branch
        %295 = sbr.rel (%p292) target = $region44
      $region43: #{tpu_custom_call.1} parent=5 // pred_region
        %s296 = ssub.s32 %s17, 1
        // Predicated region
        $region45: #{tpu_custom_call.1} parent=43 // pred_check
          %p297 = pneg %p162
        $region46: #{tpu_custom_call.1} parent=43 // pred_check_branch
          %299 = sbr.rel (%p297) target = $region48
        $region47: #{tpu_custom_call.1} parent=43 // pred_region
          %300 = dma.done [#allocation4], 64
        $region48: #{tpu_custom_call.1} parent=43 // pred_fallthru
          _
        // Predicated region
        $region49: #{tpu_custom_call.1} parent=43 // pred_check
          %p301 = pneg %p183
        $region50: #{tpu_custom_call.1} parent=43 // pred_check_branch
          %303 = sbr.rel (%p301) target = $region52
        $region51: #{tpu_custom_call.1} parent=43 // pred_region
          %304 = dma.done [#allocation6], 16
        $region52: #{tpu_custom_call.1} parent=43 // pred_fallthru
          _
        %305 = sfence
        %p306 = scmp.lt.s32.totalorder %s27, 1
        %s307 = scalar_select %p306, %s27, 1
        %p308 = scmp.lt.s32.totalorder %s28, 1
        %s309 = scalar_select %p308, %s28, 1
        %s310 = smul.addr %s307, 2
        %s311 = sadd.s32 %s309, %s310
        %s312 = smul.addr %s311, 4
        %s313 = scalar_lea.vmem %s0, %s312
        %p314 = pneg %p64
        %p315 = pneg %p61
        %s316 = smul.u32 16, %s29
        %p317 = scmp.lt.s32.totalorder %s27, 1
        %s318 = scalar_select %p317, %s27, 1
        %p319 = scmp.lt.s32.totalorder %s316, 31
        %s320 = scalar_select %p319, %s316, 31
        %s321 = smul.addr %s318, 32
        %s322 = sadd.s32 %s320, %s321
        %s323 = smul.addr %s322, 8
        %s324 = scalar_lea.vmem %s1, %s323
        %p325 = pneg %p92
        %p326 = pneg %p89
        %p327 = scmp.lt.s32.totalorder %s27, 1
        %s328 = scalar_select %p327, %s27, 1
        %p329 = scmp.lt.s32.totalorder %s29, 1
        %s330 = scalar_select %p329, %s29, 1
        %s331 = smul.addr %s328, 2
        %s332 = sadd.s32 %s330, %s331
        %s333 = smul.addr %s332, 4
        %s334 = scalar_lea.vmem %s2, %s333
        %p335 = pneg %p120
        %p336 = pneg %p117
        %p337 = pneg %p141
        %p338 = pneg %p138
        %p339 = pneg %p162
        %p340 = pneg %p159
        %p341 = pneg %p183
        %p342 = pneg %p180
        %p343 = pneg %p211
        %p344 = pneg %p208
        %s345 = sand.u32 %s198, 1
        %s346 = scalar_lea.sflag [#allocation3], %s345
        %s347 = sand.u32 %s198, 1
        %s348 = smul.addr %s347, 8
        %s349 = scalar_lea.vmem [#allocation7], %s348
        %p350 = scmp.lt.s32.totalorder %s27, 1
        %s351 = scalar_select %p350, %s27, 1
        %p352 = scmp.lt.s32.totalorder %s28, 1
        %s353 = scalar_select %p352, %s28, 1
        %s354 = smul.addr %s351, 2
        %s355 = sadd.s32 %s353, %s354
        %s356 = smul.addr %s355, 4
        %s357 = scalar_lea.vmem %s0, %s356
        %s358 = smul.u32 16, %s29
        %p359 = scmp.lt.s32.totalorder %s27, 1
        %s360 = scalar_select %p359, %s27, 1
        %p361 = scmp.lt.s32.totalorder %s358, 31
        %s362 = scalar_select %p361, %s358, 31
        %s363 = smul.addr %s360, 32
        %s364 = sadd.s32 %s362, %s363
        %s365 = smul.addr %s364, 8
        %s366 = scalar_lea.vmem %s1, %s365
        %s367 = smul.u32 16, %s29
        %p368 = scmp.lt.s32.totalorder %s27, 1
        %s369 = scalar_select %p368, %s27, 1
        %p370 = scmp.lt.s32.totalorder %s29, 1
        %s371 = scalar_select %p370, %s29, 1
        %s372 = smul.addr %s369, 2
        %s373 = sadd.s32 %s371, %s372
        %s374 = smul.addr %s373, 4
        %s375 = scalar_lea.vmem %s2, %s374
        %p376 = scmp.eq.s32.totalorder %s29, 0
        // Predicated region
        $region53: #{tpu_custom_call.1} parent=43 // pred_check
          %p377 = pneg %p376
        $region54: #{tpu_custom_call.1} parent=43 // pred_check_branch
          %379 = sbr.rel (%p377) target = $region56
        $region55: #{tpu_custom_call.1} parent=43 // pred_region
          %380 = vst [vmem:[%s349] sm:$0xff] 0.0
        $region56: #{tpu_custom_call.1} parent=43 // pred_fallthru
          _
        %v381 = vld [vmem:[%s357] sm:$0x7]
        %v382 = vld [vmem:[%s366] sm:$0xff]
        %v383 = vld [vmem:[%s366 + $0x8] sm:$0xff]
        %v384 = vld [vmem:[%s366 + $0x10] sm:$0xff]
        %v385 = vld [vmem:[%s366 + $0x18] sm:$0xff]
        %v386 = vld [vmem:[%s366 + $0x20] sm:$0xff]
        %v387 = vld [vmem:[%s366 + $0x28] sm:$0xff]
        %v388 = vld [vmem:[%s366 + $0x30] sm:$0xff]
        %v389 = vld [vmem:[%s366 + $0x38] sm:$0xff]
        %v390 = vld [vmem:[%s366 + $0x40] sm:$0xff]
        %v391 = vld [vmem:[%s366 + $0x48] sm:$0xff]
        %v392 = vld [vmem:[%s366 + $0x50] sm:$0xff]
        %v393 = vld [vmem:[%s366 + $0x58] sm:$0xff]
        %v394 = vld [vmem:[%s366 + $0x60] sm:$0xff]
        %v395 = vld [vmem:[%s366 + $0x68] sm:$0xff]
        %v396 = vld [vmem:[%s366 + $0x70] sm:$0xff]
        %v397 = vld [vmem:[%s366 + $0x78] sm:$0xff]
        %v398 = vld [vmem:[%s375] sm:$0xf]
        %400 = vset.pattern.permute.xlu0 0
        %401 = vperm.xlu0 %400, %v382
        %v402 = vpop.permute.xlu0 %401
        %405 = vset.pattern.permute.xlu0 0
        %406 = vperm.xlu0 %405, %v383
        %v407 = vpop.permute.xlu0 %406
        %410 = vset.pattern.permute.xlu0 0
        %411 = vperm.xlu0 %410, %v384
        %v412 = vpop.permute.xlu0 %411
        %415 = vset.pattern.permute.xlu0 0
        %416 = vperm.xlu0 %415, %v385
        %v417 = vpop.permute.xlu0 %416
        %420 = vset.pattern.permute.xlu0 0
        %421 = vperm.xlu0 %420, %v386
        %v422 = vpop.permute.xlu0 %421
        %425 = vset.pattern.permute.xlu0 0
        %426 = vperm.xlu0 %425, %v387
        %v427 = vpop.permute.xlu0 %426
        %430 = vset.pattern.permute.xlu0 0
        %431 = vperm.xlu0 %430, %v388
        %v432 = vpop.permute.xlu0 %431
        %435 = vset.pattern.permute.xlu0 0
        %436 = vperm.xlu0 %435, %v389
        %v437 = vpop.permute.xlu0 %436
        %440 = vset.pattern.permute.xlu0 0
        %441 = vperm.xlu0 %440, %v390
        %v442 = vpop.permute.xlu0 %441
        %445 = vset.pattern.permute.xlu0 0
        %446 = vperm.xlu0 %445, %v391
        %v447 = vpop.permute.xlu0 %446
        %450 = vset.pattern.permute.xlu0 0
        %451 = vperm.xlu0 %450, %v392
        %v452 = vpop.permute.xlu0 %451
        %455 = vset.pattern.permute.xlu0 0
        %456 = vperm.xlu0 %455, %v393
        %v457 = vpop.permute.xlu0 %456
        %460 = vset.pattern.permute.xlu0 0
        %461 = vperm.xlu0 %460, %v394
        %v462 = vpop.permute.xlu0 %461
        %465 = vset.pattern.permute.xlu0 0
        %466 = vperm.xlu0 %465, %v395
        %v467 = vpop.permute.xlu0 %466
        %470 = vset.pattern.permute.xlu0 0
        %471 = vperm.xlu0 %470, %v396
        %v472 = vpop.permute.xlu0 %471
        %475 = vset.pattern.permute.xlu0 0
        %476 = vperm.xlu0 %475, %v397
        %v477 = vpop.permute.xlu0 %476
        %v479 = vlaneseq
        %v480 = vshrl.u32 %v479, 7
        %v481 = vsub.s32 0, %v480
        %v482 = vrot.slane %v381, %v481
        %v483 = vsub.f32 %v402, %v482
        %v484 = vsub.f32 %v407, %v482
        %v485 = vsub.f32 %v412, %v482
        %v486 = vsub.f32 %v417, %v482
        %v487 = vsub.f32 %v422, %v482
        %v488 = vsub.f32 %v427, %v482
        %v489 = vsub.f32 %v432, %v482
        %v490 = vsub.f32 %v437, %v482
        %v491 = vsub.f32 %v442, %v482
        %v492 = vsub.f32 %v447, %v482
        %v493 = vsub.f32 %v452, %v482
        %v494 = vsub.f32 %v457, %v482
        %v495 = vsub.f32 %v462, %v482
        %v496 = vsub.f32 %v467, %v482
        %v497 = vsub.f32 %v472, %v482
        %v498 = vsub.f32 %v477, %v482
        %499 = vset.pattern.permute.xlu0 1
        %500 = vperm.xlu0 %499, %v382
        %v501 = vpop.permute.xlu0 %500
        %503 = vset.pattern.permute.xlu0 1
        %504 = vperm.xlu0 %503, %v383
        %v505 = vpop.permute.xlu0 %504
        %507 = vset.pattern.permute.xlu0 1
        %508 = vperm.xlu0 %507, %v384
        %v509 = vpop.permute.xlu0 %508
        %511 = vset.pattern.permute.xlu0 1
        %512 = vperm.xlu0 %511, %v385
        %v513 = vpop.permute.xlu0 %512
        %515 = vset.pattern.permute.xlu0 1
        %516 = vperm.xlu0 %515, %v386
        %v517 = vpop.permute.xlu0 %516
        %519 = vset.pattern.permute.xlu0 1
        %520 = vperm.xlu0 %519, %v387
        %v521 = vpop.permute.xlu0 %520
        %523 = vset.pattern.permute.xlu0 1
        %524 = vperm.xlu0 %523, %v388
        %v525 = vpop.permute.xlu0 %524
        %527 = vset.pattern.permute.xlu0 1
        %528 = vperm.xlu0 %527, %v389
        %v529 = vpop.permute.xlu0 %528
        %531 = vset.pattern.permute.xlu0 1
        %532 = vperm.xlu0 %531, %v390
        %v533 = vpop.permute.xlu0 %532
        %535 = vset.pattern.permute.xlu0 1
        %536 = vperm.xlu0 %535, %v391
        %v537 = vpop.permute.xlu0 %536
        %539 = vset.pattern.permute.xlu0 1
        %540 = vperm.xlu0 %539, %v392
        %v541 = vpop.permute.xlu0 %540
        %543 = vset.pattern.permute.xlu0 1
        %544 = vperm.xlu0 %543, %v393
        %v545 = vpop.permute.xlu0 %544
        %547 = vset.pattern.permute.xlu0 1
        %548 = vperm.xlu0 %547, %v394
        %v549 = vpop.permute.xlu0 %548
        %551 = vset.pattern.permute.xlu0 1
        %552 = vperm.xlu0 %551, %v395
        %v553 = vpop.permute.xlu0 %552
        %555 = vset.pattern.permute.xlu0 1
        %556 = vperm.xlu0 %555, %v396
        %v557 = vpop.permute.xlu0 %556
        %559 = vset.pattern.permute.xlu0 1
        %560 = vperm.xlu0 %559, %v397
        %v561 = vpop.permute.xlu0 %560
        %v563 = vlaneseq
        %v564 = vshrl.u32 %v563, 7
        %v565 = vsub.s32 1, %v564
        %v566 = vrot.slane %v381, %v565
        %v567 = vsub.f32 %v501, %v566
        %v568 = vsub.f32 %v505, %v566
        %v569 = vsub.f32 %v509, %v566
        %v570 = vsub.f32 %v513, %v566
        %v571 = vsub.f32 %v517, %v566
        %v572 = vsub.f32 %v521, %v566
        %v573 = vsub.f32 %v525, %v566
        %v574 = vsub.f32 %v529, %v566
        %v575 = vsub.f32 %v533, %v566
        %v576 = vsub.f32 %v537, %v566
        %v577 = vsub.f32 %v541, %v566
        %v578 = vsub.f32 %v545, %v566
        %v579 = vsub.f32 %v549, %v566
        %v580 = vsub.f32 %v553, %v566
        %v581 = vsub.f32 %v557, %v566
        %v582 = vsub.f32 %v561, %v566
        %583 = vset.pattern.permute.xlu0 2
        %584 = vperm.xlu0 %583, %v382
        %v585 = vpop.permute.xlu0 %584
        %587 = vset.pattern.permute.xlu0 2
        %588 = vperm.xlu0 %587, %v383
        %v589 = vpop.permute.xlu0 %588
        %591 = vset.pattern.permute.xlu0 2
        %592 = vperm.xlu0 %591, %v384
        %v593 = vpop.permute.xlu0 %592
        %595 = vset.pattern.permute.xlu0 2
        %596 = vperm.xlu0 %595, %v385
        %v597 = vpop.permute.xlu0 %596
        %599 = vset.pattern.permute.xlu0 2
        %600 = vperm.xlu0 %599, %v386
        %v601 = vpop.permute.xlu0 %600
        %603 = vset.pattern.permute.xlu0 2
        %604 = vperm.xlu0 %603, %v387
        %v605 = vpop.permute.xlu0 %604
        %607 = vset.pattern.permute.xlu0 2
        %608 = vperm.xlu0 %607, %v388
        %v609 = vpop.permute.xlu0 %608
        %611 = vset.pattern.permute.xlu0 2
        %612 = vperm.xlu0 %611, %v389
        %v613 = vpop.permute.xlu0 %612
        %615 = vset.pattern.permute.xlu0 2
        %616 = vperm.xlu0 %615, %v390
        %v617 = vpop.permute.xlu0 %616
        %619 = vset.pattern.permute.xlu0 2
        %620 = vperm.xlu0 %619, %v391
        %v621 = vpop.permute.xlu0 %620
        %623 = vset.pattern.permute.xlu0 2
        %624 = vperm.xlu0 %623, %v392
        %v625 = vpop.permute.xlu0 %624
        %627 = vset.pattern.permute.xlu0 2
        %628 = vperm.xlu0 %627, %v393
        %v629 = vpop.permute.xlu0 %628
        %631 = vset.pattern.permute.xlu0 2
        %632 = vperm.xlu0 %631, %v394
        %v633 = vpop.permute.xlu0 %632
        %635 = vset.pattern.permute.xlu0 2
        %636 = vperm.xlu0 %635, %v395
        %v637 = vpop.permute.xlu0 %636
        %639 = vset.pattern.permute.xlu0 2
        %640 = vperm.xlu0 %639, %v396
        %v641 = vpop.permute.xlu0 %640
        %643 = vset.pattern.permute.xlu0 2
        %644 = vperm.xlu0 %643, %v397
        %v645 = vpop.permute.xlu0 %644
        %v647 = vlaneseq
        %v648 = vshrl.u32 %v647, 7
        %v649 = vsub.s32 2, %v648
        %v650 = vrot.slane %v381, %v649
        %v651 = vsub.f32 %v585, %v650
        %v652 = vsub.f32 %v589, %v650
        %v653 = vsub.f32 %v593, %v650
        %v654 = vsub.f32 %v597, %v650
        %v655 = vsub.f32 %v601, %v650
        %v656 = vsub.f32 %v605, %v650
        %v657 = vsub.f32 %v609, %v650
        %v658 = vsub.f32 %v613, %v650
        %v659 = vsub.f32 %v617, %v650
        %v660 = vsub.f32 %v621, %v650
        %v661 = vsub.f32 %v625, %v650
        %v662 = vsub.f32 %v629, %v650
        %v663 = vsub.f32 %v633, %v650
        %v664 = vsub.f32 %v637, %v650
        %v665 = vsub.f32 %v641, %v650
        %v666 = vsub.f32 %v645, %v650
        %v667 = vmul.f32 %v483, %v483
        %v668 = vmul.f32 %v484, %v484
        %v669 = vmul.f32 %v485, %v485
        %v670 = vmul.f32 %v486, %v486
        %v671 = vmul.f32 %v487, %v487
        %v672 = vmul.f32 %v488, %v488
        %v673 = vmul.f32 %v489, %v489
        %v674 = vmul.f32 %v490, %v490
        %v675 = vmul.f32 %v491, %v491
        %v676 = vmul.f32 %v492, %v492
        %v677 = vmul.f32 %v493, %v493
        %v678 = vmul.f32 %v494, %v494
        %v679 = vmul.f32 %v495, %v495
        %v680 = vmul.f32 %v496, %v496
        %v681 = vmul.f32 %v497, %v497
        %v682 = vmul.f32 %v498, %v498
        %v683 = vmul.f32 %v567, %v567
        %v684 = vmul.f32 %v568, %v568
        %v685 = vmul.f32 %v569, %v569
        %v686 = vmul.f32 %v570, %v570
        %v687 = vmul.f32 %v571, %v571
        %v688 = vmul.f32 %v572, %v572
        %v689 = vmul.f32 %v573, %v573
        %v690 = vmul.f32 %v574, %v574
        %v691 = vmul.f32 %v575, %v575
        %v692 = vmul.f32 %v576, %v576
        %v693 = vmul.f32 %v577, %v577
        %v694 = vmul.f32 %v578, %v578
        %v695 = vmul.f32 %v579, %v579
        %v696 = vmul.f32 %v580, %v580
        %v697 = vmul.f32 %v581, %v581
        %v698 = vmul.f32 %v582, %v582
        %v699 = vadd.f32 %v667, %v683
        %v700 = vadd.f32 %v668, %v684
        %v701 = vadd.f32 %v669, %v685
        %v702 = vadd.f32 %v670, %v686
        %v703 = vadd.f32 %v671, %v687
        %v704 = vadd.f32 %v672, %v688
        %v705 = vadd.f32 %v673, %v689
        %v706 = vadd.f32 %v674, %v690
        %v707 = vadd.f32 %v675, %v691
        %v708 = vadd.f32 %v676, %v692
        %v709 = vadd.f32 %v677, %v693
        %v710 = vadd.f32 %v678, %v694
        %v711 = vadd.f32 %v679, %v695
        %v712 = vadd.f32 %v680, %v696
        %v713 = vadd.f32 %v681, %v697
        %v714 = vadd.f32 %v682, %v698
        %v715 = vmul.f32 %v651, %v651
        %v716 = vmul.f32 %v652, %v652
        %v717 = vmul.f32 %v653, %v653
        %v718 = vmul.f32 %v654, %v654
        %v719 = vmul.f32 %v655, %v655
        %v720 = vmul.f32 %v656, %v656
        %v721 = vmul.f32 %v657, %v657
        %v722 = vmul.f32 %v658, %v658
        %v723 = vmul.f32 %v659, %v659
        %v724 = vmul.f32 %v660, %v660
        %v725 = vmul.f32 %v661, %v661
        %v726 = vmul.f32 %v662, %v662
        %v727 = vmul.f32 %v663, %v663
        %v728 = vmul.f32 %v664, %v664
        %v729 = vmul.f32 %v665, %v665
        %v730 = vmul.f32 %v666, %v666
        %v731 = vadd.f32 %v699, %v715
        %v732 = vadd.f32 %v700, %v716
        %v733 = vadd.f32 %v701, %v717
        %v734 = vadd.f32 %v702, %v718
        %v735 = vadd.f32 %v703, %v719
        %v736 = vadd.f32 %v704, %v720
        %v737 = vadd.f32 %v705, %v721
        %v738 = vadd.f32 %v706, %v722
        %v739 = vadd.f32 %v707, %v723
        %v740 = vadd.f32 %v708, %v724
        %v741 = vadd.f32 %v709, %v725
        %v742 = vadd.f32 %v710, %v726
        %v743 = vadd.f32 %v711, %v727
        %v744 = vadd.f32 %v712, %v728
        %v745 = vadd.f32 %v713, %v729
        %v746 = vadd.f32 %v714, %v730
        %vm747 = vcmp.lt.f32.partialorder %v731, 0.64
        %vm748 = vcmp.lt.f32.partialorder %v732, 0.64
        %vm749 = vcmp.lt.f32.partialorder %v733, 0.64
        %vm750 = vcmp.lt.f32.partialorder %v734, 0.64
        %vm751 = vcmp.lt.f32.partialorder %v735, 0.64
        %vm752 = vcmp.lt.f32.partialorder %v736, 0.64
        %vm753 = vcmp.lt.f32.partialorder %v737, 0.64
        %vm754 = vcmp.lt.f32.partialorder %v738, 0.64
        %vm755 = vcmp.lt.f32.partialorder %v739, 0.64
        %vm756 = vcmp.lt.f32.partialorder %v740, 0.64
        %vm757 = vcmp.lt.f32.partialorder %v741, 0.64
        %vm758 = vcmp.lt.f32.partialorder %v742, 0.64
        %vm759 = vcmp.lt.f32.partialorder %v743, 0.64
        %vm760 = vcmp.lt.f32.partialorder %v744, 0.64
        %vm761 = vcmp.lt.f32.partialorder %v745, 0.64
        %vm762 = vcmp.lt.f32.partialorder %v746, 0.64
        %v763 = vsel %vm747, 1, 0
        %v764 = vsel %vm748, 1, 0
        %v765 = vsel %vm749, 1, 0
        %v766 = vsel %vm750, 1, 0
        %v767 = vsel %vm751, 1, 0
        %v768 = vsel %vm752, 1, 0
        %v769 = vsel %vm753, 1, 0
        %v770 = vsel %vm754, 1, 0
        %v771 = vsel %vm755, 1, 0
        %v772 = vsel %vm756, 1, 0
        %v773 = vsel %vm757, 1, 0
        %v774 = vsel %vm758, 1, 0
        %v775 = vsel %vm759, 1, 0
        %v776 = vsel %vm760, 1, 0
        %v777 = vsel %vm761, 1, 0
        %v778 = vsel %vm762, 1, 0
        %v779 = vcvt.s32.f32 %v763
        %v780 = vcvt.s32.f32 %v764
        %v781 = vcvt.s32.f32 %v765
        %v782 = vcvt.s32.f32 %v766
        %v783 = vcvt.s32.f32 %v767
        %v784 = vcvt.s32.f32 %v768
        %v785 = vcvt.s32.f32 %v769
        %v786 = vcvt.s32.f32 %v770
        %v787 = vcvt.s32.f32 %v771
        %v788 = vcvt.s32.f32 %v772
        %v789 = vcvt.s32.f32 %v773
        %v790 = vcvt.s32.f32 %v774
        %v791 = vcvt.s32.f32 %v775
        %v792 = vcvt.s32.f32 %v776
        %v793 = vcvt.s32.f32 %v777
        %v794 = vcvt.s32.f32 %v778
        %v795 = vld [vmem:[%s3] sm:$0xff]
        %v796 = vld [vmem:[%s3 + $0x8] sm:$0xff]
        %v797 = vld [vmem:[%s3 + $0x10] sm:$0xff]
        %v798 = vld [vmem:[%s3 + $0x18] sm:$0xff]
        %v799 = vld [vmem:[%s3 + $0x20] sm:$0xff]
        %v800 = vld [vmem:[%s3 + $0x28] sm:$0xff]
        %v801 = vld [vmem:[%s3 + $0x30] sm:$0xff]
        %v802 = vld [vmem:[%s3 + $0x38] sm:$0xff]
        %v803 = vld [vmem:[%s3 + $0x40] sm:$0xff]
        %v804 = vld [vmem:[%s3 + $0x48] sm:$0xff]
        %v805 = vld [vmem:[%s3 + $0x50] sm:$0xff]
        %v806 = vld [vmem:[%s3 + $0x58] sm:$0xff]
        %v807 = vld [vmem:[%s3 + $0x60] sm:$0xff]
        %v808 = vld [vmem:[%s3 + $0x68] sm:$0xff]
        %v809 = vld [vmem:[%s3 + $0x70] sm:$0xff]
        %v810 = vld [vmem:[%s3 + $0x78] sm:$0xff]
        %812 = vset.pattern.permute.xlu0 0
        %813 = vperm.xlu0 %812, %v795
        %v814 = vpop.permute.xlu0 %813
        %817 = vset.pattern.permute.xlu0 0
        %818 = vperm.xlu0 %817, %v796
        %v819 = vpop.permute.xlu0 %818
        %822 = vset.pattern.permute.xlu0 0
        %823 = vperm.xlu0 %822, %v797
        %v824 = vpop.permute.xlu0 %823
        %827 = vset.pattern.permute.xlu0 0
        %828 = vperm.xlu0 %827, %v798
        %v829 = vpop.permute.xlu0 %828
        %832 = vset.pattern.permute.xlu0 0
        %833 = vperm.xlu0 %832, %v799
        %v834 = vpop.permute.xlu0 %833
        %837 = vset.pattern.permute.xlu0 0
        %838 = vperm.xlu0 %837, %v800
        %v839 = vpop.permute.xlu0 %838
        %842 = vset.pattern.permute.xlu0 0
        %843 = vperm.xlu0 %842, %v801
        %v844 = vpop.permute.xlu0 %843
        %847 = vset.pattern.permute.xlu0 0
        %848 = vperm.xlu0 %847, %v802
        %v849 = vpop.permute.xlu0 %848
        %852 = vset.pattern.permute.xlu0 0
        %853 = vperm.xlu0 %852, %v803
        %v854 = vpop.permute.xlu0 %853
        %857 = vset.pattern.permute.xlu0 0
        %858 = vperm.xlu0 %857, %v804
        %v859 = vpop.permute.xlu0 %858
        %862 = vset.pattern.permute.xlu0 0
        %863 = vperm.xlu0 %862, %v805
        %v864 = vpop.permute.xlu0 %863
        %867 = vset.pattern.permute.xlu0 0
        %868 = vperm.xlu0 %867, %v806
        %v869 = vpop.permute.xlu0 %868
        %872 = vset.pattern.permute.xlu0 0
        %873 = vperm.xlu0 %872, %v807
        %v874 = vpop.permute.xlu0 %873
        %877 = vset.pattern.permute.xlu0 0
        %878 = vperm.xlu0 %877, %v808
        %v879 = vpop.permute.xlu0 %878
        %882 = vset.pattern.permute.xlu0 0
        %883 = vperm.xlu0 %882, %v809
        %v884 = vpop.permute.xlu0 %883
        %887 = vset.pattern.permute.xlu0 0
        %888 = vperm.xlu0 %887, %v810
        %v889 = vpop.permute.xlu0 %888
        %v891 = vlaneseq
        %v892 = vshrl.u32 %v891, 7
        %v893 = vsub.s32 0, %v892
        %v894 = vrot.slane %v398, %v893
        %v895 = vmul.f32 %v814, %v894
        %v896 = vmul.f32 %v819, %v894
        %v897 = vmul.f32 %v824, %v894
        %v898 = vmul.f32 %v829, %v894
        %v899 = vmul.f32 %v834, %v894
        %v900 = vmul.f32 %v839, %v894
        %v901 = vmul.f32 %v844, %v894
        %v902 = vmul.f32 %v849, %v894
        %v903 = vmul.f32 %v854, %v894
        %v904 = vmul.f32 %v859, %v894
        %v905 = vmul.f32 %v864, %v894
        %v906 = vmul.f32 %v869, %v894
        %v907 = vmul.f32 %v874, %v894
        %v908 = vmul.f32 %v879, %v894
        %v909 = vmul.f32 %v884, %v894
        %v910 = vmul.f32 %v889, %v894
        %911 = vset.pattern.permute.xlu0 1
        %912 = vperm.xlu0 %911, %v795
        %v913 = vpop.permute.xlu0 %912
        %915 = vset.pattern.permute.xlu0 1
        %916 = vperm.xlu0 %915, %v796
        %v917 = vpop.permute.xlu0 %916
        %919 = vset.pattern.permute.xlu0 1
        %920 = vperm.xlu0 %919, %v797
        %v921 = vpop.permute.xlu0 %920
        %923 = vset.pattern.permute.xlu0 1
        %924 = vperm.xlu0 %923, %v798
        %v925 = vpop.permute.xlu0 %924
        %927 = vset.pattern.permute.xlu0 1
        %928 = vperm.xlu0 %927, %v799
        %v929 = vpop.permute.xlu0 %928
        %931 = vset.pattern.permute.xlu0 1
        %932 = vperm.xlu0 %931, %v800
        %v933 = vpop.permute.xlu0 %932
        %935 = vset.pattern.permute.xlu0 1
        %936 = vperm.xlu0 %935, %v801
        %v937 = vpop.permute.xlu0 %936
        %939 = vset.pattern.permute.xlu0 1
        %940 = vperm.xlu0 %939, %v802
        %v941 = vpop.permute.xlu0 %940
        %943 = vset.pattern.permute.xlu0 1
        %944 = vperm.xlu0 %943, %v803
        %v945 = vpop.permute.xlu0 %944
        %947 = vset.pattern.permute.xlu0 1
        %948 = vperm.xlu0 %947, %v804
        %v949 = vpop.permute.xlu0 %948
        %951 = vset.pattern.permute.xlu0 1
        %952 = vperm.xlu0 %951, %v805
        %v953 = vpop.permute.xlu0 %952
        %955 = vset.pattern.permute.xlu0 1
        %956 = vperm.xlu0 %955, %v806
        %v957 = vpop.permute.xlu0 %956
        %959 = vset.pattern.permute.xlu0 1
        %960 = vperm.xlu0 %959, %v807
        %v961 = vpop.permute.xlu0 %960
        %963 = vset.pattern.permute.xlu0 1
        %964 = vperm.xlu0 %963, %v808
        %v965 = vpop.permute.xlu0 %964
        %967 = vset.pattern.permute.xlu0 1
        %968 = vperm.xlu0 %967, %v809
        %v969 = vpop.permute.xlu0 %968
        %971 = vset.pattern.permute.xlu0 1
        %972 = vperm.xlu0 %971, %v810
        %v973 = vpop.permute.xlu0 %972
        %v975 = vlaneseq
        %v976 = vshrl.u32 %v975, 7
        %v977 = vsub.s32 1, %v976
        %v978 = vrot.slane %v398, %v977
        %v979 = vmul.f32 %v913, %v978
        %v980 = vmul.f32 %v917, %v978
        %v981 = vmul.f32 %v921, %v978
        %v982 = vmul.f32 %v925, %v978
        %v983 = vmul.f32 %v929, %v978
        %v984 = vmul.f32 %v933, %v978
        %v985 = vmul.f32 %v937, %v978
        %v986 = vmul.f32 %v941, %v978
        %v987 = vmul.f32 %v945, %v978
        %v988 = vmul.f32 %v949, %v978
        %v989 = vmul.f32 %v953, %v978
        %v990 = vmul.f32 %v957, %v978
        %v991 = vmul.f32 %v961, %v978
        %v992 = vmul.f32 %v965, %v978
        %v993 = vmul.f32 %v969, %v978
        %v994 = vmul.f32 %v973, %v978
        %v995 = vadd.f32 %v895, %v979
        %v996 = vadd.f32 %v896, %v980
        %v997 = vadd.f32 %v897, %v981
        %v998 = vadd.f32 %v898, %v982
        %v999 = vadd.f32 %v899, %v983
        %v1000 = vadd.f32 %v900, %v984
        %v1001 = vadd.f32 %v901, %v985
        %v1002 = vadd.f32 %v902, %v986
        %v1003 = vadd.f32 %v903, %v987
        %v1004 = vadd.f32 %v904, %v988
        %v1005 = vadd.f32 %v905, %v989
        %v1006 = vadd.f32 %v906, %v990
        %v1007 = vadd.f32 %v907, %v991
        %v1008 = vadd.f32 %v908, %v992
        %v1009 = vadd.f32 %v909, %v993
        %v1010 = vadd.f32 %v910, %v994
        %1011 = vset.pattern.permute.xlu0 2
        %1012 = vperm.xlu0 %1011, %v795
        %v1013 = vpop.permute.xlu0 %1012
        %1015 = vset.pattern.permute.xlu0 2
        %1016 = vperm.xlu0 %1015, %v796
        %v1017 = vpop.permute.xlu0 %1016
        %1019 = vset.pattern.permute.xlu0 2
        %1020 = vperm.xlu0 %1019, %v797
        %v1021 = vpop.permute.xlu0 %1020
        %1023 = vset.pattern.permute.xlu0 2
        %1024 = vperm.xlu0 %1023, %v798
        %v1025 = vpop.permute.xlu0 %1024
        %1027 = vset.pattern.permute.xlu0 2
        %1028 = vperm.xlu0 %1027, %v799
        %v1029 = vpop.permute.xlu0 %1028
        %1031 = vset.pattern.permute.xlu0 2
        %1032 = vperm.xlu0 %1031, %v800
        %v1033 = vpop.permute.xlu0 %1032
        %1035 = vset.pattern.permute.xlu0 2
        %1036 = vperm.xlu0 %1035, %v801
        %v1037 = vpop.permute.xlu0 %1036
        %1039 = vset.pattern.permute.xlu0 2
        %1040 = vperm.xlu0 %1039, %v802
        %v1041 = vpop.permute.xlu0 %1040
        %1043 = vset.pattern.permute.xlu0 2
        %1044 = vperm.xlu0 %1043, %v803
        %v1045 = vpop.permute.xlu0 %1044
        %1047 = vset.pattern.permute.xlu0 2
        %1048 = vperm.xlu0 %1047, %v804
        %v1049 = vpop.permute.xlu0 %1048
        %1051 = vset.pattern.permute.xlu0 2
        %1052 = vperm.xlu0 %1051, %v805
        %v1053 = vpop.permute.xlu0 %1052
        %1055 = vset.pattern.permute.xlu0 2
        %1056 = vperm.xlu0 %1055, %v806
        %v1057 = vpop.permute.xlu0 %1056
        %1059 = vset.pattern.permute.xlu0 2
        %1060 = vperm.xlu0 %1059, %v807
        %v1061 = vpop.permute.xlu0 %1060
        %1063 = vset.pattern.permute.xlu0 2
        %1064 = vperm.xlu0 %1063, %v808
        %v1065 = vpop.permute.xlu0 %1064
        %1067 = vset.pattern.permute.xlu0 2
        %1068 = vperm.xlu0 %1067, %v809
        %v1069 = vpop.permute.xlu0 %1068
        %1071 = vset.pattern.permute.xlu0 2
        %1072 = vperm.xlu0 %1071, %v810
        %v1073 = vpop.permute.xlu0 %1072
        %v1075 = vlaneseq
        %v1076 = vshrl.u32 %v1075, 7
        %v1077 = vsub.s32 2, %v1076
        %v1078 = vrot.slane %v398, %v1077
        %v1079 = vmul.f32 %v1013, %v1078
        %v1080 = vmul.f32 %v1017, %v1078
        %v1081 = vmul.f32 %v1021, %v1078
        %v1082 = vmul.f32 %v1025, %v1078
        %v1083 = vmul.f32 %v1029, %v1078
        %v1084 = vmul.f32 %v1033, %v1078
        %v1085 = vmul.f32 %v1037, %v1078
        %v1086 = vmul.f32 %v1041, %v1078
        %v1087 = vmul.f32 %v1045, %v1078
        %v1088 = vmul.f32 %v1049, %v1078
        %v1089 = vmul.f32 %v1053, %v1078
        %v1090 = vmul.f32 %v1057, %v1078
        %v1091 = vmul.f32 %v1061, %v1078
        %v1092 = vmul.f32 %v1065, %v1078
        %v1093 = vmul.f32 %v1069, %v1078
        %v1094 = vmul.f32 %v1073, %v1078
        %v1095 = vadd.f32 %v995, %v1079
        %v1096 = vadd.f32 %v996, %v1080
        %v1097 = vadd.f32 %v997, %v1081
        %v1098 = vadd.f32 %v998, %v1082
        %v1099 = vadd.f32 %v999, %v1083
        %v1100 = vadd.f32 %v1000, %v1084
        %v1101 = vadd.f32 %v1001, %v1085
        %v1102 = vadd.f32 %v1002, %v1086
        %v1103 = vadd.f32 %v1003, %v1087
        %v1104 = vadd.f32 %v1004, %v1088
        %v1105 = vadd.f32 %v1005, %v1089
        %v1106 = vadd.f32 %v1006, %v1090
        %v1107 = vadd.f32 %v1007, %v1091
        %v1108 = vadd.f32 %v1008, %v1092
        %v1109 = vadd.f32 %v1009, %v1093
        %v1110 = vadd.f32 %v1010, %v1094
        %1111 = vset.pattern.permute.xlu0 3
        %1112 = vperm.xlu0 %1111, %v795
        %v1113 = vpop.permute.xlu0 %1112
        %1115 = vset.pattern.permute.xlu0 3
        %1116 = vperm.xlu0 %1115, %v796
        %v1117 = vpop.permute.xlu0 %1116
        %1119 = vset.pattern.permute.xlu0 3
        %1120 = vperm.xlu0 %1119, %v797
        %v1121 = vpop.permute.xlu0 %1120
        %1123 = vset.pattern.permute.xlu0 3
        %1124 = vperm.xlu0 %1123, %v798
        %v1125 = vpop.permute.xlu0 %1124
        %1127 = vset.pattern.permute.xlu0 3
        %1128 = vperm.xlu0 %1127, %v799
        %v1129 = vpop.permute.xlu0 %1128
        %1131 = vset.pattern.permute.xlu0 3
        %1132 = vperm.xlu0 %1131, %v800
        %v1133 = vpop.permute.xlu0 %1132
        %1135 = vset.pattern.permute.xlu0 3
        %1136 = vperm.xlu0 %1135, %v801
        %v1137 = vpop.permute.xlu0 %1136
        %1139 = vset.pattern.permute.xlu0 3
        %1140 = vperm.xlu0 %1139, %v802
        %v1141 = vpop.permute.xlu0 %1140
        %1143 = vset.pattern.permute.xlu0 3
        %1144 = vperm.xlu0 %1143, %v803
        %v1145 = vpop.permute.xlu0 %1144
        %1147 = vset.pattern.permute.xlu0 3
        %1148 = vperm.xlu0 %1147, %v804
        %v1149 = vpop.permute.xlu0 %1148
        %1151 = vset.pattern.permute.xlu0 3
        %1152 = vperm.xlu0 %1151, %v805
        %v1153 = vpop.permute.xlu0 %1152
        %1155 = vset.pattern.permute.xlu0 3
        %1156 = vperm.xlu0 %1155, %v806
        %v1157 = vpop.permute.xlu0 %1156
        %1159 = vset.pattern.permute.xlu0 3
        %1160 = vperm.xlu0 %1159, %v807
        %v1161 = vpop.permute.xlu0 %1160
        %1163 = vset.pattern.permute.xlu0 3
        %1164 = vperm.xlu0 %1163, %v808
        %v1165 = vpop.permute.xlu0 %1164
        %1167 = vset.pattern.permute.xlu0 3
        %1168 = vperm.xlu0 %1167, %v809
        %v1169 = vpop.permute.xlu0 %1168
        %1171 = vset.pattern.permute.xlu0 3
        %1172 = vperm.xlu0 %1171, %v810
        %v1173 = vpop.permute.xlu0 %1172
        %v1175 = vlaneseq
        %v1176 = vshrl.u32 %v1175, 7
        %v1177 = vsub.s32 3, %v1176
        %v1178 = vrot.slane %v398, %v1177
        %v1179 = vmul.f32 %v1113, %v1178
        %v1180 = vmul.f32 %v1117, %v1178
        %v1181 = vmul.f32 %v1121, %v1178
        %v1182 = vmul.f32 %v1125, %v1178
        %v1183 = vmul.f32 %v1129, %v1178
        %v1184 = vmul.f32 %v1133, %v1178
        %v1185 = vmul.f32 %v1137, %v1178
        %v1186 = vmul.f32 %v1141, %v1178
        %v1187 = vmul.f32 %v1145, %v1178
        %v1188 = vmul.f32 %v1149, %v1178
        %v1189 = vmul.f32 %v1153, %v1178
        %v1190 = vmul.f32 %v1157, %v1178
        %v1191 = vmul.f32 %v1161, %v1178
        %v1192 = vmul.f32 %v1165, %v1178
        %v1193 = vmul.f32 %v1169, %v1178
        %v1194 = vmul.f32 %v1173, %v1178
        %v1195 = vadd.f32 %v1095, %v1179
        %v1196 = vadd.f32 %v1096, %v1180
        %v1197 = vadd.f32 %v1097, %v1181
        %v1198 = vadd.f32 %v1098, %v1182
        %v1199 = vadd.f32 %v1099, %v1183
        %v1200 = vadd.f32 %v1100, %v1184
        %v1201 = vadd.f32 %v1101, %v1185
        %v1202 = vadd.f32 %v1102, %v1186
        %v1203 = vadd.f32 %v1103, %v1187
        %v1204 = vadd.f32 %v1104, %v1188
        %v1205 = vadd.f32 %v1105, %v1189
        %v1206 = vadd.f32 %v1106, %v1190
        %v1207 = vadd.f32 %v1107, %v1191
        %v1208 = vadd.f32 %v1108, %v1192
        %v1209 = vadd.f32 %v1109, %v1193
        %v1210 = vadd.f32 %v1110, %v1194
        %s1211 = sld [smem:[#allocation2]]
        %v1212 = vstv %s1211
        %v1213 = vmul.f32 %v483, %v1212
        %v1214 = vmul.f32 %v484, %v1212
        %v1215 = vmul.f32 %v485, %v1212
        %v1216 = vmul.f32 %v486, %v1212
        %v1217 = vmul.f32 %v487, %v1212
        %v1218 = vmul.f32 %v488, %v1212
        %v1219 = vmul.f32 %v489, %v1212
        %v1220 = vmul.f32 %v490, %v1212
        %v1221 = vmul.f32 %v491, %v1212
        %v1222 = vmul.f32 %v492, %v1212
        %v1223 = vmul.f32 %v493, %v1212
        %v1224 = vmul.f32 %v494, %v1212
        %v1225 = vmul.f32 %v495, %v1212
        %v1226 = vmul.f32 %v496, %v1212
        %v1227 = vmul.f32 %v497, %v1212
        %v1228 = vmul.f32 %v498, %v1212
        %s1229 = sld [smem:[#allocation2 + $0x80]]
        %v1230 = vstv %s1229
        %v1231 = vmul.f32 %v567, %v1230
        %v1232 = vmul.f32 %v568, %v1230
        %v1233 = vmul.f32 %v569, %v1230
        %v1234 = vmul.f32 %v570, %v1230
        %v1235 = vmul.f32 %v571, %v1230
        %v1236 = vmul.f32 %v572, %v1230
        %v1237 = vmul.f32 %v573, %v1230
        %v1238 = vmul.f32 %v574, %v1230
        %v1239 = vmul.f32 %v575, %v1230
        %v1240 = vmul.f32 %v576, %v1230
        %v1241 = vmul.f32 %v577, %v1230
        %v1242 = vmul.f32 %v578, %v1230
        %v1243 = vmul.f32 %v579, %v1230
        %v1244 = vmul.f32 %v580, %v1230
        %v1245 = vmul.f32 %v581, %v1230
        %v1246 = vmul.f32 %v582, %v1230
        %v1247 = vadd.f32 %v1213, %v1231
        %v1248 = vadd.f32 %v1214, %v1232
        %v1249 = vadd.f32 %v1215, %v1233
        %v1250 = vadd.f32 %v1216, %v1234
        %v1251 = vadd.f32 %v1217, %v1235
        %v1252 = vadd.f32 %v1218, %v1236
        %v1253 = vadd.f32 %v1219, %v1237
        %v1254 = vadd.f32 %v1220, %v1238
        %v1255 = vadd.f32 %v1221, %v1239
        %v1256 = vadd.f32 %v1222, %v1240
        %v1257 = vadd.f32 %v1223, %v1241
        %v1258 = vadd.f32 %v1224, %v1242
        %v1259 = vadd.f32 %v1225, %v1243
        %v1260 = vadd.f32 %v1226, %v1244
        %v1261 = vadd.f32 %v1227, %v1245
        %v1262 = vadd.f32 %v1228, %v1246
        %s1263 = sld [smem:[#allocation2 + $0x100]]
        %v1264 = vstv %s1263
        %v1265 = vmul.f32 %v651, %v1264
        %v1266 = vmul.f32 %v652, %v1264
        %v1267 = vmul.f32 %v653, %v1264
        %v1268 = vmul.f32 %v654, %v1264
        %v1269 = vmul.f32 %v655, %v1264
        %v1270 = vmul.f32 %v656, %v1264
        %v1271 = vmul.f32 %v657, %v1264
        %v1272 = vmul.f32 %v658, %v1264
        %v1273 = vmul.f32 %v659, %v1264
        %v1274 = vmul.f32 %v660, %v1264
        %v1275 = vmul.f32 %v661, %v1264
        %v1276 = vmul.f32 %v662, %v1264
        %v1277 = vmul.f32 %v663, %v1264
        %v1278 = vmul.f32 %v664, %v1264
        %v1279 = vmul.f32 %v665, %v1264
        %v1280 = vmul.f32 %v666, %v1264
        %v1281 = vadd.f32 %v1247, %v1265
        %v1282 = vadd.f32 %v1248, %v1266
        %v1283 = vadd.f32 %v1249, %v1267
        %v1284 = vadd.f32 %v1250, %v1268
        %v1285 = vadd.f32 %v1251, %v1269
        %v1286 = vadd.f32 %v1252, %v1270
        %v1287 = vadd.f32 %v1253, %v1271
        %v1288 = vadd.f32 %v1254, %v1272
        %v1289 = vadd.f32 %v1255, %v1273
        %v1290 = vadd.f32 %v1256, %v1274
        %v1291 = vadd.f32 %v1257, %v1275
        %v1292 = vadd.f32 %v1258, %v1276
        %v1293 = vadd.f32 %v1259, %v1277
        %v1294 = vadd.f32 %v1260, %v1278
        %v1295 = vadd.f32 %v1261, %v1279
        %v1296 = vadd.f32 %v1262, %v1280
        %s1297 = sld [smem:[#allocation5]]
        %v1298 = vstv %s1297
        %v1299 = vadd.f32 %v1281, %v1298
        %v1300 = vadd.f32 %v1282, %v1298
        %v1301 = vadd.f32 %v1283, %v1298
        %v1302 = vadd.f32 %v1284, %v1298
        %v1303 = vadd.f32 %v1285, %v1298
        %v1304 = vadd.f32 %v1286, %v1298
        %v1305 = vadd.f32 %v1287, %v1298
        %v1306 = vadd.f32 %v1288, %v1298
        %v1307 = vadd.f32 %v1289, %v1298
        %v1308 = vadd.f32 %v1290, %v1298
        %v1309 = vadd.f32 %v1291, %v1298
        %v1310 = vadd.f32 %v1292, %v1298
        %v1311 = vadd.f32 %v1293, %v1298
        %v1312 = vadd.f32 %v1294, %v1298
        %v1313 = vadd.f32 %v1295, %v1298
        %v1314 = vadd.f32 %v1296, %v1298
        %v1315 = vtanh.pop %v1299
        %v1316 = vtanh.pop %v1300
        %v1317 = vtanh.pop %v1301
        %v1318 = vtanh.pop %v1302
        %v1319 = vtanh.pop %v1303
        %v1320 = vtanh.pop %v1304
        %v1321 = vtanh.pop %v1305
        %v1322 = vtanh.pop %v1306
        %v1323 = vtanh.pop %v1307
        %v1324 = vtanh.pop %v1308
        %v1325 = vtanh.pop %v1309
        %v1326 = vtanh.pop %v1310
        %v1327 = vtanh.pop %v1311
        %v1328 = vtanh.pop %v1312
        %v1329 = vtanh.pop %v1313
        %v1330 = vtanh.pop %v1314
        %v1331 = vmul.f32 %v1315, %v779
        %v1332 = vmul.f32 %v1316, %v780
        %v1333 = vmul.f32 %v1317, %v781
        %v1334 = vmul.f32 %v1318, %v782
        %v1335 = vmul.f32 %v1319, %v783
        %v1336 = vmul.f32 %v1320, %v784
        %v1337 = vmul.f32 %v1321, %v785
        %v1338 = vmul.f32 %v1322, %v786
        %v1339 = vmul.f32 %v1323, %v787
        %v1340 = vmul.f32 %v1324, %v788
        %v1341 = vmul.f32 %v1325, %v789
        %v1342 = vmul.f32 %v1326, %v790
        %v1343 = vmul.f32 %v1327, %v791
        %v1344 = vmul.f32 %v1328, %v792
        %v1345 = vmul.f32 %v1329, %v793
        %v1346 = vmul.f32 %v1330, %v794
        %s1347 = sld [smem:[#allocation2 + $0x1]]
        %v1348 = vstv %s1347
        %v1349 = vmul.f32 %v483, %v1348
        %v1350 = vmul.f32 %v484, %v1348
        %v1351 = vmul.f32 %v485, %v1348
        %v1352 = vmul.f32 %v486, %v1348
        %v1353 = vmul.f32 %v487, %v1348
        %v1354 = vmul.f32 %v488, %v1348
        %v1355 = vmul.f32 %v489, %v1348
        %v1356 = vmul.f32 %v490, %v1348
        %v1357 = vmul.f32 %v491, %v1348
        %v1358 = vmul.f32 %v492, %v1348
        %v1359 = vmul.f32 %v493, %v1348
        %v1360 = vmul.f32 %v494, %v1348
        %v1361 = vmul.f32 %v495, %v1348
        %v1362 = vmul.f32 %v496, %v1348
        %v1363 = vmul.f32 %v497, %v1348
        %v1364 = vmul.f32 %v498, %v1348
        %s1365 = sld [smem:[#allocation2 + $0x81]]
        %v1366 = vstv %s1365
        %v1367 = vmul.f32 %v567, %v1366
        %v1368 = vmul.f32 %v568, %v1366
        %v1369 = vmul.f32 %v569, %v1366
        %v1370 = vmul.f32 %v570, %v1366
        %v1371 = vmul.f32 %v571, %v1366
        %v1372 = vmul.f32 %v572, %v1366
        %v1373 = vmul.f32 %v573, %v1366
        %v1374 = vmul.f32 %v574, %v1366
        %v1375 = vmul.f32 %v575, %v1366
        %v1376 = vmul.f32 %v576, %v1366
        %v1377 = vmul.f32 %v577, %v1366
        %v1378 = vmul.f32 %v578, %v1366
        %v1379 = vmul.f32 %v579, %v1366
        %v1380 = vmul.f32 %v580, %v1366
        %v1381 = vmul.f32 %v581, %v1366
        %v1382 = vmul.f32 %v582, %v1366
        %v1383 = vadd.f32 %v1349, %v1367
        %v1384 = vadd.f32 %v1350, %v1368
        %v1385 = vadd.f32 %v1351, %v1369
        %v1386 = vadd.f32 %v1352, %v1370
        %v1387 = vadd.f32 %v1353, %v1371
        %v1388 = vadd.f32 %v1354, %v1372
        %v1389 = vadd.f32 %v1355, %v1373
        %v1390 = vadd.f32 %v1356, %v1374
        %v1391 = vadd.f32 %v1357, %v1375
        %v1392 = vadd.f32 %v1358, %v1376
        %v1393 = vadd.f32 %v1359, %v1377
        %v1394 = vadd.f32 %v1360, %v1378
        %v1395 = vadd.f32 %v1361, %v1379
        %v1396 = vadd.f32 %v1362, %v1380
        %v1397 = vadd.f32 %v1363, %v1381
        %v1398 = vadd.f32 %v1364, %v1382
        %s1399 = sld [smem:[#allocation2 + $0x101]]
        %v1400 = vstv %s1399
        %v1401 = vmul.f32 %v651, %v1400
        %v1402 = vmul.f32 %v652, %v1400
        %v1403 = vmul.f32 %v653, %v1400
        %v1404 = vmul.f32 %v654, %v1400
        %v1405 = vmul.f32 %v655, %v1400
        %v1406 = vmul.f32 %v656, %v1400
        %v1407 = vmul.f32 %v657, %v1400
        %v1408 = vmul.f32 %v658, %v1400
        %v1409 = vmul.f32 %v659, %v1400
        %v1410 = vmul.f32 %v660, %v1400
        %v1411 = vmul.f32 %v661, %v1400
        %v1412 = vmul.f32 %v662, %v1400
        %v1413 = vmul.f32 %v663, %v1400
        %v1414 = vmul.f32 %v664, %v1400
        %v1415 = vmul.f32 %v665, %v1400
        %v1416 = vmul.f32 %v666, %v1400
        %v1417 = vadd.f32 %v1383, %v1401
        %v1418 = vadd.f32 %v1384, %v1402
        %v1419 = vadd.f32 %v1385, %v1403
        %v1420 = vadd.f32 %v1386, %v1404
        %v1421 = vadd.f32 %v1387, %v1405
        %v1422 = vadd.f32 %v1388, %v1406
        %v1423 = vadd.f32 %v1389, %v1407
        %v1424 = vadd.f32 %v1390, %v1408
        %v1425 = vadd.f32 %v1391, %v1409
        %v1426 = vadd.f32 %v1392, %v1410
        %v1427 = vadd.f32 %v1393, %v1411
        %v1428 = vadd.f32 %v1394, %v1412
        %v1429 = vadd.f32 %v1395, %v1413
        %v1430 = vadd.f32 %v1396, %v1414
        %v1431 = vadd.f32 %v1397, %v1415
        %v1432 = vadd.f32 %v1398, %v1416
        %s1433 = sld [smem:[#allocation5 + $0x1]]
        %v1434 = vstv %s1433
        %v1435 = vadd.f32 %v1417, %v1434
        %v1436 = vadd.f32 %v1418, %v1434
        %v1437 = vadd.f32 %v1419, %v1434
        %v1438 = vadd.f32 %v1420, %v1434
        %v1439 = vadd.f32 %v1421, %v1434
        %v1440 = vadd.f32 %v1422, %v1434
        %v1441 = vadd.f32 %v1423, %v1434
        %v1442 = vadd.f32 %v1424, %v1434
        %v1443 = vadd.f32 %v1425, %v1434
        %v1444 = vadd.f32 %v1426, %v1434
        %v1445 = vadd.f32 %v1427, %v1434
        %v1446 = vadd.f32 %v1428, %v1434
        %v1447 = vadd.f32 %v1429, %v1434
        %v1448 = vadd.f32 %v1430, %v1434
        %v1449 = vadd.f32 %v1431, %v1434
        %v1450 = vadd.f32 %v1432, %v1434
        %v1451 = vtanh.pop %v1435
        %v1452 = vtanh.pop %v1436
        %v1453 = vtanh.pop %v1437
        %v1454 = vtanh.pop %v1438
        %v1455 = vtanh.pop %v1439
        %v1456 = vtanh.pop %v1440
        %v1457 = vtanh.pop %v1441
        %v1458 = vtanh.pop %v1442
        %v1459 = vtanh.pop %v1443
        %v1460 = vtanh.pop %v1444
        %v1461 = vtanh.pop %v1445
        %v1462 = vtanh.pop %v1446
        %v1463 = vtanh.pop %v1447
        %v1464 = vtanh.pop %v1448
        %v1465 = vtanh.pop %v1449
        %v1466 = vtanh.pop %v1450
        %v1467 = vmul.f32 %v1451, %v779
        %v1468 = vmul.f32 %v1452, %v780
        %v1469 = vmul.f32 %v1453, %v781
        %v1470 = vmul.f32 %v1454, %v782
        %v1471 = vmul.f32 %v1455, %v783
        %v1472 = vmul.f32 %v1456, %v784
        %v1473 = vmul.f32 %v1457, %v785
        %v1474 = vmul.f32 %v1458, %v786
        %v1475 = vmul.f32 %v1459, %v787
        %v1476 = vmul.f32 %v1460, %v788
        %v1477 = vmul.f32 %v1461, %v789
        %v1478 = vmul.f32 %v1462, %v790
        %v1479 = vmul.f32 %v1463, %v791
        %v1480 = vmul.f32 %v1464, %v792
        %v1481 = vmul.f32 %v1465, %v793
        %v1482 = vmul.f32 %v1466, %v794
        %1483 = vmatprep.subr.mxu0 0.0
        %1484 = vmatpush1.msra.mxu0 %v1467
        %1485 = vmatprep.subr.mxu0 0.0
        %1486 = vmatpush1.msra.mxu0 %v1468
        %1487 = vmatprep.subr.mxu0 0.0
        %1488 = vmatpush1.msra.mxu0 %v1469
        %1489 = vmatprep.subr.mxu0 0.0
        %1490 = vmatpush1.msra.mxu0 %v1470
        %1491 = vmatprep.subr.mxu0 0.0
        %1492 = vmatpush1.msra.mxu0 %v1471
        %1493 = vmatprep.subr.mxu0 0.0
        %1494 = vmatpush1.msra.mxu0 %v1472
        %1495 = vmatprep.subr.mxu0 0.0
        %1496 = vmatpush1.msra.mxu0 %v1473
        %1497 = vmatprep.subr.mxu0 0.0
        %1498 = vmatpush1.msra.mxu0 %v1474
        %1499 = vmatprep.subr.mxu0 0.0
        %1500 = vmatpush1.msra.mxu0 %v1475
        %1501 = vmatprep.subr.mxu0 0.0
        %1502 = vmatpush1.msra.mxu0 %v1476
        %1503 = vmatprep.subr.mxu0 0.0
        %1504 = vmatpush1.msra.mxu0 %v1477
        %1505 = vmatprep.subr.mxu0 0.0
        %1506 = vmatpush1.msra.mxu0 %v1478
        %1507 = vmatprep.subr.mxu0 0.0
        %1508 = vmatpush1.msra.mxu0 %v1479
        %1509 = vmatprep.subr.mxu0 0.0
        %1510 = vmatpush1.msra.mxu0 %v1480
        %1511 = vmatprep.subr.mxu0 0.0
        %1512 = vmatpush1.msra.mxu0 %v1481
        %1513 = vmatprep.subr.mxu0 0.0
        %1514 = vmatpush1.msra.mxu0 %v1482
        %1515 = vmatprep.subr.mxu0 0.0
        %1516 = vmatpush1.msra.mxu0 0.0
        %1517 = vmatprep.subr.mxu0 0.0
        %1518 = vmatpush1.msra.mxu0 0.0
        %1519 = vmatprep.subr.mxu0 0.0
        %1520 = vmatpush1.msra.mxu0 0.0
        %1521 = vmatprep.subr.mxu0 0.0
        %1522 = vmatpush1.msra.mxu0 0.0
        %1523 = vmatprep.subr.mxu0 0.0
        %1524 = vmatpush1.msra.mxu0 0.0
        %1525 = vmatprep.subr.mxu0 0.0
        %1526 = vmatpush1.msra.mxu0 0.0
        %1527 = vmatprep.subr.mxu0 0.0
        %1528 = vmatpush1.msra.mxu0 0.0
        %1529 = vmatprep.subr.mxu0 0.0
        %1530 = vmatpush1.msra.mxu0 0.0
        %1531 = vmatprep.subr.mxu0 0.0
        %1532 = vmatpush1.msra.mxu0 0.0
        %1533 = vmatprep.subr.mxu0 0.0
        %1534 = vmatpush1.msra.mxu0 0.0
        %1535 = vmatprep.subr.mxu0 0.0
        %1536 = vmatpush1.msra.mxu0 0.0
        %1537 = vmatprep.subr.mxu0 0.0
        %1538 = vmatpush1.msra.mxu0 0.0
        %1539 = vmatprep.subr.mxu0 0.0
        %1540 = vmatpush1.msra.mxu0 0.0
        %1541 = vmatprep.subr.mxu0 0.0
        %1542 = vmatpush1.msra.mxu0 0.0
        %1543 = vmatprep.subr.mxu0 0.0
        %1544 = vmatpush1.msra.mxu0 0.0
        %1545 = vmatprep.subr.mxu0 0.0
        %1546 = vmatpush1.msra.mxu0 0.0
        %1547 = vmatprep.mubr.f32.mxu0 0.0
        %1548 = vmatmul.mubr.f32.gmra.mrb[0].mxu0 %v1196
        %v1549 = vpop.f32.mrb[0].mxu0
        %v1550 = vadd.f32 0.0, %v1549
        %v1551 = vpop.f32.mrb[0].mxu0
        %1552 = vdwg.mxu0
        %1553 = vmatprep.subr.mxu0 0.0
        %1554 = vmatpush1.msra.mxu0 %v1331
        %1555 = vmatprep.subr.mxu0 0.0
        %1556 = vmatpush1.msra.mxu0 %v1332
        %1557 = vmatprep.subr.mxu0 0.0
        %1558 = vmatpush1.msra.mxu0 %v1333
        %1559 = vmatprep.subr.mxu0 0.0
        %1560 = vmatpush1.msra.mxu0 %v1334
        %1561 = vmatprep.subr.mxu0 0.0
        %1562 = vmatpush1.msra.mxu0 %v1335
        %1563 = vmatprep.subr.mxu0 0.0
        %1564 = vmatpush1.msra.mxu0 %v1336
        %1565 = vmatprep.subr.mxu0 0.0
        %1566 = vmatpush1.msra.mxu0 %v1337
        %1567 = vmatprep.subr.mxu0 0.0
        %1568 = vmatpush1.msra.mxu0 %v1338
        %1569 = vmatprep.subr.mxu0 0.0
        %1570 = vmatpush1.msra.mxu0 %v1339
        %1571 = vmatprep.subr.mxu0 0.0
        %1572 = vmatpush1.msra.mxu0 %v1340
        %1573 = vmatprep.subr.mxu0 0.0
        %1574 = vmatpush1.msra.mxu0 %v1341
        %1575 = vmatprep.subr.mxu0 0.0
        %1576 = vmatpush1.msra.mxu0 %v1342
        %1577 = vmatprep.subr.mxu0 0.0
        %1578 = vmatpush1.msra.mxu0 %v1343
        %1579 = vmatprep.subr.mxu0 0.0
        %1580 = vmatpush1.msra.mxu0 %v1344
        %1581 = vmatprep.subr.mxu0 0.0
        %1582 = vmatpush1.msra.mxu0 %v1345
        %1583 = vmatprep.subr.mxu0 0.0
        %1584 = vmatpush1.msra.mxu0 %v1346
        %1585 = vmatprep.subr.mxu0 0.0
        %1586 = vmatpush1.msra.mxu0 0.0
        %1587 = vmatprep.subr.mxu0 0.0
        %1588 = vmatpush1.msra.mxu0 0.0
        %1589 = vmatprep.subr.mxu0 0.0
        %1590 = vmatpush1.msra.mxu0 0.0
        %1591 = vmatprep.subr.mxu0 0.0
        %1592 = vmatpush1.msra.mxu0 0.0
        %1593 = vmatprep.subr.mxu0 0.0
        %1594 = vmatpush1.msra.mxu0 0.0
        %1595 = vmatprep.subr.mxu0 0.0
        %1596 = vmatpush1.msra.mxu0 0.0
        %1597 = vmatprep.subr.mxu0 0.0
        %1598 = vmatpush1.msra.mxu0 0.0
        %1599 = vmatprep.subr.mxu0 0.0
        %1600 = vmatpush1.msra.mxu0 0.0
        %1601 = vmatprep.subr.mxu0 0.0
        %1602 = vmatpush1.msra.mxu0 0.0
        %1603 = vmatprep.subr.mxu0 0.0
        %1604 = vmatpush1.msra.mxu0 0.0
        %1605 = vmatprep.subr.mxu0 0.0
        %1606 = vmatpush1.msra.mxu0 0.0
        %1607 = vmatprep.subr.mxu0 0.0
        %1608 = vmatpush1.msra.mxu0 0.0
        %1609 = vmatprep.subr.mxu0 0.0
        %1610 = vmatpush1.msra.mxu0 0.0
        %1611 = vmatprep.subr.mxu0 0.0
        %1612 = vmatpush1.msra.mxu0 0.0
        %1613 = vmatprep.subr.mxu0 0.0
        %1614 = vmatpush1.msra.mxu0 0.0
        %1615 = vmatprep.subr.mxu0 0.0
        %1616 = vmatpush1.msra.mxu0 0.0
        %1617 = vmatprep.mubr.f32.mxu0 0.0
        %1618 = vmatmul.mubr.f32.gmra.mrb[0].mxu0 %v1195
        %v1619 = vpop.f32.mrb[0].mxu0
        %v1620 = vadd.f32 %v1550, %v1619
        %v1621 = vpop.f32.mrb[0].mxu0
        %1622 = vdwg.mxu0
        %s1623 = sld [smem:[#allocation2 + $0x2]]
        %v1624 = vstv %s1623
        %v1625 = vmul.f32 %v483, %v1624
        %v1626 = vmul.f32 %v484, %v1624
        %v1627 = vmul.f32 %v485, %v1624
        %v1628 = vmul.f32 %v486, %v1624
        %v1629 = vmul.f32 %v487, %v1624
        %v1630 = vmul.f32 %v488, %v1624
        %v1631 = vmul.f32 %v489, %v1624
        %v1632 = vmul.f32 %v490, %v1624
        %v1633 = vmul.f32 %v491, %v1624
        %v1634 = vmul.f32 %v492, %v1624
        %v1635 = vmul.f32 %v493, %v1624
        %v1636 = vmul.f32 %v494, %v1624
        %v1637 = vmul.f32 %v495, %v1624
        %v1638 = vmul.f32 %v496, %v1624
        %v1639 = vmul.f32 %v497, %v1624
        %v1640 = vmul.f32 %v498, %v1624
        %s1641 = sld [smem:[#allocation2 + $0x82]]
        %v1642 = vstv %s1641
        %v1643 = vmul.f32 %v567, %v1642
        %v1644 = vmul.f32 %v568, %v1642
        %v1645 = vmul.f32 %v569, %v1642
        %v1646 = vmul.f32 %v570, %v1642
        %v1647 = vmul.f32 %v571, %v1642
        %v1648 = vmul.f32 %v572, %v1642
        %v1649 = vmul.f32 %v573, %v1642
        %v1650 = vmul.f32 %v574, %v1642
        %v1651 = vmul.f32 %v575, %v1642
        %v1652 = vmul.f32 %v576, %v1642
        %v1653 = vmul.f32 %v577, %v1642
        %v1654 = vmul.f32 %v578, %v1642
        %v1655 = vmul.f32 %v579, %v1642
        %v1656 = vmul.f32 %v580, %v1642
        %v1657 = vmul.f32 %v581, %v1642
        %v1658 = vmul.f32 %v582, %v1642
        %v1659 = vadd.f32 %v1625, %v1643
        %v1660 = vadd.f32 %v1626, %v1644
        %v1661 = vadd.f32 %v1627, %v1645
        %v1662 = vadd.f32 %v1628, %v1646
        %v1663 = vadd.f32 %v1629, %v1647
        %v1664 = vadd.f32 %v1630, %v1648
        %v1665 = vadd.f32 %v1631, %v1649
        %v1666 = vadd.f32 %v1632, %v1650
        %v1667 = vadd.f32 %v1633, %v1651
        %v1668 = vadd.f32 %v1634, %v1652
        %v1669 = vadd.f32 %v1635, %v1653
        %v1670 = vadd.f32 %v1636, %v1654
        %v1671 = vadd.f32 %v1637, %v1655
        %v1672 = vadd.f32 %v1638, %v1656
        %v1673 = vadd.f32 %v1639, %v1657
        %v1674 = vadd.f32 %v1640, %v1658
        %s1675 = sld [smem:[#allocation2 + $0x102]]
        %v1676 = vstv %s1675
        %v1677 = vmul.f32 %v651, %v1676
        %v1678 = vmul.f32 %v652, %v1676
        %v1679 = vmul.f32 %v653, %v1676
        %v1680 = vmul.f32 %v654, %v1676
        %v1681 = vmul.f32 %v655, %v1676
        %v1682 = vmul.f32 %v656, %v1676
        %v1683 = vmul.f32 %v657, %v1676
        %v1684 = vmul.f32 %v658, %v1676
        %v1685 = vmul.f32 %v659, %v1676
        %v1686 = vmul.f32 %v660, %v1676
        %v1687 = vmul.f32 %v661, %v1676
        %v1688 = vmul.f32 %v662, %v1676
        %v1689 = vmul.f32 %v663, %v1676
        %v1690 = vmul.f32 %v664, %v1676
        %v1691 = vmul.f32 %v665, %v1676
        %v1692 = vmul.f32 %v666, %v1676
        %v1693 = vadd.f32 %v1659, %v1677
        %v1694 = vadd.f32 %v1660, %v1678
        %v1695 = vadd.f32 %v1661, %v1679
        %v1696 = vadd.f32 %v1662, %v1680
        %v1697 = vadd.f32 %v1663, %v1681
        %v1698 = vadd.f32 %v1664, %v1682
        %v1699 = vadd.f32 %v1665, %v1683
        %v1700 = vadd.f32 %v1666, %v1684
        %v1701 = vadd.f32 %v1667, %v1685
        %v1702 = vadd.f32 %v1668, %v1686
        %v1703 = vadd.f32 %v1669, %v1687
        %v1704 = vadd.f32 %v1670, %v1688
        %v1705 = vadd.f32 %v1671, %v1689
        %v1706 = vadd.f32 %v1672, %v1690
        %v1707 = vadd.f32 %v1673, %v1691
        %v1708 = vadd.f32 %v1674, %v1692
        %s1709 = sld [smem:[#allocation5 + $0x2]]
        %v1710 = vstv %s1709
        %v1711 = vadd.f32 %v1693, %v1710
        %v1712 = vadd.f32 %v1694, %v1710
        %v1713 = vadd.f32 %v1695, %v1710
        %v1714 = vadd.f32 %v1696, %v1710
        %v1715 = vadd.f32 %v1697, %v1710
        %v1716 = vadd.f32 %v1698, %v1710
        %v1717 = vadd.f32 %v1699, %v1710
        %v1718 = vadd.f32 %v1700, %v1710
        %v1719 = vadd.f32 %v1701, %v1710
        %v1720 = vadd.f32 %v1702, %v1710
        %v1721 = vadd.f32 %v1703, %v1710
        %v1722 = vadd.f32 %v1704, %v1710
        %v1723 = vadd.f32 %v1705, %v1710
        %v1724 = vadd.f32 %v1706, %v1710
        %v1725 = vadd.f32 %v1707, %v1710
        %v1726 = vadd.f32 %v1708, %v1710
        %v1727 = vtanh.pop %v1711
        %v1728 = vtanh.pop %v1712
        %v1729 = vtanh.pop %v1713
        %v1730 = vtanh.pop %v1714
        %v1731 = vtanh.pop %v1715
        %v1732 = vtanh.pop %v1716
        %v1733 = vtanh.pop %v1717
        %v1734 = vtanh.pop %v1718
        %v1735 = vtanh.pop %v1719
        %v1736 = vtanh.pop %v1720
        %v1737 = vtanh.pop %v1721
        %v1738 = vtanh.pop %v1722
        %v1739 = vtanh.pop %v1723
        %v1740 = vtanh.pop %v1724
        %v1741 = vtanh.pop %v1725
        %v1742 = vtanh.pop %v1726
        %v1743 = vmul.f32 %v1727, %v779
        %v1744 = vmul.f32 %v1728, %v780
        %v1745 = vmul.f32 %v1729, %v781
        %v1746 = vmul.f32 %v1730, %v782
        %v1747 = vmul.f32 %v1731, %v783
        %v1748 = vmul.f32 %v1732, %v784
        %v1749 = vmul.f32 %v1733, %v785
        %v1750 = vmul.f32 %v1734, %v786
        %v1751 = vmul.f32 %v1735, %v787
        %v1752 = vmul.f32 %v1736, %v788
        %v1753 = vmul.f32 %v1737, %v789
        %v1754 = vmul.f32 %v1738, %v790
        %v1755 = vmul.f32 %v1739, %v791
        %v1756 = vmul.f32 %v1740, %v792
        %v1757 = vmul.f32 %v1741, %v793
        %v1758 = vmul.f32 %v1742, %v794
        %1759 = vmatprep.subr.mxu0 0.0
        %1760 = vmatpush1.msra.mxu0 %v1743
        %1761 = vmatprep.subr.mxu0 0.0
        %1762 = vmatpush1.msra.mxu0 %v1744
        %1763 = vmatprep.subr.mxu0 0.0
        %1764 = vmatpush1.msra.mxu0 %v1745
        %1765 = vmatprep.subr.mxu0 0.0
        %1766 = vmatpush1.msra.mxu0 %v1746
        %1767 = vmatprep.subr.mxu0 0.0
        %1768 = vmatpush1.msra.mxu0 %v1747
        %1769 = vmatprep.subr.mxu0 0.0
        %1770 = vmatpush1.msra.mxu0 %v1748
        %1771 = vmatprep.subr.mxu0 0.0
        %1772 = vmatpush1.msra.mxu0 %v1749
        %1773 = vmatprep.subr.mxu0 0.0
        %1774 = vmatpush1.msra.mxu0 %v1750
        %1775 = vmatprep.subr.mxu0 0.0
        %1776 = vmatpush1.msra.mxu0 %v1751
        %1777 = vmatprep.subr.mxu0 0.0
        %1778 = vmatpush1.msra.mxu0 %v1752
        %1779 = vmatprep.subr.mxu0 0.0
        %1780 = vmatpush1.msra.mxu0 %v1753
        %1781 = vmatprep.subr.mxu0 0.0
        %1782 = vmatpush1.msra.mxu0 %v1754
        %1783 = vmatprep.subr.mxu0 0.0
        %1784 = vmatpush1.msra.mxu0 %v1755
        %1785 = vmatprep.subr.mxu0 0.0
        %1786 = vmatpush1.msra.mxu0 %v1756
        %1787 = vmatprep.subr.mxu0 0.0
        %1788 = vmatpush1.msra.mxu0 %v1757
        %1789 = vmatprep.subr.mxu0 0.0
        %1790 = vmatpush1.msra.mxu0 %v1758
        %1791 = vmatprep.subr.mxu0 0.0
        %1792 = vmatpush1.msra.mxu0 0.0
        %1793 = vmatprep.subr.mxu0 0.0
        %1794 = vmatpush1.msra.mxu0 0.0
        %1795 = vmatprep.subr.mxu0 0.0
        %1796 = vmatpush1.msra.mxu0 0.0
        %1797 = vmatprep.subr.mxu0 0.0
        %1798 = vmatpush1.msra.mxu0 0.0
        %1799 = vmatprep.subr.mxu0 0.0
        %1800 = vmatpush1.msra.mxu0 0.0
        %1801 = vmatprep.subr.mxu0 0.0
        %1802 = vmatpush1.msra.mxu0 0.0
        %1803 = vmatprep.subr.mxu0 0.0
        %1804 = vmatpush1.msra.mxu0 0.0
        %1805 = vmatprep.subr.mxu0 0.0
        %1806 = vmatpush1.msra.mxu0 0.0
        %1807 = vmatprep.subr.mxu0 0.0
        %1808 = vmatpush1.msra.mxu0 0.0
        %1809 = vmatprep.subr.mxu0 0.0
        %1810 = vmatpush1.msra.mxu0 0.0
        %1811 = vmatprep.subr.mxu0 0.0
        %1812 = vmatpush1.msra.mxu0 0.0
        %1813 = vmatprep.subr.mxu0 0.0
        %1814 = vmatpush1.msra.mxu0 0.0
        %1815 = vmatprep.subr.mxu0 0.0
        %1816 = vmatpush1.msra.mxu0 0.0
        %1817 = vmatprep.subr.mxu0 0.0
        %1818 = vmatpush1.msra.mxu0 0.0
        %1819 = vmatprep.subr.mxu0 0.0
        %1820 = vmatpush1.msra.mxu0 0.0
        %1821 = vmatprep.subr.mxu0 0.0
        %1822 = vmatpush1.msra.mxu0 0.0
        %1823 = vmatprep.mubr.f32.mxu0 0.0
        %1824 = vmatmul.mubr.f32.gmra.mrb[0].mxu0 %v1197
        %v1825 = vpop.f32.mrb[0].mxu0
        %v1826 = vadd.f32 0.0, %v1825
        %v1827 = vpop.f32.mrb[0].mxu0
        %1828 = vdwg.mxu0
        %v1829 = vadd.f32 %v1620, %v1826
        %s1830 = sld [smem:[#allocation2 + $0x3]]
        %v1831 = vstv %s1830
        %v1832 = vmul.f32 %v483, %v1831
        %v1833 = vmul.f32 %v484, %v1831
        %v1834 = vmul.f32 %v485, %v1831
        %v1835 = vmul.f32 %v486, %v1831
        %v1836 = vmul.f32 %v487, %v1831
        %v1837 = vmul.f32 %v488, %v1831
        %v1838 = vmul.f32 %v489, %v1831
        %v1839 = vmul.f32 %v490, %v1831
        %v1840 = vmul.f32 %v491, %v1831
        %v1841 = vmul.f32 %v492, %v1831
        %v1842 = vmul.f32 %v493, %v1831
        %v1843 = vmul.f32 %v494, %v1831
        %v1844 = vmul.f32 %v495, %v1831
        %v1845 = vmul.f32 %v496, %v1831
        %v1846 = vmul.f32 %v497, %v1831
        %v1847 = vmul.f32 %v498, %v1831
        %s1848 = sld [smem:[#allocation2 + $0x83]]
        %v1849 = vstv %s1848
        %v1850 = vmul.f32 %v567, %v1849
        %v1851 = vmul.f32 %v568, %v1849
        %v1852 = vmul.f32 %v569, %v1849
        %v1853 = vmul.f32 %v570, %v1849
        %v1854 = vmul.f32 %v571, %v1849
        %v1855 = vmul.f32 %v572, %v1849
        %v1856 = vmul.f32 %v573, %v1849
        %v1857 = vmul.f32 %v574, %v1849
        %v1858 = vmul.f32 %v575, %v1849
        %v1859 = vmul.f32 %v576, %v1849
        %v1860 = vmul.f32 %v577, %v1849
        %v1861 = vmul.f32 %v578, %v1849
        %v1862 = vmul.f32 %v579, %v1849
        %v1863 = vmul.f32 %v580, %v1849
        %v1864 = vmul.f32 %v581, %v1849
        %v1865 = vmul.f32 %v582, %v1849
        %v1866 = vadd.f32 %v1832, %v1850
        %v1867 = vadd.f32 %v1833, %v1851
        %v1868 = vadd.f32 %v1834, %v1852
        %v1869 = vadd.f32 %v1835, %v1853
        %v1870 = vadd.f32 %v1836, %v1854
        %v1871 = vadd.f32 %v1837, %v1855
        %v1872 = vadd.f32 %v1838, %v1856
        %v1873 = vadd.f32 %v1839, %v1857
        %v1874 = vadd.f32 %v1840, %v1858
        %v1875 = vadd.f32 %v1841, %v1859
        %v1876 = vadd.f32 %v1842, %v1860
        %v1877 = vadd.f32 %v1843, %v1861
        %v1878 = vadd.f32 %v1844, %v1862
        %v1879 = vadd.f32 %v1845, %v1863
        %v1880 = vadd.f32 %v1846, %v1864
        %v1881 = vadd.f32 %v1847, %v1865
        %s1882 = sld [smem:[#allocation2 + $0x103]]
        %v1883 = vstv %s1882
        %v1884 = vmul.f32 %v651, %v1883
        %v1885 = vmul.f32 %v652, %v1883
        %v1886 = vmul.f32 %v653, %v1883
        %v1887 = vmul.f32 %v654, %v1883
        %v1888 = vmul.f32 %v655, %v1883
        %v1889 = vmul.f32 %v656, %v1883
        %v1890 = vmul.f32 %v657, %v1883
        %v1891 = vmul.f32 %v658, %v1883
        %v1892 = vmul.f32 %v659, %v1883
        %v1893 = vmul.f32 %v660, %v1883
        %v1894 = vmul.f32 %v661, %v1883
        %v1895 = vmul.f32 %v662, %v1883
        %v1896 = vmul.f32 %v663, %v1883
        %v1897 = vmul.f32 %v664, %v1883
        %v1898 = vmul.f32 %v665, %v1883
        %v1899 = vmul.f32 %v666, %v1883
        %v1900 = vadd.f32 %v1866, %v1884
        %v1901 = vadd.f32 %v1867, %v1885
        %v1902 = vadd.f32 %v1868, %v1886
        %v1903 = vadd.f32 %v1869, %v1887
        %v1904 = vadd.f32 %v1870, %v1888
        %v1905 = vadd.f32 %v1871, %v1889
        %v1906 = vadd.f32 %v1872, %v1890
        %v1907 = vadd.f32 %v1873, %v1891
        %v1908 = vadd.f32 %v1874, %v1892
        %v1909 = vadd.f32 %v1875, %v1893
        %v1910 = vadd.f32 %v1876, %v1894
        %v1911 = vadd.f32 %v1877, %v1895
        %v1912 = vadd.f32 %v1878, %v1896
        %v1913 = vadd.f32 %v1879, %v1897
        %v1914 = vadd.f32 %v1880, %v1898
        %v1915 = vadd.f32 %v1881, %v1899
        %s1916 = sld [smem:[#allocation5 + $0x3]]
        %v1917 = vstv %s1916
        %v1918 = vadd.f32 %v1900, %v1917
        %v1919 = vadd.f32 %v1901, %v1917
        %v1920 = vadd.f32 %v1902, %v1917
        %v1921 = vadd.f32 %v1903, %v1917
        %v1922 = vadd.f32 %v1904, %v1917
        %v1923 = vadd.f32 %v1905, %v1917
        %v1924 = vadd.f32 %v1906, %v1917
        %v1925 = vadd.f32 %v1907, %v1917
        %v1926 = vadd.f32 %v1908, %v1917
        %v1927 = vadd.f32 %v1909, %v1917
        %v1928 = vadd.f32 %v1910, %v1917
        %v1929 = vadd.f32 %v1911, %v1917
        %v1930 = vadd.f32 %v1912, %v1917
        %v1931 = vadd.f32 %v1913, %v1917
        %v1932 = vadd.f32 %v1914, %v1917
        %v1933 = vadd.f32 %v1915, %v1917
        %v1934 = vtanh.pop %v1918
        %v1935 = vtanh.pop %v1919
        %v1936 = vtanh.pop %v1920
        %v1937 = vtanh.pop %v1921
        %v1938 = vtanh.pop %v1922
        %v1939 = vtanh.pop %v1923
        %v1940 = vtanh.pop %v1924
        %v1941 = vtanh.pop %v1925
        %v1942 = vtanh.pop %v1926
        %v1943 = vtanh.pop %v1927
        %v1944 = vtanh.pop %v1928
        %v1945 = vtanh.pop %v1929
        %v1946 = vtanh.pop %v1930
        %v1947 = vtanh.pop %v1931
        %v1948 = vtanh.pop %v1932
        %v1949 = vtanh.pop %v1933
        %v1950 = vmul.f32 %v1934, %v779
        %v1951 = vmul.f32 %v1935, %v780
        %v1952 = vmul.f32 %v1936, %v781
        %v1953 = vmul.f32 %v1937, %v782
        %v1954 = vmul.f32 %v1938, %v783
        %v1955 = vmul.f32 %v1939, %v784
        %v1956 = vmul.f32 %v1940, %v785
        %v1957 = vmul.f32 %v1941, %v786
        %v1958 = vmul.f32 %v1942, %v787
        %v1959 = vmul.f32 %v1943, %v788
        %v1960 = vmul.f32 %v1944, %v789
        %v1961 = vmul.f32 %v1945, %v790
        %v1962 = vmul.f32 %v1946, %v791
        %v1963 = vmul.f32 %v1947, %v792
        %v1964 = vmul.f32 %v1948, %v793
        %v1965 = vmul.f32 %v1949, %v794
        %1966 = vmatprep.subr.mxu0 0.0
        %1967 = vmatpush1.msra.mxu0 %v1950
        %1968 = vmatprep.subr.mxu0 0.0
        %1969 = vmatpush1.msra.mxu0 %v1951
        %1970 = vmatprep.subr.mxu0 0.0
        %1971 = vmatpush1.msra.mxu0 %v1952
        %1972 = vmatprep.subr.mxu0 0.0
        %1973 = vmatpush1.msra.mxu0 %v1953
        %1974 = vmatprep.subr.mxu0 0.0
        %1975 = vmatpush1.msra.mxu0 %v1954
        %1976 = vmatprep.subr.mxu0 0.0
        %1977 = vmatpush1.msra.mxu0 %v1955
        %1978 = vmatprep.subr.mxu0 0.0
        %1979 = vmatpush1.msra.mxu0 %v1956
        %1980 = vmatprep.subr.mxu0 0.0
        %1981 = vmatpush1.msra.mxu0 %v1957
        %1982 = vmatprep.subr.mxu0 0.0
        %1983 = vmatpush1.msra.mxu0 %v1958
        %1984 = vmatprep.subr.mxu0 0.0
        %1985 = vmatpush1.msra.mxu0 %v1959
        %1986 = vmatprep.subr.mxu0 0.0
        %1987 = vmatpush1.msra.mxu0 %v1960
        %1988 = vmatprep.subr.mxu0 0.0
        %1989 = vmatpush1.msra.mxu0 %v1961
        %1990 = vmatprep.subr.mxu0 0.0
        %1991 = vmatpush1.msra.mxu0 %v1962
        %1992 = vmatprep.subr.mxu0 0.0
        %1993 = vmatpush1.msra.mxu0 %v1963
        %1994 = vmatprep.subr.mxu0 0.0
        %1995 = vmatpush1.msra.mxu0 %v1964
        %1996 = vmatprep.subr.mxu0 0.0
        %1997 = vmatpush1.msra.mxu0 %v1965
        %1998 = vmatprep.subr.mxu0 0.0
        %1999 = vmatpush1.msra.mxu0 0.0
        %2000 = vmatprep.subr.mxu0 0.0
        %2001 = vmatpush1.msra.mxu0 0.0
        %2002 = vmatprep.subr.mxu0 0.0
        %2003 = vmatpush1.msra.mxu0 0.0
        %2004 = vmatprep.subr.mxu0 0.0
        %2005 = vmatpush1.msra.mxu0 0.0
        %2006 = vmatprep.subr.mxu0 0.0
        %2007 = vmatpush1.msra.mxu0 0.0
        %2008 = vmatprep.subr.mxu0 0.0
        %2009 = vmatpush1.msra.mxu0 0.0
        %2010 = vmatprep.subr.mxu0 0.0
        %2011 = vmatpush1.msra.mxu0 0.0
        %2012 = vmatprep.subr.mxu0 0.0
        %2013 = vmatpush1.msra.mxu0 0.0
        %2014 = vmatprep.subr.mxu0 0.0
        %2015 = vmatpush1.msra.mxu0 0.0
        %2016 = vmatprep.subr.mxu0 0.0
        %2017 = vmatpush1.msra.mxu0 0.0
        %2018 = vmatprep.subr.mxu0 0.0
        %2019 = vmatpush1.msra.mxu0 0.0
        %2020 = vmatprep.subr.mxu0 0.0
        %2021 = vmatpush1.msra.mxu0 0.0
        %2022 = vmatprep.subr.mxu0 0.0
        %2023 = vmatpush1.msra.mxu0 0.0
        %2024 = vmatprep.subr.mxu0 0.0
        %2025 = vmatpush1.msra.mxu0 0.0
        %2026 = vmatprep.subr.mxu0 0.0
        %2027 = vmatpush1.msra.mxu0 0.0
        %2028 = vmatprep.subr.mxu0 0.0
        %2029 = vmatpush1.msra.mxu0 0.0
        %2030 = vmatprep.mubr.f32.mxu0 0.0
        %2031 = vmatmul.mubr.f32.gmra.mrb[0].mxu0 %v1198
        %v2032 = vpop.f32.mrb[0].mxu0
        %v2033 = vadd.f32 0.0, %v2032
        %v2034 = vpop.f32.mrb[0].mxu0
        %2035 = vdwg.mxu0
        %v2036 = vadd.f32 %v1829, %v2033
        %s2037 = sld [smem:[#allocation2 + $0x4]]
        %v2038 = vstv %s2037
        %v2039 = vmul.f32 %v483, %v2038
        %v2040 = vmul.f32 %v484, %v2038
        %v2041 = vmul.f32 %v485, %v2038
        %v2042 = vmul.f32 %v486, %v2038
        %v2043 = vmul.f32 %v487, %v2038
        %v2044 = vmul.f32 %v488, %v2038
        %v2045 = vmul.f32 %v489, %v2038
        %v2046 = vmul.f32 %v490, %v2038
        %v2047 = vmul.f32 %v491, %v2038
        %v2048 = vmul.f32 %v492, %v2038
        %v2049 = vmul.f32 %v493, %v2038
        %v2050 = vmul.f32 %v494, %v2038
        %v2051 = vmul.f32 %v495, %v2038
        %v2052 = vmul.f32 %v496, %v2038
        %v2053 = vmul.f32 %v497, %v2038
        %v2054 = vmul.f32 %v498, %v2038
        %s2055 = sld [smem:[#allocation2 + $0x84]]
        %v2056 = vstv %s2055
        %v2057 = vmul.f32 %v567, %v2056
        %v2058 = vmul.f32 %v568, %v2056
        %v2059 = vmul.f32 %v569, %v2056
        %v2060 = vmul.f32 %v570, %v2056
        %v2061 = vmul.f32 %v571, %v2056
        %v2062 = vmul.f32 %v572, %v2056
        %v2063 = vmul.f32 %v573, %v2056
        %v2064 = vmul.f32 %v574, %v2056
        %v2065 = vmul.f32 %v575, %v2056
        %v2066 = vmul.f32 %v576, %v2056
        %v2067 = vmul.f32 %v577, %v2056
        %v2068 = vmul.f32 %v578, %v2056
        %v2069 = vmul.f32 %v579, %v2056
        %v2070 = vmul.f32 %v580, %v2056
        %v2071 = vmul.f32 %v581, %v2056
        %v2072 = vmul.f32 %v582, %v2056
        %v2073 = vadd.f32 %v2039, %v2057
        %v2074 = vadd.f32 %v2040, %v2058
        %v2075 = vadd.f32 %v2041, %v2059
        %v2076 = vadd.f32 %v2042, %v2060
        %v2077 = vadd.f32 %v2043, %v2061
        %v2078 = vadd.f32 %v2044, %v2062
        %v2079 = vadd.f32 %v2045, %v2063
        %v2080 = vadd.f32 %v2046, %v2064
        %v2081 = vadd.f32 %v2047, %v2065
        %v2082 = vadd.f32 %v2048, %v2066
        %v2083 = vadd.f32 %v2049, %v2067
        %v2084 = vadd.f32 %v2050, %v2068
        %v2085 = vadd.f32 %v2051, %v2069
        %v2086 = vadd.f32 %v2052, %v2070
        %v2087 = vadd.f32 %v2053, %v2071
        %v2088 = vadd.f32 %v2054, %v2072
        %s2089 = sld [smem:[#allocation2 + $0x104]]
        %v2090 = vstv %s2089
        %v2091 = vmul.f32 %v651, %v2090
        %v2092 = vmul.f32 %v652, %v2090
        %v2093 = vmul.f32 %v653, %v2090
        %v2094 = vmul.f32 %v654, %v2090
        %v2095 = vmul.f32 %v655, %v2090
        %v2096 = vmul.f32 %v656, %v2090
        %v2097 = vmul.f32 %v657, %v2090
        %v2098 = vmul.f32 %v658, %v2090
        %v2099 = vmul.f32 %v659, %v2090
        %v2100 = vmul.f32 %v660, %v2090
        %v2101 = vmul.f32 %v661, %v2090
        %v2102 = vmul.f32 %v662, %v2090
        %v2103 = vmul.f32 %v663, %v2090
        %v2104 = vmul.f32 %v664, %v2090
        %v2105 = vmul.f32 %v665, %v2090
        %v2106 = vmul.f32 %v666, %v2090
        %v2107 = vadd.f32 %v2073, %v2091
        %v2108 = vadd.f32 %v2074, %v2092
        %v2109 = vadd.f32 %v2075, %v2093
        %v2110 = vadd.f32 %v2076, %v2094
        %v2111 = vadd.f32 %v2077, %v2095
        %v2112 = vadd.f32 %v2078, %v2096
        %v2113 = vadd.f32 %v2079, %v2097
        %v2114 = vadd.f32 %v2080, %v2098
        %v2115 = vadd.f32 %v2081, %v2099
        %v2116 = vadd.f32 %v2082, %v2100
        %v2117 = vadd.f32 %v2083, %v2101
        %v2118 = vadd.f32 %v2084, %v2102
        %v2119 = vadd.f32 %v2085, %v2103
        %v2120 = vadd.f32 %v2086, %v2104
        %v2121 = vadd.f32 %v2087, %v2105
        %v2122 = vadd.f32 %v2088, %v2106
        %s2123 = sld [smem:[#allocation5 + $0x4]]
        %v2124 = vstv %s2123
        %v2125 = vadd.f32 %v2107, %v2124
        %v2126 = vadd.f32 %v2108, %v2124
        %v2127 = vadd.f32 %v2109, %v2124
        %v2128 = vadd.f32 %v2110, %v2124
        %v2129 = vadd.f32 %v2111, %v2124
        %v2130 = vadd.f32 %v2112, %v2124
        %v2131 = vadd.f32 %v2113, %v2124
        %v2132 = vadd.f32 %v2114, %v2124
        %v2133 = vadd.f32 %v2115, %v2124
        %v2134 = vadd.f32 %v2116, %v2124
        %v2135 = vadd.f32 %v2117, %v2124
        %v2136 = vadd.f32 %v2118, %v2124
        %v2137 = vadd.f32 %v2119, %v2124
        %v2138 = vadd.f32 %v2120, %v2124
        %v2139 = vadd.f32 %v2121, %v2124
        %v2140 = vadd.f32 %v2122, %v2124
        %v2141 = vtanh.pop %v2125
        %v2142 = vtanh.pop %v2126
        %v2143 = vtanh.pop %v2127
        %v2144 = vtanh.pop %v2128
        %v2145 = vtanh.pop %v2129
        %v2146 = vtanh.pop %v2130
        %v2147 = vtanh.pop %v2131
        %v2148 = vtanh.pop %v2132
        %v2149 = vtanh.pop %v2133
        %v2150 = vtanh.pop %v2134
        %v2151 = vtanh.pop %v2135
        %v2152 = vtanh.pop %v2136
        %v2153 = vtanh.pop %v2137
        %v2154 = vtanh.pop %v2138
        %v2155 = vtanh.pop %v2139
        %v2156 = vtanh.pop %v2140
        %v2157 = vmul.f32 %v2141, %v779
        %v2158 = vmul.f32 %v2142, %v780
        %v2159 = vmul.f32 %v2143, %v781
        %v2160 = vmul.f32 %v2144, %v782
        %v2161 = vmul.f32 %v2145, %v783
        %v2162 = vmul.f32 %v2146, %v784
        %v2163 = vmul.f32 %v2147, %v785
        %v2164 = vmul.f32 %v2148, %v786
        %v2165 = vmul.f32 %v2149, %v787
        %v2166 = vmul.f32 %v2150, %v788
        %v2167 = vmul.f32 %v2151, %v789
        %v2168 = vmul.f32 %v2152, %v790
        %v2169 = vmul.f32 %v2153, %v791
        %v2170 = vmul.f32 %v2154, %v792
        %v2171 = vmul.f32 %v2155, %v793
        %v2172 = vmul.f32 %v2156, %v794
        %2173 = vmatprep.subr.mxu0 0.0
        %2174 = vmatpush1.msra.mxu0 %v2157
        %2175 = vmatprep.subr.mxu0 0.0
        %2176 = vmatpush1.msra.mxu0 %v2158
        %2177 = vmatprep.subr.mxu0 0.0
        %2178 = vmatpush1.msra.mxu0 %v2159
        %2179 = vmatprep.subr.mxu0 0.0
        %2180 = vmatpush1.msra.mxu0 %v2160
        %2181 = vmatprep.subr.mxu0 0.0
        %2182 = vmatpush1.msra.mxu0 %v2161
        %2183 = vmatprep.subr.mxu0 0.0
        %2184 = vmatpush1.msra.mxu0 %v2162
        %2185 = vmatprep.subr.mxu0 0.0
        %2186 = vmatpush1.msra.mxu0 %v2163
        %2187 = vmatprep.subr.mxu0 0.0
        %2188 = vmatpush1.msra.mxu0 %v2164
        %2189 = vmatprep.subr.mxu0 0.0
        %2190 = vmatpush1.msra.mxu0 %v2165
        %2191 = vmatprep.subr.mxu0 0.0
        %2192 = vmatpush1.msra.mxu0 %v2166
        %2193 = vmatprep.subr.mxu0 0.0
        %2194 = vmatpush1.msra.mxu0 %v2167
        %2195 = vmatprep.subr.mxu0 0.0
        %2196 = vmatpush1.msra.mxu0 %v2168
        %2197 = vmatprep.subr.mxu0 0.0
        %2198 = vmatpush1.msra.mxu0 %v2169
        %2199 = vmatprep.subr.mxu0 0.0
        %2200 = vmatpush1.msra.mxu0 %v2170
        %2201 = vmatprep.subr.mxu0 0.0
        %2202 = vmatpush1.msra.mxu0 %v2171
        %2203 = vmatprep.subr.mxu0 0.0
        %2204 = vmatpush1.msra.mxu0 %v2172
        %2205 = vmatprep.subr.mxu0 0.0
        %2206 = vmatpush1.msra.mxu0 0.0
        %2207 = vmatprep.subr.mxu0 0.0
        %2208 = vmatpush1.msra.mxu0 0.0
        %2209 = vmatprep.subr.mxu0 0.0
        %2210 = vmatpush1.msra.mxu0 0.0
        %2211 = vmatprep.subr.mxu0 0.0
        %2212 = vmatpush1.msra.mxu0 0.0
        %2213 = vmatprep.subr.mxu0 0.0
        %2214 = vmatpush1.msra.mxu0 0.0
        %2215 = vmatprep.subr.mxu0 0.0
        %2216 = vmatpush1.msra.mxu0 0.0
        %2217 = vmatprep.subr.mxu0 0.0
        %2218 = vmatpush1.msra.mxu0 0.0
        %2219 = vmatprep.subr.mxu0 0.0
        %2220 = vmatpush1.msra.mxu0 0.0
        %2221 = vmatprep.subr.mxu0 0.0
        %2222 = vmatpush1.msra.mxu0 0.0
        %2223 = vmatprep.subr.mxu0 0.0
        %2224 = vmatpush1.msra.mxu0 0.0
        %2225 = vmatprep.subr.mxu0 0.0
        %2226 = vmatpush1.msra.mxu0 0.0
        %2227 = vmatprep.subr.mxu0 0.0
        %2228 = vmatpush1.msra.mxu0 0.0
        %2229 = vmatprep.subr.mxu0 0.0
        %2230 = vmatpush1.msra.mxu0 0.0
        %2231 = vmatprep.subr.mxu0 0.0
        %2232 = vmatpush1.msra.mxu0 0.0
        %2233 = vmatprep.subr.mxu0 0.0
        %2234 = vmatpush1.msra.mxu0 0.0
        %2235 = vmatprep.subr.mxu0 0.0
        %2236 = vmatpush1.msra.mxu0 0.0
        %2237 = vmatprep.mubr.f32.mxu0 0.0
        %2238 = vmatmul.mubr.f32.gmra.mrb[0].mxu0 %v1199
        %v2239 = vpop.f32.mrb[0].mxu0
        %v2240 = vadd.f32 0.0, %v2239
        %v2241 = vpop.f32.mrb[0].mxu0
        %2242 = vdwg.mxu0
        %v2243 = vadd.f32 %v2036, %v2240
        %s2244 = sld [smem:[#allocation2 + $0x5]]
        %v2245 = vstv %s2244
        %v2246 = vmul.f32 %v483, %v2245
        %v2247 = vmul.f32 %v484, %v2245
        %v2248 = vmul.f32 %v485, %v2245
        %v2249 = vmul.f32 %v486, %v2245
        %v2250 = vmul.f32 %v487, %v2245
        %v2251 = vmul.f32 %v488, %v2245
        %v2252 = vmul.f32 %v489, %v2245
        %v2253 = vmul.f32 %v490, %v2245
        %v2254 = vmul.f32 %v491, %v2245
        %v2255 = vmul.f32 %v492, %v2245
        %v2256 = vmul.f32 %v493, %v2245
        %v2257 = vmul.f32 %v494, %v2245
        %v2258 = vmul.f32 %v495, %v2245
        %v2259 = vmul.f32 %v496, %v2245
        %v2260 = vmul.f32 %v497, %v2245
        %v2261 = vmul.f32 %v498, %v2245
        %s2262 = sld [smem:[#allocation2 + $0x85]]
        %v2263 = vstv %s2262
        %v2264 = vmul.f32 %v567, %v2263
        %v2265 = vmul.f32 %v568, %v2263
        %v2266 = vmul.f32 %v569, %v2263
        %v2267 = vmul.f32 %v570, %v2263
        %v2268 = vmul.f32 %v571, %v2263
        %v2269 = vmul.f32 %v572, %v2263
        %v2270 = vmul.f32 %v573, %v2263
        %v2271 = vmul.f32 %v574, %v2263
        %v2272 = vmul.f32 %v575, %v2263
        %v2273 = vmul.f32 %v576, %v2263
        %v2274 = vmul.f32 %v577, %v2263
        %v2275 = vmul.f32 %v578, %v2263
        %v2276 = vmul.f32 %v579, %v2263
        %v2277 = vmul.f32 %v580, %v2263
        %v2278 = vmul.f32 %v581, %v2263
        %v2279 = vmul.f32 %v582, %v2263
        %v2280 = vadd.f32 %v2246, %v2264
        %v2281 = vadd.f32 %v2247, %v2265
        %v2282 = vadd.f32 %v2248, %v2266
        %v2283 = vadd.f32 %v2249, %v2267
        %v2284 = vadd.f32 %v2250, %v2268
        %v2285 = vadd.f32 %v2251, %v2269
        %v2286 = vadd.f32 %v2252, %v2270
        %v2287 = vadd.f32 %v2253, %v2271
        %v2288 = vadd.f32 %v2254, %v2272
        %v2289 = vadd.f32 %v2255, %v2273
        %v2290 = vadd.f32 %v2256, %v2274
        %v2291 = vadd.f32 %v2257, %v2275
        %v2292 = vadd.f32 %v2258, %v2276
        %v2293 = vadd.f32 %v2259, %v2277
        %v2294 = vadd.f32 %v2260, %v2278
        %v2295 = vadd.f32 %v2261, %v2279
        %s2296 = sld [smem:[#allocation2 + $0x105]]
        %v2297 = vstv %s2296
        %v2298 = vmul.f32 %v651, %v2297
        %v2299 = vmul.f32 %v652, %v2297
        %v2300 = vmul.f32 %v653, %v2297
        %v2301 = vmul.f32 %v654, %v2297
        %v2302 = vmul.f32 %v655, %v2297
        %v2303 = vmul.f32 %v656, %v2297
        %v2304 = vmul.f32 %v657, %v2297
        %v2305 = vmul.f32 %v658, %v2297
        %v2306 = vmul.f32 %v659, %v2297
        %v2307 = vmul.f32 %v660, %v2297
        %v2308 = vmul.f32 %v661, %v2297
        %v2309 = vmul.f32 %v662, %v2297
        %v2310 = vmul.f32 %v663, %v2297
        %v2311 = vmul.f32 %v664, %v2297
        %v2312 = vmul.f32 %v665, %v2297
        %v2313 = vmul.f32 %v666, %v2297
        %v2314 = vadd.f32 %v2280, %v2298
        %v2315 = vadd.f32 %v2281, %v2299
        %v2316 = vadd.f32 %v2282, %v2300
        %v2317 = vadd.f32 %v2283, %v2301
        %v2318 = vadd.f32 %v2284, %v2302
        %v2319 = vadd.f32 %v2285, %v2303
        %v2320 = vadd.f32 %v2286, %v2304
        %v2321 = vadd.f32 %v2287, %v2305
        %v2322 = vadd.f32 %v2288, %v2306
        %v2323 = vadd.f32 %v2289, %v2307
        %v2324 = vadd.f32 %v2290, %v2308
        %v2325 = vadd.f32 %v2291, %v2309
        %v2326 = vadd.f32 %v2292, %v2310
        %v2327 = vadd.f32 %v2293, %v2311
        %v2328 = vadd.f32 %v2294, %v2312
        %v2329 = vadd.f32 %v2295, %v2313
        %s2330 = sld [smem:[#allocation5 + $0x5]]
        %v2331 = vstv %s2330
        %v2332 = vadd.f32 %v2314, %v2331
        %v2333 = vadd.f32 %v2315, %v2331
        %v2334 = vadd.f32 %v2316, %v2331
        %v2335 = vadd.f32 %v2317, %v2331
        %v2336 = vadd.f32 %v2318, %v2331
        %v2337 = vadd.f32 %v2319, %v2331
        %v2338 = vadd.f32 %v2320, %v2331
        %v2339 = vadd.f32 %v2321, %v2331
        %v2340 = vadd.f32 %v2322, %v2331
        %v2341 = vadd.f32 %v2323, %v2331
        %v2342 = vadd.f32 %v2324, %v2331
        %v2343 = vadd.f32 %v2325, %v2331
        %v2344 = vadd.f32 %v2326, %v2331
        %v2345 = vadd.f32 %v2327, %v2331
        %v2346 = vadd.f32 %v2328, %v2331
        %v2347 = vadd.f32 %v2329, %v2331
        %v2348 = vtanh.pop %v2332
        %v2349 = vtanh.pop %v2333
        %v2350 = vtanh.pop %v2334
        %v2351 = vtanh.pop %v2335
        %v2352 = vtanh.pop %v2336
        %v2353 = vtanh.pop %v2337
        %v2354 = vtanh.pop %v2338
        %v2355 = vtanh.pop %v2339
        %v2356 = vtanh.pop %v2340
        %v2357 = vtanh.pop %v2341
        %v2358 = vtanh.pop %v2342
        %v2359 = vtanh.pop %v2343
        %v2360 = vtanh.pop %v2344
        %v2361 = vtanh.pop %v2345
        %v2362 = vtanh.pop %v2346
        %v2363 = vtanh.pop %v2347
        %v2364 = vmul.f32 %v2348, %v779
        %v2365 = vmul.f32 %v2349, %v780
        %v2366 = vmul.f32 %v2350, %v781
        %v2367 = vmul.f32 %v2351, %v782
        %v2368 = vmul.f32 %v2352, %v783
        %v2369 = vmul.f32 %v2353, %v784
        %v2370 = vmul.f32 %v2354, %v785
        %v2371 = vmul.f32 %v2355, %v786
        %v2372 = vmul.f32 %v2356, %v787
        %v2373 = vmul.f32 %v2357, %v788
        %v2374 = vmul.f32 %v2358, %v789
        %v2375 = vmul.f32 %v2359, %v790
        %v2376 = vmul.f32 %v2360, %v791
        %v2377 = vmul.f32 %v2361, %v792
        %v2378 = vmul.f32 %v2362, %v793
        %v2379 = vmul.f32 %v2363, %v794
        %2380 = vmatprep.subr.mxu0 0.0
        %2381 = vmatpush1.msra.mxu0 %v2364
        %2382 = vmatprep.subr.mxu0 0.0
        %2383 = vmatpush1.msra.mxu0 %v2365
        %2384 = vmatprep.subr.mxu0 0.0
        %2385 = vmatpush1.msra.mxu0 %v2366
        %2386 = vmatprep.subr.mxu0 0.0
        %2387 = vmatpush1.msra.mxu0 %v2367
        %2388 = vmatprep.subr.mxu0 0.0
        %2389 = vmatpush1.msra.mxu0 %v2368
        %2390 = vmatprep.subr.mxu0 0.0
        %2391 = vmatpush1.msra.mxu0 %v2369
        %2392 = vmatprep.subr.mxu0 0.0
        %2393 = vmatpush1.msra.mxu0 %v2370
        %2394 = vmatprep.subr.mxu0 0.0
        %2395 = vmatpush1.msra.mxu0 %v2371
        %2396 = vmatprep.subr.mxu0 0.0
        %2397 = vmatpush1.msra.mxu0 %v2372
        %2398 = vmatprep.subr.mxu0 0.0
        %2399 = vmatpush1.msra.mxu0 %v2373
        %2400 = vmatprep.subr.mxu0 0.0
        %2401 = vmatpush1.msra.mxu0 %v2374
        %2402 = vmatprep.subr.mxu0 0.0
        %2403 = vmatpush1.msra.mxu0 %v2375
        %2404 = vmatprep.subr.mxu0 0.0
        %2405 = vmatpush1.msra.mxu0 %v2376
        %2406 = vmatprep.subr.mxu0 0.0
        %2407 = vmatpush1.msra.mxu0 %v2377
        %2408 = vmatprep.subr.mxu0 0.0
        %2409 = vmatpush1.msra.mxu0 %v2378
        %2410 = vmatprep.subr.mxu0 0.0
        %2411 = vmatpush1.msra.mxu0 %v2379
        %2412 = vmatprep.subr.mxu0 0.0
        %2413 = vmatpush1.msra.mxu0 0.0
        %2414 = vmatprep.subr.mxu0 0.0
        %2415 = vmatpush1.msra.mxu0 0.0
        %2416 = vmatprep.subr.mxu0 0.0
        %2417 = vmatpush1.msra.mxu0 0.0
        %2418 = vmatprep.subr.mxu0 0.0
        %2419 = vmatpush1.msra.mxu0 0.0
        %2420 = vmatprep.subr.mxu0 0.0
        %2421 = vmatpush1.msra.mxu0 0.0
        %2422 = vmatprep.subr.mxu0 0.0
        %2423 = vmatpush1.msra.mxu0 0.0
        %2424 = vmatprep.subr.mxu0 0.0
        %2425 = vmatpush1.msra.mxu0 0.0
        %2426 = vmatprep.subr.mxu0 0.0
        %2427 = vmatpush1.msra.mxu0 0.0
        %2428 = vmatprep.subr.mxu0 0.0
        %2429 = vmatpush1.msra.mxu0 0.0
        %2430 = vmatprep.subr.mxu0 0.0
        %2431 = vmatpush1.msra.mxu0 0.0
        %2432 = vmatprep.subr.mxu0 0.0
        %2433 = vmatpush1.msra.mxu0 0.0
        %2434 = vmatprep.subr.mxu0 0.0
        %2435 = vmatpush1.msra.mxu0 0.0
        %2436 = vmatprep.subr.mxu0 0.0
        %2437 = vmatpush1.msra.mxu0 0.0
        %2438 = vmatprep.subr.mxu0 0.0
        %2439 = vmatpush1.msra.mxu0 0.0
        %2440 = vmatprep.subr.mxu0 0.0
        %2441 = vmatpush1.msra.mxu0 0.0
        %2442 = vmatprep.subr.mxu0 0.0
        %2443 = vmatpush1.msra.mxu0 0.0
        %2444 = vmatprep.mubr.f32.mxu0 0.0
        %2445 = vmatmul.mubr.f32.gmra.mrb[0].mxu0 %v1200
        %v2446 = vpop.f32.mrb[0].mxu0
        %v2447 = vadd.f32 0.0, %v2446
        %v2448 = vpop.f32.mrb[0].mxu0
        %2449 = vdwg.mxu0
        %v2450 = vadd.f32 %v2243, %v2447
        %s2451 = sld [smem:[#allocation2 + $0x6]]
        %v2452 = vstv %s2451
        %v2453 = vmul.f32 %v483, %v2452
        %v2454 = vmul.f32 %v484, %v2452
        %v2455 = vmul.f32 %v485, %v2452
        %v2456 = vmul.f32 %v486, %v2452
        %v2457 = vmul.f32 %v487, %v2452
        %v2458 = vmul.f32 %v488, %v2452
        %v2459 = vmul.f32 %v489, %v2452
        %v2460 = vmul.f32 %v490, %v2452
        %v2461 = vmul.f32 %v491, %v2452
        %v2462 = vmul.f32 %v492, %v2452
        %v2463 = vmul.f32 %v493, %v2452
        %v2464 = vmul.f32 %v494, %v2452
        %v2465 = vmul.f32 %v495, %v2452
        %v2466 = vmul.f32 %v496, %v2452
        %v2467 = vmul.f32 %v497, %v2452
        %v2468 = vmul.f32 %v498, %v2452
        %s2469 = sld [smem:[#allocation2 + $0x86]]
        %v2470 = vstv %s2469
        %v2471 = vmul.f32 %v567, %v2470
        %v2472 = vmul.f32 %v568, %v2470
        %v2473 = vmul.f32 %v569, %v2470
        %v2474 = vmul.f32 %v570, %v2470
        %v2475 = vmul.f32 %v571, %v2470
        %v2476 = vmul.f32 %v572, %v2470
        %v2477 = vmul.f32 %v573, %v2470
        %v2478 = vmul.f32 %v574, %v2470
        %v2479 = vmul.f32 %v575, %v2470
        %v2480 = vmul.f32 %v576, %v2470
        %v2481 = vmul.f32 %v577, %v2470
        %v2482 = vmul.f32 %v578, %v2470
        %v2483 = vmul.f32 %v579, %v2470
        %v2484 = vmul.f32 %v580, %v2470
        %v2485 = vmul.f32 %v581, %v2470
        %v2486 = vmul.f32 %v582, %v2470
        %v2487 = vadd.f32 %v2453, %v2471
        %v2488 = vadd.f32 %v2454, %v2472
        %v2489 = vadd.f32 %v2455, %v2473
        %v2490 = vadd.f32 %v2456, %v2474
        %v2491 = vadd.f32 %v2457, %v2475
        %v2492 = vadd.f32 %v2458, %v2476
        %v2493 = vadd.f32 %v2459, %v2477
        %v2494 = vadd.f32 %v2460, %v2478
        %v2495 = vadd.f32 %v2461, %v2479
        %v2496 = vadd.f32 %v2462, %v2480
        %v2497 = vadd.f32 %v2463, %v2481
        %v2498 = vadd.f32 %v2464, %v2482
        %v2499 = vadd.f32 %v2465, %v2483
        %v2500 = vadd.f32 %v2466, %v2484
        %v2501 = vadd.f32 %v2467, %v2485
        %v2502 = vadd.f32 %v2468, %v2486
        %s2503 = sld [smem:[#allocation2 + $0x106]]
        %v2504 = vstv %s2503
        %v2505 = vmul.f32 %v651, %v2504
        %v2506 = vmul.f32 %v652, %v2504
        %v2507 = vmul.f32 %v653, %v2504
        %v2508 = vmul.f32 %v654, %v2504
        %v2509 = vmul.f32 %v655, %v2504
        %v2510 = vmul.f32 %v656, %v2504
        %v2511 = vmul.f32 %v657, %v2504
        %v2512 = vmul.f32 %v658, %v2504
        %v2513 = vmul.f32 %v659, %v2504
        %v2514 = vmul.f32 %v660, %v2504
        %v2515 = vmul.f32 %v661, %v2504
        %v2516 = vmul.f32 %v662, %v2504
        %v2517 = vmul.f32 %v663, %v2504
        %v2518 = vmul.f32 %v664, %v2504
        %v2519 = vmul.f32 %v665, %v2504
        %v2520 = vmul.f32 %v666, %v2504
        %v2521 = vadd.f32 %v2487, %v2505
        %v2522 = vadd.f32 %v2488, %v2506
        %v2523 = vadd.f32 %v2489, %v2507
        %v2524 = vadd.f32 %v2490, %v2508
        %v2525 = vadd.f32 %v2491, %v2509
        %v2526 = vadd.f32 %v2492, %v2510
        %v2527 = vadd.f32 %v2493, %v2511
        %v2528 = vadd.f32 %v2494, %v2512
        %v2529 = vadd.f32 %v2495, %v2513
        %v2530 = vadd.f32 %v2496, %v2514
        %v2531 = vadd.f32 %v2497, %v2515
        %v2532 = vadd.f32 %v2498, %v2516
        %v2533 = vadd.f32 %v2499, %v2517
        %v2534 = vadd.f32 %v2500, %v2518
        %v2535 = vadd.f32 %v2501, %v2519
        %v2536 = vadd.f32 %v2502, %v2520
        %s2537 = sld [smem:[#allocation5 + $0x6]]
        %v2538 = vstv %s2537
        %v2539 = vadd.f32 %v2521, %v2538
        %v2540 = vadd.f32 %v2522, %v2538
        %v2541 = vadd.f32 %v2523, %v2538
        %v2542 = vadd.f32 %v2524, %v2538
        %v2543 = vadd.f32 %v2525, %v2538
        %v2544 = vadd.f32 %v2526, %v2538
        %v2545 = vadd.f32 %v2527, %v2538
        %v2546 = vadd.f32 %v2528, %v2538
        %v2547 = vadd.f32 %v2529, %v2538
        %v2548 = vadd.f32 %v2530, %v2538
        %v2549 = vadd.f32 %v2531, %v2538
        %v2550 = vadd.f32 %v2532, %v2538
        %v2551 = vadd.f32 %v2533, %v2538
        %v2552 = vadd.f32 %v2534, %v2538
        %v2553 = vadd.f32 %v2535, %v2538
        %v2554 = vadd.f32 %v2536, %v2538
        %v2555 = vtanh.pop %v2539
        %v2556 = vtanh.pop %v2540
        %v2557 = vtanh.pop %v2541
        %v2558 = vtanh.pop %v2542
        %v2559 = vtanh.pop %v2543
        %v2560 = vtanh.pop %v2544
        %v2561 = vtanh.pop %v2545
        %v2562 = vtanh.pop %v2546
        %v2563 = vtanh.pop %v2547
        %v2564 = vtanh.pop %v2548
        %v2565 = vtanh.pop %v2549
        %v2566 = vtanh.pop %v2550
        %v2567 = vtanh.pop %v2551
        %v2568 = vtanh.pop %v2552
        %v2569 = vtanh.pop %v2553
        %v2570 = vtanh.pop %v2554
        %v2571 = vmul.f32 %v2555, %v779
        %v2572 = vmul.f32 %v2556, %v780
        %v2573 = vmul.f32 %v2557, %v781
        %v2574 = vmul.f32 %v2558, %v782
        %v2575 = vmul.f32 %v2559, %v783
        %v2576 = vmul.f32 %v2560, %v784
        %v2577 = vmul.f32 %v2561, %v785
        %v2578 = vmul.f32 %v2562, %v786
        %v2579 = vmul.f32 %v2563, %v787
        %v2580 = vmul.f32 %v2564, %v788
        %v2581 = vmul.f32 %v2565, %v789
        %v2582 = vmul.f32 %v2566, %v790
        %v2583 = vmul.f32 %v2567, %v791
        %v2584 = vmul.f32 %v2568, %v792
        %v2585 = vmul.f32 %v2569, %v793
        %v2586 = vmul.f32 %v2570, %v794
        %2587 = vmatprep.subr.mxu0 0.0
        %2588 = vmatpush1.msra.mxu0 %v2571
        %2589 = vmatprep.subr.mxu0 0.0
        %2590 = vmatpush1.msra.mxu0 %v2572
        %2591 = vmatprep.subr.mxu0 0.0
        %2592 = vmatpush1.msra.mxu0 %v2573
        %2593 = vmatprep.subr.mxu0 0.0
        %2594 = vmatpush1.msra.mxu0 %v2574
        %2595 = vmatprep.subr.mxu0 0.0
        %2596 = vmatpush1.msra.mxu0 %v2575
        %2597 = vmatprep.subr.mxu0 0.0
        %2598 = vmatpush1.msra.mxu0 %v2576
        %2599 = vmatprep.subr.mxu0 0.0
        %2600 = vmatpush1.msra.mxu0 %v2577
        %2601 = vmatprep.subr.mxu0 0.0
        %2602 = vmatpush1.msra.mxu0 %v2578
        %2603 = vmatprep.subr.mxu0 0.0
        %2604 = vmatpush1.msra.mxu0 %v2579
        %2605 = vmatprep.subr.mxu0 0.0
        %2606 = vmatpush1.msra.mxu0 %v2580
        %2607 = vmatprep.subr.mxu0 0.0
        %2608 = vmatpush1.msra.mxu0 %v2581
        %2609 = vmatprep.subr.mxu0 0.0
        %2610 = vmatpush1.msra.mxu0 %v2582
        %2611 = vmatprep.subr.mxu0 0.0
        %2612 = vmatpush1.msra.mxu0 %v2583
        %2613 = vmatprep.subr.mxu0 0.0
        %2614 = vmatpush1.msra.mxu0 %v2584
        %2615 = vmatprep.subr.mxu0 0.0
        %2616 = vmatpush1.msra.mxu0 %v2585
        %2617 = vmatprep.subr.mxu0 0.0
        %2618 = vmatpush1.msra.mxu0 %v2586
        %2619 = vmatprep.subr.mxu0 0.0
        %2620 = vmatpush1.msra.mxu0 0.0
        %2621 = vmatprep.subr.mxu0 0.0
        %2622 = vmatpush1.msra.mxu0 0.0
        %2623 = vmatprep.subr.mxu0 0.0
        %2624 = vmatpush1.msra.mxu0 0.0
        %2625 = vmatprep.subr.mxu0 0.0
        %2626 = vmatpush1.msra.mxu0 0.0
        %2627 = vmatprep.subr.mxu0 0.0
        %2628 = vmatpush1.msra.mxu0 0.0
        %2629 = vmatprep.subr.mxu0 0.0
        %2630 = vmatpush1.msra.mxu0 0.0
        %2631 = vmatprep.subr.mxu0 0.0
        %2632 = vmatpush1.msra.mxu0 0.0
        %2633 = vmatprep.subr.mxu0 0.0
        %2634 = vmatpush1.msra.mxu0 0.0
        %2635 = vmatprep.subr.mxu0 0.0
        %2636 = vmatpush1.msra.mxu0 0.0
        %2637 = vmatprep.subr.mxu0 0.0
        %2638 = vmatpush1.msra.mxu0 0.0
        %2639 = vmatprep.subr.mxu0 0.0
        %2640 = vmatpush1.msra.mxu0 0.0
        %2641 = vmatprep.subr.mxu0 0.0
        %2642 = vmatpush1.msra.mxu0 0.0
        %2643 = vmatprep.subr.mxu0 0.0
        %2644 = vmatpush1.msra.mxu0 0.0
        %2645 = vmatprep.subr.mxu0 0.0
        %2646 = vmatpush1.msra.mxu0 0.0
        %2647 = vmatprep.subr.mxu0 0.0
        %2648 = vmatpush1.msra.mxu0 0.0
        %2649 = vmatprep.subr.mxu0 0.0
        %2650 = vmatpush1.msra.mxu0 0.0
        %2651 = vmatprep.mubr.f32.mxu0 0.0
        %2652 = vmatmul.mubr.f32.gmra.mrb[0].mxu0 %v1201
        %v2653 = vpop.f32.mrb[0].mxu0
        %v2654 = vadd.f32 0.0, %v2653
        %v2655 = vpop.f32.mrb[0].mxu0
        %2656 = vdwg.mxu0
        %v2657 = vadd.f32 %v2450, %v2654
        %s2658 = sld [smem:[#allocation2 + $0x7]]
        %v2659 = vstv %s2658
        %v2660 = vmul.f32 %v483, %v2659
        %v2661 = vmul.f32 %v484, %v2659
        %v2662 = vmul.f32 %v485, %v2659
        %v2663 = vmul.f32 %v486, %v2659
        %v2664 = vmul.f32 %v487, %v2659
        %v2665 = vmul.f32 %v488, %v2659
        %v2666 = vmul.f32 %v489, %v2659
        %v2667 = vmul.f32 %v490, %v2659
        %v2668 = vmul.f32 %v491, %v2659
        %v2669 = vmul.f32 %v492, %v2659
        %v2670 = vmul.f32 %v493, %v2659
        %v2671 = vmul.f32 %v494, %v2659
        %v2672 = vmul.f32 %v495, %v2659
        %v2673 = vmul.f32 %v496, %v2659
        %v2674 = vmul.f32 %v497, %v2659
        %v2675 = vmul.f32 %v498, %v2659
        %s2676 = sld [smem:[#allocation2 + $0x87]]
        %v2677 = vstv %s2676
        %v2678 = vmul.f32 %v567, %v2677
        %v2679 = vmul.f32 %v568, %v2677
        %v2680 = vmul.f32 %v569, %v2677
        %v2681 = vmul.f32 %v570, %v2677
        %v2682 = vmul.f32 %v571, %v2677
        %v2683 = vmul.f32 %v572, %v2677
        %v2684 = vmul.f32 %v573, %v2677
        %v2685 = vmul.f32 %v574, %v2677
        %v2686 = vmul.f32 %v575, %v2677
        %v2687 = vmul.f32 %v576, %v2677
        %v2688 = vmul.f32 %v577, %v2677
        %v2689 = vmul.f32 %v578, %v2677
        %v2690 = vmul.f32 %v579, %v2677
        %v2691 = vmul.f32 %v580, %v2677
        %v2692 = vmul.f32 %v581, %v2677
        %v2693 = vmul.f32 %v582, %v2677
        %v2694 = vadd.f32 %v2660, %v2678
        %v2695 = vadd.f32 %v2661, %v2679
        %v2696 = vadd.f32 %v2662, %v2680
        %v2697 = vadd.f32 %v2663, %v2681
        %v2698 = vadd.f32 %v2664, %v2682
        %v2699 = vadd.f32 %v2665, %v2683
        %v2700 = vadd.f32 %v2666, %v2684
        %v2701 = vadd.f32 %v2667, %v2685
        %v2702 = vadd.f32 %v2668, %v2686
        %v2703 = vadd.f32 %v2669, %v2687
        %v2704 = vadd.f32 %v2670, %v2688
        %v2705 = vadd.f32 %v2671, %v2689
        %v2706 = vadd.f32 %v2672, %v2690
        %v2707 = vadd.f32 %v2673, %v2691
        %v2708 = vadd.f32 %v2674, %v2692
        %v2709 = vadd.f32 %v2675, %v2693
        %s2710 = sld [smem:[#allocation2 + $0x107]]
        %v2711 = vstv %s2710
        %v2712 = vmul.f32 %v651, %v2711
        %v2713 = vmul.f32 %v652, %v2711
        %v2714 = vmul.f32 %v653, %v2711
        %v2715 = vmul.f32 %v654, %v2711
        %v2716 = vmul.f32 %v655, %v2711
        %v2717 = vmul.f32 %v656, %v2711
        %v2718 = vmul.f32 %v657, %v2711
        %v2719 = vmul.f32 %v658, %v2711
        %v2720 = vmul.f32 %v659, %v2711
        %v2721 = vmul.f32 %v660, %v2711
        %v2722 = vmul.f32 %v661, %v2711
        %v2723 = vmul.f32 %v662, %v2711
        %v2724 = vmul.f32 %v663, %v2711
        %v2725 = vmul.f32 %v664, %v2711
        %v2726 = vmul.f32 %v665, %v2711
        %v2727 = vmul.f32 %v666, %v2711
        %v2728 = vadd.f32 %v2694, %v2712
        %v2729 = vadd.f32 %v2695, %v2713
        %v2730 = vadd.f32 %v2696, %v2714
        %v2731 = vadd.f32 %v2697, %v2715
        %v2732 = vadd.f32 %v2698, %v2716
        %v2733 = vadd.f32 %v2699, %v2717
        %v2734 = vadd.f32 %v2700, %v2718
        %v2735 = vadd.f32 %v2701, %v2719
        %v2736 = vadd.f32 %v2702, %v2720
        %v2737 = vadd.f32 %v2703, %v2721
        %v2738 = vadd.f32 %v2704, %v2722
        %v2739 = vadd.f32 %v2705, %v2723
        %v2740 = vadd.f32 %v2706, %v2724
        %v2741 = vadd.f32 %v2707, %v2725
        %v2742 = vadd.f32 %v2708, %v2726
        %v2743 = vadd.f32 %v2709, %v2727
        %s2744 = sld [smem:[#allocation5 + $0x7]]
        %v2745 = vstv %s2744
        %v2746 = vadd.f32 %v2728, %v2745
        %v2747 = vadd.f32 %v2729, %v2745
        %v2748 = vadd.f32 %v2730, %v2745
        %v2749 = vadd.f32 %v2731, %v2745
        %v2750 = vadd.f32 %v2732, %v2745
        %v2751 = vadd.f32 %v2733, %v2745
        %v2752 = vadd.f32 %v2734, %v2745
        %v2753 = vadd.f32 %v2735, %v2745
        %v2754 = vadd.f32 %v2736, %v2745
        %v2755 = vadd.f32 %v2737, %v2745
        %v2756 = vadd.f32 %v2738, %v2745
        %v2757 = vadd.f32 %v2739, %v2745
        %v2758 = vadd.f32 %v2740, %v2745
        %v2759 = vadd.f32 %v2741, %v2745
        %v2760 = vadd.f32 %v2742, %v2745
        %v2761 = vadd.f32 %v2743, %v2745
        %v2762 = vtanh.pop %v2746
        %v2763 = vtanh.pop %v2747
        %v2764 = vtanh.pop %v2748
        %v2765 = vtanh.pop %v2749
        %v2766 = vtanh.pop %v2750
        %v2767 = vtanh.pop %v2751
        %v2768 = vtanh.pop %v2752
        %v2769 = vtanh.pop %v2753
        %v2770 = vtanh.pop %v2754
        %v2771 = vtanh.pop %v2755
        %v2772 = vtanh.pop %v2756
        %v2773 = vtanh.pop %v2757
        %v2774 = vtanh.pop %v2758
        %v2775 = vtanh.pop %v2759
        %v2776 = vtanh.pop %v2760
        %v2777 = vtanh.pop %v2761
        %v2778 = vmul.f32 %v2762, %v779
        %v2779 = vmul.f32 %v2763, %v780
        %v2780 = vmul.f32 %v2764, %v781
        %v2781 = vmul.f32 %v2765, %v782
        %v2782 = vmul.f32 %v2766, %v783
        %v2783 = vmul.f32 %v2767, %v784
        %v2784 = vmul.f32 %v2768, %v785
        %v2785 = vmul.f32 %v2769, %v786
        %v2786 = vmul.f32 %v2770, %v787
        %v2787 = vmul.f32 %v2771, %v788
        %v2788 = vmul.f32 %v2772, %v789
        %v2789 = vmul.f32 %v2773, %v790
        %v2790 = vmul.f32 %v2774, %v791
        %v2791 = vmul.f32 %v2775, %v792
        %v2792 = vmul.f32 %v2776, %v793
        %v2793 = vmul.f32 %v2777, %v794
        %2794 = vmatprep.subr.mxu0 0.0
        %2795 = vmatpush1.msra.mxu0 %v2778
        %2796 = vmatprep.subr.mxu0 0.0
        %2797 = vmatpush1.msra.mxu0 %v2779
        %2798 = vmatprep.subr.mxu0 0.0
        %2799 = vmatpush1.msra.mxu0 %v2780
        %2800 = vmatprep.subr.mxu0 0.0
        %2801 = vmatpush1.msra.mxu0 %v2781
        %2802 = vmatprep.subr.mxu0 0.0
        %2803 = vmatpush1.msra.mxu0 %v2782
        %2804 = vmatprep.subr.mxu0 0.0
        %2805 = vmatpush1.msra.mxu0 %v2783
        %2806 = vmatprep.subr.mxu0 0.0
        %2807 = vmatpush1.msra.mxu0 %v2784
        %2808 = vmatprep.subr.mxu0 0.0
        %2809 = vmatpush1.msra.mxu0 %v2785
        %2810 = vmatprep.subr.mxu0 0.0
        %2811 = vmatpush1.msra.mxu0 %v2786
        %2812 = vmatprep.subr.mxu0 0.0
        %2813 = vmatpush1.msra.mxu0 %v2787
        %2814 = vmatprep.subr.mxu0 0.0
        %2815 = vmatpush1.msra.mxu0 %v2788
        %2816 = vmatprep.subr.mxu0 0.0
        %2817 = vmatpush1.msra.mxu0 %v2789
        %2818 = vmatprep.subr.mxu0 0.0
        %2819 = vmatpush1.msra.mxu0 %v2790
        %2820 = vmatprep.subr.mxu0 0.0
        %2821 = vmatpush1.msra.mxu0 %v2791
        %2822 = vmatprep.subr.mxu0 0.0
        %2823 = vmatpush1.msra.mxu0 %v2792
        %2824 = vmatprep.subr.mxu0 0.0
        %2825 = vmatpush1.msra.mxu0 %v2793
        %2826 = vmatprep.subr.mxu0 0.0
        %2827 = vmatpush1.msra.mxu0 0.0
        %2828 = vmatprep.subr.mxu0 0.0
        %2829 = vmatpush1.msra.mxu0 0.0
        %2830 = vmatprep.subr.mxu0 0.0
        %2831 = vmatpush1.msra.mxu0 0.0
        %2832 = vmatprep.subr.mxu0 0.0
        %2833 = vmatpush1.msra.mxu0 0.0
        %2834 = vmatprep.subr.mxu0 0.0
        %2835 = vmatpush1.msra.mxu0 0.0
        %2836 = vmatprep.subr.mxu0 0.0
        %2837 = vmatpush1.msra.mxu0 0.0
        %2838 = vmatprep.subr.mxu0 0.0
        %2839 = vmatpush1.msra.mxu0 0.0
        %2840 = vmatprep.subr.mxu0 0.0
        %2841 = vmatpush1.msra.mxu0 0.0
        %2842 = vmatprep.subr.mxu0 0.0
        %2843 = vmatpush1.msra.mxu0 0.0
        %2844 = vmatprep.subr.mxu0 0.0
        %2845 = vmatpush1.msra.mxu0 0.0
        %2846 = vmatprep.subr.mxu0 0.0
        %2847 = vmatpush1.msra.mxu0 0.0
        %2848 = vmatprep.subr.mxu0 0.0
        %2849 = vmatpush1.msra.mxu0 0.0
        %2850 = vmatprep.subr.mxu0 0.0
        %2851 = vmatpush1.msra.mxu0 0.0
        %2852 = vmatprep.subr.mxu0 0.0
        %2853 = vmatpush1.msra.mxu0 0.0
        %2854 = vmatprep.subr.mxu0 0.0
        %2855 = vmatpush1.msra.mxu0 0.0
        %2856 = vmatprep.subr.mxu0 0.0
        %2857 = vmatpush1.msra.mxu0 0.0
        %2858 = vmatprep.mubr.f32.mxu0 0.0
        %2859 = vmatmul.mubr.f32.gmra.mrb[0].mxu0 %v1202
        %v2860 = vpop.f32.mrb[0].mxu0
        %v2861 = vadd.f32 0.0, %v2860
        %v2862 = vpop.f32.mrb[0].mxu0
        %2863 = vdwg.mxu0
        %v2864 = vadd.f32 %v2657, %v2861
        %s2865 = sld [smem:[#allocation2 + $0x8]]
        %v2866 = vstv %s2865
        %v2867 = vmul.f32 %v483, %v2866
        %v2868 = vmul.f32 %v484, %v2866
        %v2869 = vmul.f32 %v485, %v2866
        %v2870 = vmul.f32 %v486, %v2866
        %v2871 = vmul.f32 %v487, %v2866
        %v2872 = vmul.f32 %v488, %v2866
        %v2873 = vmul.f32 %v489, %v2866
        %v2874 = vmul.f32 %v490, %v2866
        %v2875 = vmul.f32 %v491, %v2866
        %v2876 = vmul.f32 %v492, %v2866
        %v2877 = vmul.f32 %v493, %v2866
        %v2878 = vmul.f32 %v494, %v2866
        %v2879 = vmul.f32 %v495, %v2866
        %v2880 = vmul.f32 %v496, %v2866
        %v2881 = vmul.f32 %v497, %v2866
        %v2882 = vmul.f32 %v498, %v2866
        %s2883 = sld [smem:[#allocation2 + $0x88]]
        %v2884 = vstv %s2883
        %v2885 = vmul.f32 %v567, %v2884
        %v2886 = vmul.f32 %v568, %v2884
        %v2887 = vmul.f32 %v569, %v2884
        %v2888 = vmul.f32 %v570, %v2884
        %v2889 = vmul.f32 %v571, %v2884
        %v2890 = vmul.f32 %v572, %v2884
        %v2891 = vmul.f32 %v573, %v2884
        %v2892 = vmul.f32 %v574, %v2884
        %v2893 = vmul.f32 %v575, %v2884
        %v2894 = vmul.f32 %v576, %v2884
        %v2895 = vmul.f32 %v577, %v2884
        %v2896 = vmul.f32 %v578, %v2884
        %v2897 = vmul.f32 %v579, %v2884
        %v2898 = vmul.f32 %v580, %v2884
        %v2899 = vmul.f32 %v581, %v2884
        %v2900 = vmul.f32 %v582, %v2884
        %v2901 = vadd.f32 %v2867, %v2885
        %v2902 = vadd.f32 %v2868, %v2886
        %v2903 = vadd.f32 %v2869, %v2887
        %v2904 = vadd.f32 %v2870, %v2888
        %v2905 = vadd.f32 %v2871, %v2889
        %v2906 = vadd.f32 %v2872, %v2890
        %v2907 = vadd.f32 %v2873, %v2891
        %v2908 = vadd.f32 %v2874, %v2892
        %v2909 = vadd.f32 %v2875, %v2893
        %v2910 = vadd.f32 %v2876, %v2894
        %v2911 = vadd.f32 %v2877, %v2895
        %v2912 = vadd.f32 %v2878, %v2896
        %v2913 = vadd.f32 %v2879, %v2897
        %v2914 = vadd.f32 %v2880, %v2898
        %v2915 = vadd.f32 %v2881, %v2899
        %v2916 = vadd.f32 %v2882, %v2900
        %s2917 = sld [smem:[#allocation2 + $0x108]]
        %v2918 = vstv %s2917
        %v2919 = vmul.f32 %v651, %v2918
        %v2920 = vmul.f32 %v652, %v2918
        %v2921 = vmul.f32 %v653, %v2918
        %v2922 = vmul.f32 %v654, %v2918
        %v2923 = vmul.f32 %v655, %v2918
        %v2924 = vmul.f32 %v656, %v2918
        %v2925 = vmul.f32 %v657, %v2918
        %v2926 = vmul.f32 %v658, %v2918
        %v2927 = vmul.f32 %v659, %v2918
        %v2928 = vmul.f32 %v660, %v2918
        %v2929 = vmul.f32 %v661, %v2918
        %v2930 = vmul.f32 %v662, %v2918
        %v2931 = vmul.f32 %v663, %v2918
        %v2932 = vmul.f32 %v664, %v2918
        %v2933 = vmul.f32 %v665, %v2918
        %v2934 = vmul.f32 %v666, %v2918
        %v2935 = vadd.f32 %v2901, %v2919
        %v2936 = vadd.f32 %v2902, %v2920
        %v2937 = vadd.f32 %v2903, %v2921
        %v2938 = vadd.f32 %v2904, %v2922
        %v2939 = vadd.f32 %v2905, %v2923
        %v2940 = vadd.f32 %v2906, %v2924
        %v2941 = vadd.f32 %v2907, %v2925
        %v2942 = vadd.f32 %v2908, %v2926
        %v2943 = vadd.f32 %v2909, %v2927
        %v2944 = vadd.f32 %v2910, %v2928
        %v2945 = vadd.f32 %v2911, %v2929
        %v2946 = vadd.f32 %v2912, %v2930
        %v2947 = vadd.f32 %v2913, %v2931
        %v2948 = vadd.f32 %v2914, %v2932
        %v2949 = vadd.f32 %v2915, %v2933
        %v2950 = vadd.f32 %v2916, %v2934
        %s2951 = sld [smem:[#allocation5 + $0x8]]
        %v2952 = vstv %s2951
        %v2953 = vadd.f32 %v2935, %v2952
        %v2954 = vadd.f32 %v2936, %v2952
        %v2955 = vadd.f32 %v2937, %v2952
        %v2956 = vadd.f32 %v2938, %v2952
        %v2957 = vadd.f32 %v2939, %v2952
        %v2958 = vadd.f32 %v2940, %v2952
        %v2959 = vadd.f32 %v2941, %v2952
        %v2960 = vadd.f32 %v2942, %v2952
        %v2961 = vadd.f32 %v2943, %v2952
        %v2962 = vadd.f32 %v2944, %v2952
        %v2963 = vadd.f32 %v2945, %v2952
        %v2964 = vadd.f32 %v2946, %v2952
        %v2965 = vadd.f32 %v2947, %v2952
        %v2966 = vadd.f32 %v2948, %v2952
        %v2967 = vadd.f32 %v2949, %v2952
        %v2968 = vadd.f32 %v2950, %v2952
        %v2969 = vtanh.pop %v2953
        %v2970 = vtanh.pop %v2954
        %v2971 = vtanh.pop %v2955
        %v2972 = vtanh.pop %v2956
        %v2973 = vtanh.pop %v2957
        %v2974 = vtanh.pop %v2958
        %v2975 = vtanh.pop %v2959
        %v2976 = vtanh.pop %v2960
        %v2977 = vtanh.pop %v2961
        %v2978 = vtanh.pop %v2962
        %v2979 = vtanh.pop %v2963
        %v2980 = vtanh.pop %v2964
        %v2981 = vtanh.pop %v2965
        %v2982 = vtanh.pop %v2966
        %v2983 = vtanh.pop %v2967
        %v2984 = vtanh.pop %v2968
        %v2985 = vmul.f32 %v2969, %v779
        %v2986 = vmul.f32 %v2970, %v780
        %v2987 = vmul.f32 %v2971, %v781
        %v2988 = vmul.f32 %v2972, %v782
        %v2989 = vmul.f32 %v2973, %v783
        %v2990 = vmul.f32 %v2974, %v784
        %v2991 = vmul.f32 %v2975, %v785
        %v2992 = vmul.f32 %v2976, %v786
        %v2993 = vmul.f32 %v2977, %v787
        %v2994 = vmul.f32 %v2978, %v788
        %v2995 = vmul.f32 %v2979, %v789
        %v2996 = vmul.f32 %v2980, %v790
        %v2997 = vmul.f32 %v2981, %v791
        %v2998 = vmul.f32 %v2982, %v792
        %v2999 = vmul.f32 %v2983, %v793
        %v3000 = vmul.f32 %v2984, %v794
        %3001 = vmatprep.subr.mxu0 0.0
        %3002 = vmatpush1.msra.mxu0 %v2985
        %3003 = vmatprep.subr.mxu0 0.0
        %3004 = vmatpush1.msra.mxu0 %v2986
        %3005 = vmatprep.subr.mxu0 0.0
        %3006 = vmatpush1.msra.mxu0 %v2987
        %3007 = vmatprep.subr.mxu0 0.0
        %3008 = vmatpush1.msra.mxu0 %v2988
        %3009 = vmatprep.subr.mxu0 0.0
        %3010 = vmatpush1.msra.mxu0 %v2989
        %3011 = vmatprep.subr.mxu0 0.0
        %3012 = vmatpush1.msra.mxu0 %v2990
        %3013 = vmatprep.subr.mxu0 0.0
        %3014 = vmatpush1.msra.mxu0 %v2991
        %3015 = vmatprep.subr.mxu0 0.0
        %3016 = vmatpush1.msra.mxu0 %v2992
        %3017 = vmatprep.subr.mxu0 0.0
        %3018 = vmatpush1.msra.mxu0 %v2993
        %3019 = vmatprep.subr.mxu0 0.0
        %3020 = vmatpush1.msra.mxu0 %v2994
        %3021 = vmatprep.subr.mxu0 0.0
        %3022 = vmatpush1.msra.mxu0 %v2995
        %3023 = vmatprep.subr.mxu0 0.0
        %3024 = vmatpush1.msra.mxu0 %v2996
        %3025 = vmatprep.subr.mxu0 0.0
        %3026 = vmatpush1.msra.mxu0 %v2997
        %3027 = vmatprep.subr.mxu0 0.0
        %3028 = vmatpush1.msra.mxu0 %v2998
        %3029 = vmatprep.subr.mxu0 0.0
        %3030 = vmatpush1.msra.mxu0 %v2999
        %3031 = vmatprep.subr.mxu0 0.0
        %3032 = vmatpush1.msra.mxu0 %v3000
        %3033 = vmatprep.subr.mxu0 0.0
        %3034 = vmatpush1.msra.mxu0 0.0
        %3035 = vmatprep.subr.mxu0 0.0
        %3036 = vmatpush1.msra.mxu0 0.0
        %3037 = vmatprep.subr.mxu0 0.0
        %3038 = vmatpush1.msra.mxu0 0.0
        %3039 = vmatprep.subr.mxu0 0.0
        %3040 = vmatpush1.msra.mxu0 0.0
        %3041 = vmatprep.subr.mxu0 0.0
        %3042 = vmatpush1.msra.mxu0 0.0
        %3043 = vmatprep.subr.mxu0 0.0
        %3044 = vmatpush1.msra.mxu0 0.0
        %3045 = vmatprep.subr.mxu0 0.0
        %3046 = vmatpush1.msra.mxu0 0.0
        %3047 = vmatprep.subr.mxu0 0.0
        %3048 = vmatpush1.msra.mxu0 0.0
        %3049 = vmatprep.subr.mxu0 0.0
        %3050 = vmatpush1.msra.mxu0 0.0
        %3051 = vmatprep.subr.mxu0 0.0
        %3052 = vmatpush1.msra.mxu0 0.0
        %3053 = vmatprep.subr.mxu0 0.0
        %3054 = vmatpush1.msra.mxu0 0.0
        %3055 = vmatprep.subr.mxu0 0.0
        %3056 = vmatpush1.msra.mxu0 0.0
        %3057 = vmatprep.subr.mxu0 0.0
        %3058 = vmatpush1.msra.mxu0 0.0
        %3059 = vmatprep.subr.mxu0 0.0
        %3060 = vmatpush1.msra.mxu0 0.0
        %3061 = vmatprep.subr.mxu0 0.0
        %3062 = vmatpush1.msra.mxu0 0.0
        %3063 = vmatprep.subr.mxu0 0.0
        %3064 = vmatpush1.msra.mxu0 0.0
        %3065 = vmatprep.mubr.f32.mxu0 0.0
        %3066 = vmatmul.mubr.f32.gmra.mrb[0].mxu0 %v1203
        %v3067 = vpop.f32.mrb[0].mxu0
        %v3068 = vadd.f32 0.0, %v3067
        %v3069 = vpop.f32.mrb[0].mxu0
        %3070 = vdwg.mxu0
        %v3071 = vadd.f32 %v2864, %v3068
        %s3072 = sld [smem:[#allocation2 + $0x9]]
        %v3073 = vstv %s3072
        %v3074 = vmul.f32 %v483, %v3073
        %v3075 = vmul.f32 %v484, %v3073
        %v3076 = vmul.f32 %v485, %v3073
        %v3077 = vmul.f32 %v486, %v3073
        %v3078 = vmul.f32 %v487, %v3073
        %v3079 = vmul.f32 %v488, %v3073
        %v3080 = vmul.f32 %v489, %v3073
        %v3081 = vmul.f32 %v490, %v3073
        %v3082 = vmul.f32 %v491, %v3073
        %v3083 = vmul.f32 %v492, %v3073
        %v3084 = vmul.f32 %v493, %v3073
        %v3085 = vmul.f32 %v494, %v3073
        %v3086 = vmul.f32 %v495, %v3073
        %v3087 = vmul.f32 %v496, %v3073
        %v3088 = vmul.f32 %v497, %v3073
        %v3089 = vmul.f32 %v498, %v3073
        %s3090 = sld [smem:[#allocation2 + $0x89]]
        %v3091 = vstv %s3090
        %v3092 = vmul.f32 %v567, %v3091
        %v3093 = vmul.f32 %v568, %v3091
        %v3094 = vmul.f32 %v569, %v3091
        %v3095 = vmul.f32 %v570, %v3091
        %v3096 = vmul.f32 %v571, %v3091
        %v3097 = vmul.f32 %v572, %v3091
        %v3098 = vmul.f32 %v573, %v3091
        %v3099 = vmul.f32 %v574, %v3091
        %v3100 = vmul.f32 %v575, %v3091
        %v3101 = vmul.f32 %v576, %v3091
        %v3102 = vmul.f32 %v577, %v3091
        %v3103 = vmul.f32 %v578, %v3091
        %v3104 = vmul.f32 %v579, %v3091
        %v3105 = vmul.f32 %v580, %v3091
        %v3106 = vmul.f32 %v581, %v3091
        %v3107 = vmul.f32 %v582, %v3091
        %v3108 = vadd.f32 %v3074, %v3092
        %v3109 = vadd.f32 %v3075, %v3093
        %v3110 = vadd.f32 %v3076, %v3094
        %v3111 = vadd.f32 %v3077, %v3095
        %v3112 = vadd.f32 %v3078, %v3096
        %v3113 = vadd.f32 %v3079, %v3097
        %v3114 = vadd.f32 %v3080, %v3098
        %v3115 = vadd.f32 %v3081, %v3099
        %v3116 = vadd.f32 %v3082, %v3100
        %v3117 = vadd.f32 %v3083, %v3101
        %v3118 = vadd.f32 %v3084, %v3102
        %v3119 = vadd.f32 %v3085, %v3103
        %v3120 = vadd.f32 %v3086, %v3104
        %v3121 = vadd.f32 %v3087, %v3105
        %v3122 = vadd.f32 %v3088, %v3106
        %v3123 = vadd.f32 %v3089, %v3107
        %s3124 = sld [smem:[#allocation2 + $0x109]]
        %v3125 = vstv %s3124
        %v3126 = vmul.f32 %v651, %v3125
        %v3127 = vmul.f32 %v652, %v3125
        %v3128 = vmul.f32 %v653, %v3125
        %v3129 = vmul.f32 %v654, %v3125
        %v3130 = vmul.f32 %v655, %v3125
        %v3131 = vmul.f32 %v656, %v3125
        %v3132 = vmul.f32 %v657, %v3125
        %v3133 = vmul.f32 %v658, %v3125
        %v3134 = vmul.f32 %v659, %v3125
        %v3135 = vmul.f32 %v660, %v3125
        %v3136 = vmul.f32 %v661, %v3125
        %v3137 = vmul.f32 %v662, %v3125
        %v3138 = vmul.f32 %v663, %v3125
        %v3139 = vmul.f32 %v664, %v3125
        %v3140 = vmul.f32 %v665, %v3125
        %v3141 = vmul.f32 %v666, %v3125
        %v3142 = vadd.f32 %v3108, %v3126
        %v3143 = vadd.f32 %v3109, %v3127
        %v3144 = vadd.f32 %v3110, %v3128
        %v3145 = vadd.f32 %v3111, %v3129
        %v3146 = vadd.f32 %v3112, %v3130
        %v3147 = vadd.f32 %v3113, %v3131
        %v3148 = vadd.f32 %v3114, %v3132
        %v3149 = vadd.f32 %v3115, %v3133
        %v3150 = vadd.f32 %v3116, %v3134
        %v3151 = vadd.f32 %v3117, %v3135
        %v3152 = vadd.f32 %v3118, %v3136
        %v3153 = vadd.f32 %v3119, %v3137
        %v3154 = vadd.f32 %v3120, %v3138
        %v3155 = vadd.f32 %v3121, %v3139
        %v3156 = vadd.f32 %v3122, %v3140
        %v3157 = vadd.f32 %v3123, %v3141
        %s3158 = sld [smem:[#allocation5 + $0x9]]
        %v3159 = vstv %s3158
        %v3160 = vadd.f32 %v3142, %v3159
        %v3161 = vadd.f32 %v3143, %v3159
        %v3162 = vadd.f32 %v3144, %v3159
        %v3163 = vadd.f32 %v3145, %v3159
        %v3164 = vadd.f32 %v3146, %v3159
        %v3165 = vadd.f32 %v3147, %v3159
        %v3166 = vadd.f32 %v3148, %v3159
        %v3167 = vadd.f32 %v3149, %v3159
        %v3168 = vadd.f32 %v3150, %v3159
        %v3169 = vadd.f32 %v3151, %v3159
        %v3170 = vadd.f32 %v3152, %v3159
        %v3171 = vadd.f32 %v3153, %v3159
        %v3172 = vadd.f32 %v3154, %v3159
        %v3173 = vadd.f32 %v3155, %v3159
        %v3174 = vadd.f32 %v3156, %v3159
        %v3175 = vadd.f32 %v3157, %v3159
        %v3176 = vtanh.pop %v3160
        %v3177 = vtanh.pop %v3161
        %v3178 = vtanh.pop %v3162
        %v3179 = vtanh.pop %v3163
        %v3180 = vtanh.pop %v3164
        %v3181 = vtanh.pop %v3165
        %v3182 = vtanh.pop %v3166
        %v3183 = vtanh.pop %v3167
        %v3184 = vtanh.pop %v3168
        %v3185 = vtanh.pop %v3169
        %v3186 = vtanh.pop %v3170
        %v3187 = vtanh.pop %v3171
        %v3188 = vtanh.pop %v3172
        %v3189 = vtanh.pop %v3173
        %v3190 = vtanh.pop %v3174
        %v3191 = vtanh.pop %v3175
        %v3192 = vmul.f32 %v3176, %v779
        %v3193 = vmul.f32 %v3177, %v780
        %v3194 = vmul.f32 %v3178, %v781
        %v3195 = vmul.f32 %v3179, %v782
        %v3196 = vmul.f32 %v3180, %v783
        %v3197 = vmul.f32 %v3181, %v784
        %v3198 = vmul.f32 %v3182, %v785
        %v3199 = vmul.f32 %v3183, %v786
        %v3200 = vmul.f32 %v3184, %v787
        %v3201 = vmul.f32 %v3185, %v788
        %v3202 = vmul.f32 %v3186, %v789
        %v3203 = vmul.f32 %v3187, %v790
        %v3204 = vmul.f32 %v3188, %v791
        %v3205 = vmul.f32 %v3189, %v792
        %v3206 = vmul.f32 %v3190, %v793
        %v3207 = vmul.f32 %v3191, %v794
        %3208 = vmatprep.subr.mxu0 0.0
        %3209 = vmatpush1.msra.mxu0 %v3192
        %3210 = vmatprep.subr.mxu0 0.0
        %3211 = vmatpush1.msra.mxu0 %v3193
        %3212 = vmatprep.subr.mxu0 0.0
        %3213 = vmatpush1.msra.mxu0 %v3194
        %3214 = vmatprep.subr.mxu0 0.0
        %3215 = vmatpush1.msra.mxu0 %v3195
        %3216 = vmatprep.subr.mxu0 0.0
        %3217 = vmatpush1.msra.mxu0 %v3196
        %3218 = vmatprep.subr.mxu0 0.0
        %3219 = vmatpush1.msra.mxu0 %v3197
        %3220 = vmatprep.subr.mxu0 0.0
        %3221 = vmatpush1.msra.mxu0 %v3198
        %3222 = vmatprep.subr.mxu0 0.0
        %3223 = vmatpush1.msra.mxu0 %v3199
        %3224 = vmatprep.subr.mxu0 0.0
        %3225 = vmatpush1.msra.mxu0 %v3200
        %3226 = vmatprep.subr.mxu0 0.0
        %3227 = vmatpush1.msra.mxu0 %v3201
        %3228 = vmatprep.subr.mxu0 0.0
        %3229 = vmatpush1.msra.mxu0 %v3202
        %3230 = vmatprep.subr.mxu0 0.0
        %3231 = vmatpush1.msra.mxu0 %v3203
        %3232 = vmatprep.subr.mxu0 0.0
        %3233 = vmatpush1.msra.mxu0 %v3204
        %3234 = vmatprep.subr.mxu0 0.0
        %3235 = vmatpush1.msra.mxu0 %v3205
        %3236 = vmatprep.subr.mxu0 0.0
        %3237 = vmatpush1.msra.mxu0 %v3206
        %3238 = vmatprep.subr.mxu0 0.0
        %3239 = vmatpush1.msra.mxu0 %v3207
        %3240 = vmatprep.subr.mxu0 0.0
        %3241 = vmatpush1.msra.mxu0 0.0
        %3242 = vmatprep.subr.mxu0 0.0
        %3243 = vmatpush1.msra.mxu0 0.0
        %3244 = vmatprep.subr.mxu0 0.0
        %3245 = vmatpush1.msra.mxu0 0.0
        %3246 = vmatprep.subr.mxu0 0.0
        %3247 = vmatpush1.msra.mxu0 0.0
        %3248 = vmatprep.subr.mxu0 0.0
        %3249 = vmatpush1.msra.mxu0 0.0
        %3250 = vmatprep.subr.mxu0 0.0
        %3251 = vmatpush1.msra.mxu0 0.0
        %3252 = vmatprep.subr.mxu0 0.0
        %3253 = vmatpush1.msra.mxu0 0.0
        %3254 = vmatprep.subr.mxu0 0.0
        %3255 = vmatpush1.msra.mxu0 0.0
        %3256 = vmatprep.subr.mxu0 0.0
        %3257 = vmatpush1.msra.mxu0 0.0
        %3258 = vmatprep.subr.mxu0 0.0
        %3259 = vmatpush1.msra.mxu0 0.0
        %3260 = vmatprep.subr.mxu0 0.0
        %3261 = vmatpush1.msra.mxu0 0.0
        %3262 = vmatprep.subr.mxu0 0.0
        %3263 = vmatpush1.msra.mxu0 0.0
        %3264 = vmatprep.subr.mxu0 0.0
        %3265 = vmatpush1.msra.mxu0 0.0
        %3266 = vmatprep.subr.mxu0 0.0
        %3267 = vmatpush1.msra.mxu0 0.0
        %3268 = vmatprep.subr.mxu0 0.0
        %3269 = vmatpush1.msra.mxu0 0.0
        %3270 = vmatprep.subr.mxu0 0.0
        %3271 = vmatpush1.msra.mxu0 0.0
        %3272 = vmatprep.mubr.f32.mxu0 0.0
        %3273 = vmatmul.mubr.f32.gmra.mrb[0].mxu0 %v1204
        %v3274 = vpop.f32.mrb[0].mxu0
        %v3275 = vadd.f32 0.0, %v3274
        %v3276 = vpop.f32.mrb[0].mxu0
        %3277 = vdwg.mxu0
        %v3278 = vadd.f32 %v3071, %v3275
        %s3279 = sld [smem:[#allocation2 + $0xa]]
        %v3280 = vstv %s3279
        %v3281 = vmul.f32 %v483, %v3280
        %v3282 = vmul.f32 %v484, %v3280
        %v3283 = vmul.f32 %v485, %v3280
        %v3284 = vmul.f32 %v486, %v3280
        %v3285 = vmul.f32 %v487, %v3280
        %v3286 = vmul.f32 %v488, %v3280
        %v3287 = vmul.f32 %v489, %v3280
        %v3288 = vmul.f32 %v490, %v3280
        %v3289 = vmul.f32 %v491, %v3280
        %v3290 = vmul.f32 %v492, %v3280
        %v3291 = vmul.f32 %v493, %v3280
        %v3292 = vmul.f32 %v494, %v3280
        %v3293 = vmul.f32 %v495, %v3280
        %v3294 = vmul.f32 %v496, %v3280
        %v3295 = vmul.f32 %v497, %v3280
        %v3296 = vmul.f32 %v498, %v3280
        %s3297 = sld [smem:[#allocation2 + $0x8a]]
        %v3298 = vstv %s3297
        %v3299 = vmul.f32 %v567, %v3298
        %v3300 = vmul.f32 %v568, %v3298
        %v3301 = vmul.f32 %v569, %v3298
        %v3302 = vmul.f32 %v570, %v3298
        %v3303 = vmul.f32 %v571, %v3298
        %v3304 = vmul.f32 %v572, %v3298
        %v3305 = vmul.f32 %v573, %v3298
        %v3306 = vmul.f32 %v574, %v3298
        %v3307 = vmul.f32 %v575, %v3298
        %v3308 = vmul.f32 %v576, %v3298
        %v3309 = vmul.f32 %v577, %v3298
        %v3310 = vmul.f32 %v578, %v3298
        %v3311 = vmul.f32 %v579, %v3298
        %v3312 = vmul.f32 %v580, %v3298
        %v3313 = vmul.f32 %v581, %v3298
        %v3314 = vmul.f32 %v582, %v3298
        %v3315 = vadd.f32 %v3281, %v3299
        %v3316 = vadd.f32 %v3282, %v3300
        %v3317 = vadd.f32 %v3283, %v3301
        %v3318 = vadd.f32 %v3284, %v3302
        %v3319 = vadd.f32 %v3285, %v3303
        %v3320 = vadd.f32 %v3286, %v3304
        %v3321 = vadd.f32 %v3287, %v3305
        %v3322 = vadd.f32 %v3288, %v3306
        %v3323 = vadd.f32 %v3289, %v3307
        %v3324 = vadd.f32 %v3290, %v3308
        %v3325 = vadd.f32 %v3291, %v3309
        %v3326 = vadd.f32 %v3292, %v3310
        %v3327 = vadd.f32 %v3293, %v3311
        %v3328 = vadd.f32 %v3294, %v3312
        %v3329 = vadd.f32 %v3295, %v3313
        %v3330 = vadd.f32 %v3296, %v3314
        %s3331 = sld [smem:[#allocation2 + $0x10a]]
        %v3332 = vstv %s3331
        %v3333 = vmul.f32 %v651, %v3332
        %v3334 = vmul.f32 %v652, %v3332
        %v3335 = vmul.f32 %v653, %v3332
        %v3336 = vmul.f32 %v654, %v3332
        %v3337 = vmul.f32 %v655, %v3332
        %v3338 = vmul.f32 %v656, %v3332
        %v3339 = vmul.f32 %v657, %v3332
        %v3340 = vmul.f32 %v658, %v3332
        %v3341 = vmul.f32 %v659, %v3332
        %v3342 = vmul.f32 %v660, %v3332
        %v3343 = vmul.f32 %v661, %v3332
        %v3344 = vmul.f32 %v662, %v3332
        %v3345 = vmul.f32 %v663, %v3332
        %v3346 = vmul.f32 %v664, %v3332
        %v3347 = vmul.f32 %v665, %v3332
        %v3348 = vmul.f32 %v666, %v3332
        %v3349 = vadd.f32 %v3315, %v3333
        %v3350 = vadd.f32 %v3316, %v3334
        %v3351 = vadd.f32 %v3317, %v3335
        %v3352 = vadd.f32 %v3318, %v3336
        %v3353 = vadd.f32 %v3319, %v3337
        %v3354 = vadd.f32 %v3320, %v3338
        %v3355 = vadd.f32 %v3321, %v3339
        %v3356 = vadd.f32 %v3322, %v3340
        %v3357 = vadd.f32 %v3323, %v3341
        %v3358 = vadd.f32 %v3324, %v3342
        %v3359 = vadd.f32 %v3325, %v3343
        %v3360 = vadd.f32 %v3326, %v3344
        %v3361 = vadd.f32 %v3327, %v3345
        %v3362 = vadd.f32 %v3328, %v3346
        %v3363 = vadd.f32 %v3329, %v3347
        %v3364 = vadd.f32 %v3330, %v3348
        %s3365 = sld [smem:[#allocation5 + $0xa]]
        %v3366 = vstv %s3365
        %v3367 = vadd.f32 %v3349, %v3366
        %v3368 = vadd.f32 %v3350, %v3366
        %v3369 = vadd.f32 %v3351, %v3366
        %v3370 = vadd.f32 %v3352, %v3366
        %v3371 = vadd.f32 %v3353, %v3366
        %v3372 = vadd.f32 %v3354, %v3366
        %v3373 = vadd.f32 %v3355, %v3366
        %v3374 = vadd.f32 %v3356, %v3366
        %v3375 = vadd.f32 %v3357, %v3366
        %v3376 = vadd.f32 %v3358, %v3366
        %v3377 = vadd.f32 %v3359, %v3366
        %v3378 = vadd.f32 %v3360, %v3366
        %v3379 = vadd.f32 %v3361, %v3366
        %v3380 = vadd.f32 %v3362, %v3366
        %v3381 = vadd.f32 %v3363, %v3366
        %v3382 = vadd.f32 %v3364, %v3366
        %v3383 = vtanh.pop %v3367
        %v3384 = vtanh.pop %v3368
        %v3385 = vtanh.pop %v3369
        %v3386 = vtanh.pop %v3370
        %v3387 = vtanh.pop %v3371
        %v3388 = vtanh.pop %v3372
        %v3389 = vtanh.pop %v3373
        %v3390 = vtanh.pop %v3374
        %v3391 = vtanh.pop %v3375
        %v3392 = vtanh.pop %v3376
        %v3393 = vtanh.pop %v3377
        %v3394 = vtanh.pop %v3378
        %v3395 = vtanh.pop %v3379
        %v3396 = vtanh.pop %v3380
        %v3397 = vtanh.pop %v3381
        %v3398 = vtanh.pop %v3382
        %v3399 = vmul.f32 %v3383, %v779
        %v3400 = vmul.f32 %v3384, %v780
        %v3401 = vmul.f32 %v3385, %v781
        %v3402 = vmul.f32 %v3386, %v782
        %v3403 = vmul.f32 %v3387, %v783
        %v3404 = vmul.f32 %v3388, %v784
        %v3405 = vmul.f32 %v3389, %v785
        %v3406 = vmul.f32 %v3390, %v786
        %v3407 = vmul.f32 %v3391, %v787
        %v3408 = vmul.f32 %v3392, %v788
        %v3409 = vmul.f32 %v3393, %v789
        %v3410 = vmul.f32 %v3394, %v790
        %v3411 = vmul.f32 %v3395, %v791
        %v3412 = vmul.f32 %v3396, %v792
        %v3413 = vmul.f32 %v3397, %v793
        %v3414 = vmul.f32 %v3398, %v794
        %3415 = vmatprep.subr.mxu0 0.0
        %3416 = vmatpush1.msra.mxu0 %v3399
        %3417 = vmatprep.subr.mxu0 0.0
        %3418 = vmatpush1.msra.mxu0 %v3400
        %3419 = vmatprep.subr.mxu0 0.0
        %3420 = vmatpush1.msra.mxu0 %v3401
        %3421 = vmatprep.subr.mxu0 0.0
        %3422 = vmatpush1.msra.mxu0 %v3402
        %3423 = vmatprep.subr.mxu0 0.0
        %3424 = vmatpush1.msra.mxu0 %v3403
        %3425 = vmatprep.subr.mxu0 0.0
        %3426 = vmatpush1.msra.mxu0 %v3404
        %3427 = vmatprep.subr.mxu0 0.0
        %3428 = vmatpush1.msra.mxu0 %v3405
        %3429 = vmatprep.subr.mxu0 0.0
        %3430 = vmatpush1.msra.mxu0 %v3406
        %3431 = vmatprep.subr.mxu0 0.0
        %3432 = vmatpush1.msra.mxu0 %v3407
        %3433 = vmatprep.subr.mxu0 0.0
        %3434 = vmatpush1.msra.mxu0 %v3408
        %3435 = vmatprep.subr.mxu0 0.0
        %3436 = vmatpush1.msra.mxu0 %v3409
        %3437 = vmatprep.subr.mxu0 0.0
        %3438 = vmatpush1.msra.mxu0 %v3410
        %3439 = vmatprep.subr.mxu0 0.0
        %3440 = vmatpush1.msra.mxu0 %v3411
        %3441 = vmatprep.subr.mxu0 0.0
        %3442 = vmatpush1.msra.mxu0 %v3412
        %3443 = vmatprep.subr.mxu0 0.0
        %3444 = vmatpush1.msra.mxu0 %v3413
        %3445 = vmatprep.subr.mxu0 0.0
        %3446 = vmatpush1.msra.mxu0 %v3414
        %3447 = vmatprep.subr.mxu0 0.0
        %3448 = vmatpush1.msra.mxu0 0.0
        %3449 = vmatprep.subr.mxu0 0.0
        %3450 = vmatpush1.msra.mxu0 0.0
        %3451 = vmatprep.subr.mxu0 0.0
        %3452 = vmatpush1.msra.mxu0 0.0
        %3453 = vmatprep.subr.mxu0 0.0
        %3454 = vmatpush1.msra.mxu0 0.0
        %3455 = vmatprep.subr.mxu0 0.0
        %3456 = vmatpush1.msra.mxu0 0.0
        %3457 = vmatprep.subr.mxu0 0.0
        %3458 = vmatpush1.msra.mxu0 0.0
        %3459 = vmatprep.subr.mxu0 0.0
        %3460 = vmatpush1.msra.mxu0 0.0
        %3461 = vmatprep.subr.mxu0 0.0
        %3462 = vmatpush1.msra.mxu0 0.0
        %3463 = vmatprep.subr.mxu0 0.0
        %3464 = vmatpush1.msra.mxu0 0.0
        %3465 = vmatprep.subr.mxu0 0.0
        %3466 = vmatpush1.msra.mxu0 0.0
        %3467 = vmatprep.subr.mxu0 0.0
        %3468 = vmatpush1.msra.mxu0 0.0
        %3469 = vmatprep.subr.mxu0 0.0
        %3470 = vmatpush1.msra.mxu0 0.0
        %3471 = vmatprep.subr.mxu0 0.0
        %3472 = vmatpush1.msra.mxu0 0.0
        %3473 = vmatprep.subr.mxu0 0.0
        %3474 = vmatpush1.msra.mxu0 0.0
        %3475 = vmatprep.subr.mxu0 0.0
        %3476 = vmatpush1.msra.mxu0 0.0
        %3477 = vmatprep.subr.mxu0 0.0
        %3478 = vmatpush1.msra.mxu0 0.0
        %3479 = vmatprep.mubr.f32.mxu0 0.0
        %3480 = vmatmul.mubr.f32.gmra.mrb[0].mxu0 %v1205
        %v3481 = vpop.f32.mrb[0].mxu0
        %v3482 = vadd.f32 0.0, %v3481
        %v3483 = vpop.f32.mrb[0].mxu0
        %3484 = vdwg.mxu0
        %v3485 = vadd.f32 %v3278, %v3482
        %s3486 = sld [smem:[#allocation2 + $0xb]]
        %v3487 = vstv %s3486
        %v3488 = vmul.f32 %v483, %v3487
        %v3489 = vmul.f32 %v484, %v3487
        %v3490 = vmul.f32 %v485, %v3487
        %v3491 = vmul.f32 %v486, %v3487
        %v3492 = vmul.f32 %v487, %v3487
        %v3493 = vmul.f32 %v488, %v3487
        %v3494 = vmul.f32 %v489, %v3487
        %v3495 = vmul.f32 %v490, %v3487
        %v3496 = vmul.f32 %v491, %v3487
        %v3497 = vmul.f32 %v492, %v3487
        %v3498 = vmul.f32 %v493, %v3487
        %v3499 = vmul.f32 %v494, %v3487
        %v3500 = vmul.f32 %v495, %v3487
        %v3501 = vmul.f32 %v496, %v3487
        %v3502 = vmul.f32 %v497, %v3487
        %v3503 = vmul.f32 %v498, %v3487
        %s3504 = sld [smem:[#allocation2 + $0x8b]]
        %v3505 = vstv %s3504
        %v3506 = vmul.f32 %v567, %v3505
        %v3507 = vmul.f32 %v568, %v3505
        %v3508 = vmul.f32 %v569, %v3505
        %v3509 = vmul.f32 %v570, %v3505
        %v3510 = vmul.f32 %v571, %v3505
        %v3511 = vmul.f32 %v572, %v3505
        %v3512 = vmul.f32 %v573, %v3505
        %v3513 = vmul.f32 %v574, %v3505
        %v3514 = vmul.f32 %v575, %v3505
        %v3515 = vmul.f32 %v576, %v3505
        %v3516 = vmul.f32 %v577, %v3505
        %v3517 = vmul.f32 %v578, %v3505
        %v3518 = vmul.f32 %v579, %v3505
        %v3519 = vmul.f32 %v580, %v3505
        %v3520 = vmul.f32 %v581, %v3505
        %v3521 = vmul.f32 %v582, %v3505
        %v3522 = vadd.f32 %v3488, %v3506
        %v3523 = vadd.f32 %v3489, %v3507
        %v3524 = vadd.f32 %v3490, %v3508
        %v3525 = vadd.f32 %v3491, %v3509
        %v3526 = vadd.f32 %v3492, %v3510
        %v3527 = vadd.f32 %v3493, %v3511
        %v3528 = vadd.f32 %v3494, %v3512
        %v3529 = vadd.f32 %v3495, %v3513
        %v3530 = vadd.f32 %v3496, %v3514
        %v3531 = vadd.f32 %v3497, %v3515
        %v3532 = vadd.f32 %v3498, %v3516
        %v3533 = vadd.f32 %v3499, %v3517
        %v3534 = vadd.f32 %v3500, %v3518
        %v3535 = vadd.f32 %v3501, %v3519
        %v3536 = vadd.f32 %v3502, %v3520
        %v3537 = vadd.f32 %v3503, %v3521
        %s3538 = sld [smem:[#allocation2 + $0x10b]]
        %v3539 = vstv %s3538
        %v3540 = vmul.f32 %v651, %v3539
        %v3541 = vmul.f32 %v652, %v3539
        %v3542 = vmul.f32 %v653, %v3539
        %v3543 = vmul.f32 %v654, %v3539
        %v3544 = vmul.f32 %v655, %v3539
        %v3545 = vmul.f32 %v656, %v3539
        %v3546 = vmul.f32 %v657, %v3539
        %v3547 = vmul.f32 %v658, %v3539
        %v3548 = vmul.f32 %v659, %v3539
        %v3549 = vmul.f32 %v660, %v3539
        %v3550 = vmul.f32 %v661, %v3539
        %v3551 = vmul.f32 %v662, %v3539
        %v3552 = vmul.f32 %v663, %v3539
        %v3553 = vmul.f32 %v664, %v3539
        %v3554 = vmul.f32 %v665, %v3539
        %v3555 = vmul.f32 %v666, %v3539
        %v3556 = vadd.f32 %v3522, %v3540
        %v3557 = vadd.f32 %v3523, %v3541
        %v3558 = vadd.f32 %v3524, %v3542
        %v3559 = vadd.f32 %v3525, %v3543
        %v3560 = vadd.f32 %v3526, %v3544
        %v3561 = vadd.f32 %v3527, %v3545
        %v3562 = vadd.f32 %v3528, %v3546
        %v3563 = vadd.f32 %v3529, %v3547
        %v3564 = vadd.f32 %v3530, %v3548
        %v3565 = vadd.f32 %v3531, %v3549
        %v3566 = vadd.f32 %v3532, %v3550
        %v3567 = vadd.f32 %v3533, %v3551
        %v3568 = vadd.f32 %v3534, %v3552
        %v3569 = vadd.f32 %v3535, %v3553
        %v3570 = vadd.f32 %v3536, %v3554
        %v3571 = vadd.f32 %v3537, %v3555
        %s3572 = sld [smem:[#allocation5 + $0xb]]
        %v3573 = vstv %s3572
        %v3574 = vadd.f32 %v3556, %v3573
        %v3575 = vadd.f32 %v3557, %v3573
        %v3576 = vadd.f32 %v3558, %v3573
        %v3577 = vadd.f32 %v3559, %v3573
        %v3578 = vadd.f32 %v3560, %v3573
        %v3579 = vadd.f32 %v3561, %v3573
        %v3580 = vadd.f32 %v3562, %v3573
        %v3581 = vadd.f32 %v3563, %v3573
        %v3582 = vadd.f32 %v3564, %v3573
        %v3583 = vadd.f32 %v3565, %v3573
        %v3584 = vadd.f32 %v3566, %v3573
        %v3585 = vadd.f32 %v3567, %v3573
        %v3586 = vadd.f32 %v3568, %v3573
        %v3587 = vadd.f32 %v3569, %v3573
        %v3588 = vadd.f32 %v3570, %v3573
        %v3589 = vadd.f32 %v3571, %v3573
        %v3590 = vtanh.pop %v3574
        %v3591 = vtanh.pop %v3575
        %v3592 = vtanh.pop %v3576
        %v3593 = vtanh.pop %v3577
        %v3594 = vtanh.pop %v3578
        %v3595 = vtanh.pop %v3579
        %v3596 = vtanh.pop %v3580
        %v3597 = vtanh.pop %v3581
        %v3598 = vtanh.pop %v3582
        %v3599 = vtanh.pop %v3583
        %v3600 = vtanh.pop %v3584
        %v3601 = vtanh.pop %v3585
        %v3602 = vtanh.pop %v3586
        %v3603 = vtanh.pop %v3587
        %v3604 = vtanh.pop %v3588
        %v3605 = vtanh.pop %v3589
        %v3606 = vmul.f32 %v3590, %v779
        %v3607 = vmul.f32 %v3591, %v780
        %v3608 = vmul.f32 %v3592, %v781
        %v3609 = vmul.f32 %v3593, %v782
        %v3610 = vmul.f32 %v3594, %v783
        %v3611 = vmul.f32 %v3595, %v784
        %v3612 = vmul.f32 %v3596, %v785
        %v3613 = vmul.f32 %v3597, %v786
        %v3614 = vmul.f32 %v3598, %v787
        %v3615 = vmul.f32 %v3599, %v788
        %v3616 = vmul.f32 %v3600, %v789
        %v3617 = vmul.f32 %v3601, %v790
        %v3618 = vmul.f32 %v3602, %v791
        %v3619 = vmul.f32 %v3603, %v792
        %v3620 = vmul.f32 %v3604, %v793
        %v3621 = vmul.f32 %v3605, %v794
        %3622 = vmatprep.subr.mxu0 0.0
        %3623 = vmatpush1.msra.mxu0 %v3606
        %3624 = vmatprep.subr.mxu0 0.0
        %3625 = vmatpush1.msra.mxu0 %v3607
        %3626 = vmatprep.subr.mxu0 0.0
        %3627 = vmatpush1.msra.mxu0 %v3608
        %3628 = vmatprep.subr.mxu0 0.0
        %3629 = vmatpush1.msra.mxu0 %v3609
        %3630 = vmatprep.subr.mxu0 0.0
        %3631 = vmatpush1.msra.mxu0 %v3610
        %3632 = vmatprep.subr.mxu0 0.0
        %3633 = vmatpush1.msra.mxu0 %v3611
        %3634 = vmatprep.subr.mxu0 0.0
        %3635 = vmatpush1.msra.mxu0 %v3612
        %3636 = vmatprep.subr.mxu0 0.0
        %3637 = vmatpush1.msra.mxu0 %v3613
        %3638 = vmatprep.subr.mxu0 0.0
        %3639 = vmatpush1.msra.mxu0 %v3614
        %3640 = vmatprep.subr.mxu0 0.0
        %3641 = vmatpush1.msra.mxu0 %v3615
        %3642 = vmatprep.subr.mxu0 0.0
        %3643 = vmatpush1.msra.mxu0 %v3616
        %3644 = vmatprep.subr.mxu0 0.0
        %3645 = vmatpush1.msra.mxu0 %v3617
        %3646 = vmatprep.subr.mxu0 0.0
        %3647 = vmatpush1.msra.mxu0 %v3618
        %3648 = vmatprep.subr.mxu0 0.0
        %3649 = vmatpush1.msra.mxu0 %v3619
        %3650 = vmatprep.subr.mxu0 0.0
        %3651 = vmatpush1.msra.mxu0 %v3620
        %3652 = vmatprep.subr.mxu0 0.0
        %3653 = vmatpush1.msra.mxu0 %v3621
        %3654 = vmatprep.subr.mxu0 0.0
        %3655 = vmatpush1.msra.mxu0 0.0
        %3656 = vmatprep.subr.mxu0 0.0
        %3657 = vmatpush1.msra.mxu0 0.0
        %3658 = vmatprep.subr.mxu0 0.0
        %3659 = vmatpush1.msra.mxu0 0.0
        %3660 = vmatprep.subr.mxu0 0.0
        %3661 = vmatpush1.msra.mxu0 0.0
        %3662 = vmatprep.subr.mxu0 0.0
        %3663 = vmatpush1.msra.mxu0 0.0
        %3664 = vmatprep.subr.mxu0 0.0
        %3665 = vmatpush1.msra.mxu0 0.0
        %3666 = vmatprep.subr.mxu0 0.0
        %3667 = vmatpush1.msra.mxu0 0.0
        %3668 = vmatprep.subr.mxu0 0.0
        %3669 = vmatpush1.msra.mxu0 0.0
        %3670 = vmatprep.subr.mxu0 0.0
        %3671 = vmatpush1.msra.mxu0 0.0
        %3672 = vmatprep.subr.mxu0 0.0
        %3673 = vmatpush1.msra.mxu0 0.0
        %3674 = vmatprep.subr.mxu0 0.0
        %3675 = vmatpush1.msra.mxu0 0.0
        %3676 = vmatprep.subr.mxu0 0.0
        %3677 = vmatpush1.msra.mxu0 0.0
        %3678 = vmatprep.subr.mxu0 0.0
        %3679 = vmatpush1.msra.mxu0 0.0
        %3680 = vmatprep.subr.mxu0 0.0
        %3681 = vmatpush1.msra.mxu0 0.0
        %3682 = vmatprep.subr.mxu0 0.0
        %3683 = vmatpush1.msra.mxu0 0.0
        %3684 = vmatprep.subr.mxu0 0.0
        %3685 = vmatpush1.msra.mxu0 0.0
        %3686 = vmatprep.mubr.f32.mxu0 0.0
        %3687 = vmatmul.mubr.f32.gmra.mrb[0].mxu0 %v1206
        %v3688 = vpop.f32.mrb[0].mxu0
        %v3689 = vadd.f32 0.0, %v3688
        %v3690 = vpop.f32.mrb[0].mxu0
        %3691 = vdwg.mxu0
        %v3692 = vadd.f32 %v3485, %v3689
        %s3693 = sld [smem:[#allocation2 + $0xc]]
        %v3694 = vstv %s3693
        %v3695 = vmul.f32 %v483, %v3694
        %v3696 = vmul.f32 %v484, %v3694
        %v3697 = vmul.f32 %v485, %v3694
        %v3698 = vmul.f32 %v486, %v3694
        %v3699 = vmul.f32 %v487, %v3694
        %v3700 = vmul.f32 %v488, %v3694
        %v3701 = vmul.f32 %v489, %v3694
        %v3702 = vmul.f32 %v490, %v3694
        %v3703 = vmul.f32 %v491, %v3694
        %v3704 = vmul.f32 %v492, %v3694
        %v3705 = vmul.f32 %v493, %v3694
        %v3706 = vmul.f32 %v494, %v3694
        %v3707 = vmul.f32 %v495, %v3694
        %v3708 = vmul.f32 %v496, %v3694
        %v3709 = vmul.f32 %v497, %v3694
        %v3710 = vmul.f32 %v498, %v3694
        %s3711 = sld [smem:[#allocation2 + $0x8c]]
        %v3712 = vstv %s3711
        %v3713 = vmul.f32 %v567, %v3712
        %v3714 = vmul.f32 %v568, %v3712
        %v3715 = vmul.f32 %v569, %v3712
        %v3716 = vmul.f32 %v570, %v3712
        %v3717 = vmul.f32 %v571, %v3712
        %v3718 = vmul.f32 %v572, %v3712
        %v3719 = vmul.f32 %v573, %v3712
        %v3720 = vmul.f32 %v574, %v3712
        %v3721 = vmul.f32 %v575, %v3712
        %v3722 = vmul.f32 %v576, %v3712
        %v3723 = vmul.f32 %v577, %v3712
        %v3724 = vmul.f32 %v578, %v3712
        %v3725 = vmul.f32 %v579, %v3712
        %v3726 = vmul.f32 %v580, %v3712
        %v3727 = vmul.f32 %v581, %v3712
        %v3728 = vmul.f32 %v582, %v3712
        %v3729 = vadd.f32 %v3695, %v3713
        %v3730 = vadd.f32 %v3696, %v3714
        %v3731 = vadd.f32 %v3697, %v3715
        %v3732 = vadd.f32 %v3698, %v3716
        %v3733 = vadd.f32 %v3699, %v3717
        %v3734 = vadd.f32 %v3700, %v3718
        %v3735 = vadd.f32 %v3701, %v3719
        %v3736 = vadd.f32 %v3702, %v3720
        %v3737 = vadd.f32 %v3703, %v3721
        %v3738 = vadd.f32 %v3704, %v3722
        %v3739 = vadd.f32 %v3705, %v3723
        %v3740 = vadd.f32 %v3706, %v3724
        %v3741 = vadd.f32 %v3707, %v3725
        %v3742 = vadd.f32 %v3708, %v3726
        %v3743 = vadd.f32 %v3709, %v3727
        %v3744 = vadd.f32 %v3710, %v3728
        %s3745 = sld [smem:[#allocation2 + $0x10c]]
        %v3746 = vstv %s3745
        %v3747 = vmul.f32 %v651, %v3746
        %v3748 = vmul.f32 %v652, %v3746
        %v3749 = vmul.f32 %v653, %v3746
        %v3750 = vmul.f32 %v654, %v3746
        %v3751 = vmul.f32 %v655, %v3746
        %v3752 = vmul.f32 %v656, %v3746
        %v3753 = vmul.f32 %v657, %v3746
        %v3754 = vmul.f32 %v658, %v3746
        %v3755 = vmul.f32 %v659, %v3746
        %v3756 = vmul.f32 %v660, %v3746
        %v3757 = vmul.f32 %v661, %v3746
        %v3758 = vmul.f32 %v662, %v3746
        %v3759 = vmul.f32 %v663, %v3746
        %v3760 = vmul.f32 %v664, %v3746
        %v3761 = vmul.f32 %v665, %v3746
        %v3762 = vmul.f32 %v666, %v3746
        %v3763 = vadd.f32 %v3729, %v3747
        %v3764 = vadd.f32 %v3730, %v3748
        %v3765 = vadd.f32 %v3731, %v3749
        %v3766 = vadd.f32 %v3732, %v3750
        %v3767 = vadd.f32 %v3733, %v3751
        %v3768 = vadd.f32 %v3734, %v3752
        %v3769 = vadd.f32 %v3735, %v3753
        %v3770 = vadd.f32 %v3736, %v3754
        %v3771 = vadd.f32 %v3737, %v3755
        %v3772 = vadd.f32 %v3738, %v3756
        %v3773 = vadd.f32 %v3739, %v3757
        %v3774 = vadd.f32 %v3740, %v3758
        %v3775 = vadd.f32 %v3741, %v3759
        %v3776 = vadd.f32 %v3742, %v3760
        %v3777 = vadd.f32 %v3743, %v3761
        %v3778 = vadd.f32 %v3744, %v3762
        %s3779 = sld [smem:[#allocation5 + $0xc]]
        %v3780 = vstv %s3779
        %v3781 = vadd.f32 %v3763, %v3780
        %v3782 = vadd.f32 %v3764, %v3780
        %v3783 = vadd.f32 %v3765, %v3780
        %v3784 = vadd.f32 %v3766, %v3780
        %v3785 = vadd.f32 %v3767, %v3780
        %v3786 = vadd.f32 %v3768, %v3780
        %v3787 = vadd.f32 %v3769, %v3780
        %v3788 = vadd.f32 %v3770, %v3780
        %v3789 = vadd.f32 %v3771, %v3780
        %v3790 = vadd.f32 %v3772, %v3780
        %v3791 = vadd.f32 %v3773, %v3780
        %v3792 = vadd.f32 %v3774, %v3780
        %v3793 = vadd.f32 %v3775, %v3780
        %v3794 = vadd.f32 %v3776, %v3780
        %v3795 = vadd.f32 %v3777, %v3780
        %v3796 = vadd.f32 %v3778, %v3780
        %v3797 = vtanh.pop %v3781
        %v3798 = vtanh.pop %v3782
        %v3799 = vtanh.pop %v3783
        %v3800 = vtanh.pop %v3784
        %v3801 = vtanh.pop %v3785
        %v3802 = vtanh.pop %v3786
        %v3803 = vtanh.pop %v3787
        %v3804 = vtanh.pop %v3788
        %v3805 = vtanh.pop %v3789
        %v3806 = vtanh.pop %v3790
        %v3807 = vtanh.pop %v3791
        %v3808 = vtanh.pop %v3792
        %v3809 = vtanh.pop %v3793
        %v3810 = vtanh.pop %v3794
        %v3811 = vtanh.pop %v3795
        %v3812 = vtanh.pop %v3796
        %v3813 = vmul.f32 %v3797, %v779
        %v3814 = vmul.f32 %v3798, %v780
        %v3815 = vmul.f32 %v3799, %v781
        %v3816 = vmul.f32 %v3800, %v782
        %v3817 = vmul.f32 %v3801, %v783
        %v3818 = vmul.f32 %v3802, %v784
        %v3819 = vmul.f32 %v3803, %v785
        %v3820 = vmul.f32 %v3804, %v786
        %v3821 = vmul.f32 %v3805, %v787
        %v3822 = vmul.f32 %v3806, %v788
        %v3823 = vmul.f32 %v3807, %v789
        %v3824 = vmul.f32 %v3808, %v790
        %v3825 = vmul.f32 %v3809, %v791
        %v3826 = vmul.f32 %v3810, %v792
        %v3827 = vmul.f32 %v3811, %v793
        %v3828 = vmul.f32 %v3812, %v794
        %3829 = vmatprep.subr.mxu0 0.0
        %3830 = vmatpush1.msra.mxu0 %v3813
        %3831 = vmatprep.subr.mxu0 0.0
        %3832 = vmatpush1.msra.mxu0 %v3814
        %3833 = vmatprep.subr.mxu0 0.0
        %3834 = vmatpush1.msra.mxu0 %v3815
        %3835 = vmatprep.subr.mxu0 0.0
        %3836 = vmatpush1.msra.mxu0 %v3816
        %3837 = vmatprep.subr.mxu0 0.0
        %3838 = vmatpush1.msra.mxu0 %v3817
        %3839 = vmatprep.subr.mxu0 0.0
        %3840 = vmatpush1.msra.mxu0 %v3818
        %3841 = vmatprep.subr.mxu0 0.0
        %3842 = vmatpush1.msra.mxu0 %v3819
        %3843 = vmatprep.subr.mxu0 0.0
        %3844 = vmatpush1.msra.mxu0 %v3820
        %3845 = vmatprep.subr.mxu0 0.0
        %3846 = vmatpush1.msra.mxu0 %v3821
        %3847 = vmatprep.subr.mxu0 0.0
        %3848 = vmatpush1.msra.mxu0 %v3822
        %3849 = vmatprep.subr.mxu0 0.0
        %3850 = vmatpush1.msra.mxu0 %v3823
        %3851 = vmatprep.subr.mxu0 0.0
        %3852 = vmatpush1.msra.mxu0 %v3824
        %3853 = vmatprep.subr.mxu0 0.0
        %3854 = vmatpush1.msra.mxu0 %v3825
        %3855 = vmatprep.subr.mxu0 0.0
        %3856 = vmatpush1.msra.mxu0 %v3826
        %3857 = vmatprep.subr.mxu0 0.0
        %3858 = vmatpush1.msra.mxu0 %v3827
        %3859 = vmatprep.subr.mxu0 0.0
        %3860 = vmatpush1.msra.mxu0 %v3828
        %3861 = vmatprep.subr.mxu0 0.0
        %3862 = vmatpush1.msra.mxu0 0.0
        %3863 = vmatprep.subr.mxu0 0.0
        %3864 = vmatpush1.msra.mxu0 0.0
        %3865 = vmatprep.subr.mxu0 0.0
        %3866 = vmatpush1.msra.mxu0 0.0
        %3867 = vmatprep.subr.mxu0 0.0
        %3868 = vmatpush1.msra.mxu0 0.0
        %3869 = vmatprep.subr.mxu0 0.0
        %3870 = vmatpush1.msra.mxu0 0.0
        %3871 = vmatprep.subr.mxu0 0.0
        %3872 = vmatpush1.msra.mxu0 0.0
        %3873 = vmatprep.subr.mxu0 0.0
        %3874 = vmatpush1.msra.mxu0 0.0
        %3875 = vmatprep.subr.mxu0 0.0
        %3876 = vmatpush1.msra.mxu0 0.0
        %3877 = vmatprep.subr.mxu0 0.0
        %3878 = vmatpush1.msra.mxu0 0.0
        %3879 = vmatprep.subr.mxu0 0.0
        %3880 = vmatpush1.msra.mxu0 0.0
        %3881 = vmatprep.subr.mxu0 0.0
        %3882 = vmatpush1.msra.mxu0 0.0
        %3883 = vmatprep.subr.mxu0 0.0
        %3884 = vmatpush1.msra.mxu0 0.0
        %3885 = vmatprep.subr.mxu0 0.0
        %3886 = vmatpush1.msra.mxu0 0.0
        %3887 = vmatprep.subr.mxu0 0.0
        %3888 = vmatpush1.msra.mxu0 0.0
        %3889 = vmatprep.subr.mxu0 0.0
        %3890 = vmatpush1.msra.mxu0 0.0
        %3891 = vmatprep.subr.mxu0 0.0
        %3892 = vmatpush1.msra.mxu0 0.0
        %3893 = vmatprep.mubr.f32.mxu0 0.0
        %3894 = vmatmul.mubr.f32.gmra.mrb[0].mxu0 %v1207
        %v3895 = vpop.f32.mrb[0].mxu0
        %v3896 = vadd.f32 0.0, %v3895
        %v3897 = vpop.f32.mrb[0].mxu0
        %3898 = vdwg.mxu0
        %v3899 = vadd.f32 %v3692, %v3896
        %s3900 = sld [smem:[#allocation2 + $0xd]]
        %v3901 = vstv %s3900
        %v3902 = vmul.f32 %v483, %v3901
        %v3903 = vmul.f32 %v484, %v3901
        %v3904 = vmul.f32 %v485, %v3901
        %v3905 = vmul.f32 %v486, %v3901
        %v3906 = vmul.f32 %v487, %v3901
        %v3907 = vmul.f32 %v488, %v3901
        %v3908 = vmul.f32 %v489, %v3901
        %v3909 = vmul.f32 %v490, %v3901
        %v3910 = vmul.f32 %v491, %v3901
        %v3911 = vmul.f32 %v492, %v3901
        %v3912 = vmul.f32 %v493, %v3901
        %v3913 = vmul.f32 %v494, %v3901
        %v3914 = vmul.f32 %v495, %v3901
        %v3915 = vmul.f32 %v496, %v3901
        %v3916 = vmul.f32 %v497, %v3901
        %v3917 = vmul.f32 %v498, %v3901
        %s3918 = sld [smem:[#allocation2 + $0x8d]]
        %v3919 = vstv %s3918
        %v3920 = vmul.f32 %v567, %v3919
        %v3921 = vmul.f32 %v568, %v3919
        %v3922 = vmul.f32 %v569, %v3919
        %v3923 = vmul.f32 %v570, %v3919
        %v3924 = vmul.f32 %v571, %v3919
        %v3925 = vmul.f32 %v572, %v3919
        %v3926 = vmul.f32 %v573, %v3919
        %v3927 = vmul.f32 %v574, %v3919
        %v3928 = vmul.f32 %v575, %v3919
        %v3929 = vmul.f32 %v576, %v3919
        %v3930 = vmul.f32 %v577, %v3919
        %v3931 = vmul.f32 %v578, %v3919
        %v3932 = vmul.f32 %v579, %v3919
        %v3933 = vmul.f32 %v580, %v3919
        %v3934 = vmul.f32 %v581, %v3919
        %v3935 = vmul.f32 %v582, %v3919
        %v3936 = vadd.f32 %v3902, %v3920
        %v3937 = vadd.f32 %v3903, %v3921
        %v3938 = vadd.f32 %v3904, %v3922
        %v3939 = vadd.f32 %v3905, %v3923
        %v3940 = vadd.f32 %v3906, %v3924
        %v3941 = vadd.f32 %v3907, %v3925
        %v3942 = vadd.f32 %v3908, %v3926
        %v3943 = vadd.f32 %v3909, %v3927
        %v3944 = vadd.f32 %v3910, %v3928
        %v3945 = vadd.f32 %v3911, %v3929
        %v3946 = vadd.f32 %v3912, %v3930
        %v3947 = vadd.f32 %v3913, %v3931
        %v3948 = vadd.f32 %v3914, %v3932
        %v3949 = vadd.f32 %v3915, %v3933
        %v3950 = vadd.f32 %v3916, %v3934
        %v3951 = vadd.f32 %v3917, %v3935
        %s3952 = sld [smem:[#allocation2 + $0x10d]]
        %v3953 = vstv %s3952
        %v3954 = vmul.f32 %v651, %v3953
        %v3955 = vmul.f32 %v652, %v3953
        %v3956 = vmul.f32 %v653, %v3953
        %v3957 = vmul.f32 %v654, %v3953
        %v3958 = vmul.f32 %v655, %v3953
        %v3959 = vmul.f32 %v656, %v3953
        %v3960 = vmul.f32 %v657, %v3953
        %v3961 = vmul.f32 %v658, %v3953
        %v3962 = vmul.f32 %v659, %v3953
        %v3963 = vmul.f32 %v660, %v3953
        %v3964 = vmul.f32 %v661, %v3953
        %v3965 = vmul.f32 %v662, %v3953
        %v3966 = vmul.f32 %v663, %v3953
        %v3967 = vmul.f32 %v664, %v3953
        %v3968 = vmul.f32 %v665, %v3953
        %v3969 = vmul.f32 %v666, %v3953
        %v3970 = vadd.f32 %v3936, %v3954
        %v3971 = vadd.f32 %v3937, %v3955
        %v3972 = vadd.f32 %v3938, %v3956
        %v3973 = vadd.f32 %v3939, %v3957
        %v3974 = vadd.f32 %v3940, %v3958
        %v3975 = vadd.f32 %v3941, %v3959
        %v3976 = vadd.f32 %v3942, %v3960
        %v3977 = vadd.f32 %v3943, %v3961
        %v3978 = vadd.f32 %v3944, %v3962
        %v3979 = vadd.f32 %v3945, %v3963
        %v3980 = vadd.f32 %v3946, %v3964
        %v3981 = vadd.f32 %v3947, %v3965
        %v3982 = vadd.f32 %v3948, %v3966
        %v3983 = vadd.f32 %v3949, %v3967
        %v3984 = vadd.f32 %v3950, %v3968
        %v3985 = vadd.f32 %v3951, %v3969
        %s3986 = sld [smem:[#allocation5 + $0xd]]
        %v3987 = vstv %s3986
        %v3988 = vadd.f32 %v3970, %v3987
        %v3989 = vadd.f32 %v3971, %v3987
        %v3990 = vadd.f32 %v3972, %v3987
        %v3991 = vadd.f32 %v3973, %v3987
        %v3992 = vadd.f32 %v3974, %v3987
        %v3993 = vadd.f32 %v3975, %v3987
        %v3994 = vadd.f32 %v3976, %v3987
        %v3995 = vadd.f32 %v3977, %v3987
        %v3996 = vadd.f32 %v3978, %v3987
        %v3997 = vadd.f32 %v3979, %v3987
        %v3998 = vadd.f32 %v3980, %v3987
        %v3999 = vadd.f32 %v3981, %v3987
        %v4000 = vadd.f32 %v3982, %v3987
        %v4001 = vadd.f32 %v3983, %v3987
        %v4002 = vadd.f32 %v3984, %v3987
        %v4003 = vadd.f32 %v3985, %v3987
        %v4004 = vtanh.pop %v3988
        %v4005 = vtanh.pop %v3989
        %v4006 = vtanh.pop %v3990
        %v4007 = vtanh.pop %v3991
        %v4008 = vtanh.pop %v3992
        %v4009 = vtanh.pop %v3993
        %v4010 = vtanh.pop %v3994
        %v4011 = vtanh.pop %v3995
        %v4012 = vtanh.pop %v3996
        %v4013 = vtanh.pop %v3997
        %v4014 = vtanh.pop %v3998
        %v4015 = vtanh.pop %v3999
        %v4016 = vtanh.pop %v4000
        %v4017 = vtanh.pop %v4001
        %v4018 = vtanh.pop %v4002
        %v4019 = vtanh.pop %v4003
        %v4020 = vmul.f32 %v4004, %v779
        %v4021 = vmul.f32 %v4005, %v780
        %v4022 = vmul.f32 %v4006, %v781
        %v4023 = vmul.f32 %v4007, %v782
        %v4024 = vmul.f32 %v4008, %v783
        %v4025 = vmul.f32 %v4009, %v784
        %v4026 = vmul.f32 %v4010, %v785
        %v4027 = vmul.f32 %v4011, %v786
        %v4028 = vmul.f32 %v4012, %v787
        %v4029 = vmul.f32 %v4013, %v788
        %v4030 = vmul.f32 %v4014, %v789
        %v4031 = vmul.f32 %v4015, %v790
        %v4032 = vmul.f32 %v4016, %v791
        %v4033 = vmul.f32 %v4017, %v792
        %v4034 = vmul.f32 %v4018, %v793
        %v4035 = vmul.f32 %v4019, %v794
        %4036 = vmatprep.subr.mxu0 0.0
        %4037 = vmatpush1.msra.mxu0 %v4020
        %4038 = vmatprep.subr.mxu0 0.0
        %4039 = vmatpush1.msra.mxu0 %v4021
        %4040 = vmatprep.subr.mxu0 0.0
        %4041 = vmatpush1.msra.mxu0 %v4022
        %4042 = vmatprep.subr.mxu0 0.0
        %4043 = vmatpush1.msra.mxu0 %v4023
        %4044 = vmatprep.subr.mxu0 0.0
        %4045 = vmatpush1.msra.mxu0 %v4024
        %4046 = vmatprep.subr.mxu0 0.0
        %4047 = vmatpush1.msra.mxu0 %v4025
        %4048 = vmatprep.subr.mxu0 0.0
        %4049 = vmatpush1.msra.mxu0 %v4026
        %4050 = vmatprep.subr.mxu0 0.0
        %4051 = vmatpush1.msra.mxu0 %v4027
        %4052 = vmatprep.subr.mxu0 0.0
        %4053 = vmatpush1.msra.mxu0 %v4028
        %4054 = vmatprep.subr.mxu0 0.0
        %4055 = vmatpush1.msra.mxu0 %v4029
        %4056 = vmatprep.subr.mxu0 0.0
        %4057 = vmatpush1.msra.mxu0 %v4030
        %4058 = vmatprep.subr.mxu0 0.0
        %4059 = vmatpush1.msra.mxu0 %v4031
        %4060 = vmatprep.subr.mxu0 0.0
        %4061 = vmatpush1.msra.mxu0 %v4032
        %4062 = vmatprep.subr.mxu0 0.0
        %4063 = vmatpush1.msra.mxu0 %v4033
        %4064 = vmatprep.subr.mxu0 0.0
        %4065 = vmatpush1.msra.mxu0 %v4034
        %4066 = vmatprep.subr.mxu0 0.0
        %4067 = vmatpush1.msra.mxu0 %v4035
        %4068 = vmatprep.subr.mxu0 0.0
        %4069 = vmatpush1.msra.mxu0 0.0
        %4070 = vmatprep.subr.mxu0 0.0
        %4071 = vmatpush1.msra.mxu0 0.0
        %4072 = vmatprep.subr.mxu0 0.0
        %4073 = vmatpush1.msra.mxu0 0.0
        %4074 = vmatprep.subr.mxu0 0.0
        %4075 = vmatpush1.msra.mxu0 0.0
        %4076 = vmatprep.subr.mxu0 0.0
        %4077 = vmatpush1.msra.mxu0 0.0
        %4078 = vmatprep.subr.mxu0 0.0
        %4079 = vmatpush1.msra.mxu0 0.0
        %4080 = vmatprep.subr.mxu0 0.0
        %4081 = vmatpush1.msra.mxu0 0.0
        %4082 = vmatprep.subr.mxu0 0.0
        %4083 = vmatpush1.msra.mxu0 0.0
        %4084 = vmatprep.subr.mxu0 0.0
        %4085 = vmatpush1.msra.mxu0 0.0
        %4086 = vmatprep.subr.mxu0 0.0
        %4087 = vmatpush1.msra.mxu0 0.0
        %4088 = vmatprep.subr.mxu0 0.0
        %4089 = vmatpush1.msra.mxu0 0.0
        %4090 = vmatprep.subr.mxu0 0.0
        %4091 = vmatpush1.msra.mxu0 0.0
        %4092 = vmatprep.subr.mxu0 0.0
        %4093 = vmatpush1.msra.mxu0 0.0
        %4094 = vmatprep.subr.mxu0 0.0
        %4095 = vmatpush1.msra.mxu0 0.0
        %4096 = vmatprep.subr.mxu0 0.0
        %4097 = vmatpush1.msra.mxu0 0.0
        %4098 = vmatprep.subr.mxu0 0.0
        %4099 = vmatpush1.msra.mxu0 0.0
        %4100 = vmatprep.mubr.f32.mxu0 0.0
        %4101 = vmatmul.mubr.f32.gmra.mrb[0].mxu0 %v1208
        %v4102 = vpop.f32.mrb[0].mxu0
        %v4103 = vadd.f32 0.0, %v4102
        %v4104 = vpop.f32.mrb[0].mxu0
        %4105 = vdwg.mxu0
        %v4106 = vadd.f32 %v3899, %v4103
        %s4107 = sld [smem:[#allocation2 + $0xe]]
        %v4108 = vstv %s4107
        %v4109 = vmul.f32 %v483, %v4108
        %v4110 = vmul.f32 %v484, %v4108
        %v4111 = vmul.f32 %v485, %v4108
        %v4112 = vmul.f32 %v486, %v4108
        %v4113 = vmul.f32 %v487, %v4108
        %v4114 = vmul.f32 %v488, %v4108
        %v4115 = vmul.f32 %v489, %v4108
        %v4116 = vmul.f32 %v490, %v4108
        %v4117 = vmul.f32 %v491, %v4108
        %v4118 = vmul.f32 %v492, %v4108
        %v4119 = vmul.f32 %v493, %v4108
        %v4120 = vmul.f32 %v494, %v4108
        %v4121 = vmul.f32 %v495, %v4108
        %v4122 = vmul.f32 %v496, %v4108
        %v4123 = vmul.f32 %v497, %v4108
        %v4124 = vmul.f32 %v498, %v4108
        %s4125 = sld [smem:[#allocation2 + $0x8e]]
        %v4126 = vstv %s4125
        %v4127 = vmul.f32 %v567, %v4126
        %v4128 = vmul.f32 %v568, %v4126
        %v4129 = vmul.f32 %v569, %v4126
        %v4130 = vmul.f32 %v570, %v4126
        %v4131 = vmul.f32 %v571, %v4126
        %v4132 = vmul.f32 %v572, %v4126
        %v4133 = vmul.f32 %v573, %v4126
        %v4134 = vmul.f32 %v574, %v4126
        %v4135 = vmul.f32 %v575, %v4126
        %v4136 = vmul.f32 %v576, %v4126
        %v4137 = vmul.f32 %v577, %v4126
        %v4138 = vmul.f32 %v578, %v4126
        %v4139 = vmul.f32 %v579, %v4126
        %v4140 = vmul.f32 %v580, %v4126
        %v4141 = vmul.f32 %v581, %v4126
        %v4142 = vmul.f32 %v582, %v4126
        %v4143 = vadd.f32 %v4109, %v4127
        %v4144 = vadd.f32 %v4110, %v4128
        %v4145 = vadd.f32 %v4111, %v4129
        %v4146 = vadd.f32 %v4112, %v4130
        %v4147 = vadd.f32 %v4113, %v4131
        %v4148 = vadd.f32 %v4114, %v4132
        %v4149 = vadd.f32 %v4115, %v4133
        %v4150 = vadd.f32 %v4116, %v4134
        %v4151 = vadd.f32 %v4117, %v4135
        %v4152 = vadd.f32 %v4118, %v4136
        %v4153 = vadd.f32 %v4119, %v4137
        %v4154 = vadd.f32 %v4120, %v4138
        %v4155 = vadd.f32 %v4121, %v4139
        %v4156 = vadd.f32 %v4122, %v4140
        %v4157 = vadd.f32 %v4123, %v4141
        %v4158 = vadd.f32 %v4124, %v4142
        %s4159 = sld [smem:[#allocation2 + $0x10e]]
        %v4160 = vstv %s4159
        %v4161 = vmul.f32 %v651, %v4160
        %v4162 = vmul.f32 %v652, %v4160
        %v4163 = vmul.f32 %v653, %v4160
        %v4164 = vmul.f32 %v654, %v4160
        %v4165 = vmul.f32 %v655, %v4160
        %v4166 = vmul.f32 %v656, %v4160
        %v4167 = vmul.f32 %v657, %v4160
        %v4168 = vmul.f32 %v658, %v4160
        %v4169 = vmul.f32 %v659, %v4160
        %v4170 = vmul.f32 %v660, %v4160
        %v4171 = vmul.f32 %v661, %v4160
        %v4172 = vmul.f32 %v662, %v4160
        %v4173 = vmul.f32 %v663, %v4160
        %v4174 = vmul.f32 %v664, %v4160
        %v4175 = vmul.f32 %v665, %v4160
        %v4176 = vmul.f32 %v666, %v4160
        %v4177 = vadd.f32 %v4143, %v4161
        %v4178 = vadd.f32 %v4144, %v4162
        %v4179 = vadd.f32 %v4145, %v4163
        %v4180 = vadd.f32 %v4146, %v4164
        %v4181 = vadd.f32 %v4147, %v4165
        %v4182 = vadd.f32 %v4148, %v4166
        %v4183 = vadd.f32 %v4149, %v4167
        %v4184 = vadd.f32 %v4150, %v4168
        %v4185 = vadd.f32 %v4151, %v4169
        %v4186 = vadd.f32 %v4152, %v4170
        %v4187 = vadd.f32 %v4153, %v4171
        %v4188 = vadd.f32 %v4154, %v4172
        %v4189 = vadd.f32 %v4155, %v4173
        %v4190 = vadd.f32 %v4156, %v4174
        %v4191 = vadd.f32 %v4157, %v4175
        %v4192 = vadd.f32 %v4158, %v4176
        %s4193 = sld [smem:[#allocation5 + $0xe]]
        %v4194 = vstv %s4193
        %v4195 = vadd.f32 %v4177, %v4194
        %v4196 = vadd.f32 %v4178, %v4194
        %v4197 = vadd.f32 %v4179, %v4194
        %v4198 = vadd.f32 %v4180, %v4194
        %v4199 = vadd.f32 %v4181, %v4194
        %v4200 = vadd.f32 %v4182, %v4194
        %v4201 = vadd.f32 %v4183, %v4194
        %v4202 = vadd.f32 %v4184, %v4194
        %v4203 = vadd.f32 %v4185, %v4194
        %v4204 = vadd.f32 %v4186, %v4194
        %v4205 = vadd.f32 %v4187, %v4194
        %v4206 = vadd.f32 %v4188, %v4194
        %v4207 = vadd.f32 %v4189, %v4194
        %v4208 = vadd.f32 %v4190, %v4194
        %v4209 = vadd.f32 %v4191, %v4194
        %v4210 = vadd.f32 %v4192, %v4194
        %v4211 = vtanh.pop %v4195
        %v4212 = vtanh.pop %v4196
        %v4213 = vtanh.pop %v4197
        %v4214 = vtanh.pop %v4198
        %v4215 = vtanh.pop %v4199
        %v4216 = vtanh.pop %v4200
        %v4217 = vtanh.pop %v4201
        %v4218 = vtanh.pop %v4202
        %v4219 = vtanh.pop %v4203
        %v4220 = vtanh.pop %v4204
        %v4221 = vtanh.pop %v4205
        %v4222 = vtanh.pop %v4206
        %v4223 = vtanh.pop %v4207
        %v4224 = vtanh.pop %v4208
        %v4225 = vtanh.pop %v4209
        %v4226 = vtanh.pop %v4210
        %v4227 = vmul.f32 %v4211, %v779
        %v4228 = vmul.f32 %v4212, %v780
        %v4229 = vmul.f32 %v4213, %v781
        %v4230 = vmul.f32 %v4214, %v782
        %v4231 = vmul.f32 %v4215, %v783
        %v4232 = vmul.f32 %v4216, %v784
        %v4233 = vmul.f32 %v4217, %v785
        %v4234 = vmul.f32 %v4218, %v786
        %v4235 = vmul.f32 %v4219, %v787
        %v4236 = vmul.f32 %v4220, %v788
        %v4237 = vmul.f32 %v4221, %v789
        %v4238 = vmul.f32 %v4222, %v790
        %v4239 = vmul.f32 %v4223, %v791
        %v4240 = vmul.f32 %v4224, %v792
        %v4241 = vmul.f32 %v4225, %v793
        %v4242 = vmul.f32 %v4226, %v794
        %4243 = vmatprep.subr.mxu0 0.0
        %4244 = vmatpush1.msra.mxu0 %v4227
        %4245 = vmatprep.subr.mxu0 0.0
        %4246 = vmatpush1.msra.mxu0 %v4228
        %4247 = vmatprep.subr.mxu0 0.0
        %4248 = vmatpush1.msra.mxu0 %v4229
        %4249 = vmatprep.subr.mxu0 0.0
        %4250 = vmatpush1.msra.mxu0 %v4230
        %4251 = vmatprep.subr.mxu0 0.0
        %4252 = vmatpush1.msra.mxu0 %v4231
        %4253 = vmatprep.subr.mxu0 0.0
        %4254 = vmatpush1.msra.mxu0 %v4232
        %4255 = vmatprep.subr.mxu0 0.0
        %4256 = vmatpush1.msra.mxu0 %v4233
        %4257 = vmatprep.subr.mxu0 0.0
        %4258 = vmatpush1.msra.mxu0 %v4234
        %4259 = vmatprep.subr.mxu0 0.0
        %4260 = vmatpush1.msra.mxu0 %v4235
        %4261 = vmatprep.subr.mxu0 0.0
        %4262 = vmatpush1.msra.mxu0 %v4236
        %4263 = vmatprep.subr.mxu0 0.0
        %4264 = vmatpush1.msra.mxu0 %v4237
        %4265 = vmatprep.subr.mxu0 0.0
        %4266 = vmatpush1.msra.mxu0 %v4238
        %4267 = vmatprep.subr.mxu0 0.0
        %4268 = vmatpush1.msra.mxu0 %v4239
        %4269 = vmatprep.subr.mxu0 0.0
        %4270 = vmatpush1.msra.mxu0 %v4240
        %4271 = vmatprep.subr.mxu0 0.0
        %4272 = vmatpush1.msra.mxu0 %v4241
        %4273 = vmatprep.subr.mxu0 0.0
        %4274 = vmatpush1.msra.mxu0 %v4242
        %4275 = vmatprep.subr.mxu0 0.0
        %4276 = vmatpush1.msra.mxu0 0.0
        %4277 = vmatprep.subr.mxu0 0.0
        %4278 = vmatpush1.msra.mxu0 0.0
        %4279 = vmatprep.subr.mxu0 0.0
        %4280 = vmatpush1.msra.mxu0 0.0
        %4281 = vmatprep.subr.mxu0 0.0
        %4282 = vmatpush1.msra.mxu0 0.0
        %4283 = vmatprep.subr.mxu0 0.0
        %4284 = vmatpush1.msra.mxu0 0.0
        %4285 = vmatprep.subr.mxu0 0.0
        %4286 = vmatpush1.msra.mxu0 0.0
        %4287 = vmatprep.subr.mxu0 0.0
        %4288 = vmatpush1.msra.mxu0 0.0
        %4289 = vmatprep.subr.mxu0 0.0
        %4290 = vmatpush1.msra.mxu0 0.0
        %4291 = vmatprep.subr.mxu0 0.0
        %4292 = vmatpush1.msra.mxu0 0.0
        %4293 = vmatprep.subr.mxu0 0.0
        %4294 = vmatpush1.msra.mxu0 0.0
        %4295 = vmatprep.subr.mxu0 0.0
        %4296 = vmatpush1.msra.mxu0 0.0
        %4297 = vmatprep.subr.mxu0 0.0
        %4298 = vmatpush1.msra.mxu0 0.0
        %4299 = vmatprep.subr.mxu0 0.0
        %4300 = vmatpush1.msra.mxu0 0.0
        %4301 = vmatprep.subr.mxu0 0.0
        %4302 = vmatpush1.msra.mxu0 0.0
        %4303 = vmatprep.subr.mxu0 0.0
        %4304 = vmatpush1.msra.mxu0 0.0
        %4305 = vmatprep.subr.mxu0 0.0
        %4306 = vmatpush1.msra.mxu0 0.0
        %4307 = vmatprep.mubr.f32.mxu0 0.0
        %4308 = vmatmul.mubr.f32.gmra.mrb[0].mxu0 %v1209
        %v4309 = vpop.f32.mrb[0].mxu0
        %v4310 = vadd.f32 0.0, %v4309
        %v4311 = vpop.f32.mrb[0].mxu0
        %4312 = vdwg.mxu0
        %v4313 = vadd.f32 %v4106, %v4310
        %s4314 = sld [smem:[#allocation2 + $0xf]]
        %v4315 = vstv %s4314
        %v4316 = vmul.f32 %v483, %v4315
        %v4317 = vmul.f32 %v484, %v4315
        %v4318 = vmul.f32 %v485, %v4315
        %v4319 = vmul.f32 %v486, %v4315
        %v4320 = vmul.f32 %v487, %v4315
        %v4321 = vmul.f32 %v488, %v4315
        %v4322 = vmul.f32 %v489, %v4315
        %v4323 = vmul.f32 %v490, %v4315
        %v4324 = vmul.f32 %v491, %v4315
        %v4325 = vmul.f32 %v492, %v4315
        %v4326 = vmul.f32 %v493, %v4315
        %v4327 = vmul.f32 %v494, %v4315
        %v4328 = vmul.f32 %v495, %v4315
        %v4329 = vmul.f32 %v496, %v4315
        %v4330 = vmul.f32 %v497, %v4315
        %v4331 = vmul.f32 %v498, %v4315
        %s4332 = sld [smem:[#allocation2 + $0x8f]]
        %v4333 = vstv %s4332
        %v4334 = vmul.f32 %v567, %v4333
        %v4335 = vmul.f32 %v568, %v4333
        %v4336 = vmul.f32 %v569, %v4333
        %v4337 = vmul.f32 %v570, %v4333
        %v4338 = vmul.f32 %v571, %v4333
        %v4339 = vmul.f32 %v572, %v4333
        %v4340 = vmul.f32 %v573, %v4333
        %v4341 = vmul.f32 %v574, %v4333
        %v4342 = vmul.f32 %v575, %v4333
        %v4343 = vmul.f32 %v576, %v4333
        %v4344 = vmul.f32 %v577, %v4333
        %v4345 = vmul.f32 %v578, %v4333
        %v4346 = vmul.f32 %v579, %v4333
        %v4347 = vmul.f32 %v580, %v4333
        %v4348 = vmul.f32 %v581, %v4333
        %v4349 = vmul.f32 %v582, %v4333
        %v4350 = vadd.f32 %v4316, %v4334
        %v4351 = vadd.f32 %v4317, %v4335
        %v4352 = vadd.f32 %v4318, %v4336
        %v4353 = vadd.f32 %v4319, %v4337
        %v4354 = vadd.f32 %v4320, %v4338
        %v4355 = vadd.f32 %v4321, %v4339
        %v4356 = vadd.f32 %v4322, %v4340
        %v4357 = vadd.f32 %v4323, %v4341
        %v4358 = vadd.f32 %v4324, %v4342
        %v4359 = vadd.f32 %v4325, %v4343
        %v4360 = vadd.f32 %v4326, %v4344
        %v4361 = vadd.f32 %v4327, %v4345
        %v4362 = vadd.f32 %v4328, %v4346
        %v4363 = vadd.f32 %v4329, %v4347
        %v4364 = vadd.f32 %v4330, %v4348
        %v4365 = vadd.f32 %v4331, %v4349
        %s4366 = sld [smem:[#allocation2 + $0x10f]]
        %v4367 = vstv %s4366
        %v4368 = vmul.f32 %v651, %v4367
        %v4369 = vmul.f32 %v652, %v4367
        %v4370 = vmul.f32 %v653, %v4367
        %v4371 = vmul.f32 %v654, %v4367
        %v4372 = vmul.f32 %v655, %v4367
        %v4373 = vmul.f32 %v656, %v4367
        %v4374 = vmul.f32 %v657, %v4367
        %v4375 = vmul.f32 %v658, %v4367
        %v4376 = vmul.f32 %v659, %v4367
        %v4377 = vmul.f32 %v660, %v4367
        %v4378 = vmul.f32 %v661, %v4367
        %v4379 = vmul.f32 %v662, %v4367
        %v4380 = vmul.f32 %v663, %v4367
        %v4381 = vmul.f32 %v664, %v4367
        %v4382 = vmul.f32 %v665, %v4367
        %v4383 = vmul.f32 %v666, %v4367
        %v4384 = vadd.f32 %v4350, %v4368
        %v4385 = vadd.f32 %v4351, %v4369
        %v4386 = vadd.f32 %v4352, %v4370
        %v4387 = vadd.f32 %v4353, %v4371
        %v4388 = vadd.f32 %v4354, %v4372
        %v4389 = vadd.f32 %v4355, %v4373
        %v4390 = vadd.f32 %v4356, %v4374
        %v4391 = vadd.f32 %v4357, %v4375
        %v4392 = vadd.f32 %v4358, %v4376
        %v4393 = vadd.f32 %v4359, %v4377
        %v4394 = vadd.f32 %v4360, %v4378
        %v4395 = vadd.f32 %v4361, %v4379
        %v4396 = vadd.f32 %v4362, %v4380
        %v4397 = vadd.f32 %v4363, %v4381
        %v4398 = vadd.f32 %v4364, %v4382
        %v4399 = vadd.f32 %v4365, %v4383
        %s4400 = sld [smem:[#allocation5 + $0xf]]
        %v4401 = vstv %s4400
        %v4402 = vadd.f32 %v4384, %v4401
        %v4403 = vadd.f32 %v4385, %v4401
        %v4404 = vadd.f32 %v4386, %v4401
        %v4405 = vadd.f32 %v4387, %v4401
        %v4406 = vadd.f32 %v4388, %v4401
        %v4407 = vadd.f32 %v4389, %v4401
        %v4408 = vadd.f32 %v4390, %v4401
        %v4409 = vadd.f32 %v4391, %v4401
        %v4410 = vadd.f32 %v4392, %v4401
        %v4411 = vadd.f32 %v4393, %v4401
        %v4412 = vadd.f32 %v4394, %v4401
        %v4413 = vadd.f32 %v4395, %v4401
        %v4414 = vadd.f32 %v4396, %v4401
        %v4415 = vadd.f32 %v4397, %v4401
        %v4416 = vadd.f32 %v4398, %v4401
        %v4417 = vadd.f32 %v4399, %v4401
        %v4418 = vtanh.pop %v4402
        %v4419 = vtanh.pop %v4403
        %v4420 = vtanh.pop %v4404
        %v4421 = vtanh.pop %v4405
        %v4422 = vtanh.pop %v4406
        %v4423 = vtanh.pop %v4407
        %v4424 = vtanh.pop %v4408
        %v4425 = vtanh.pop %v4409
        %v4426 = vtanh.pop %v4410
        %v4427 = vtanh.pop %v4411
        %v4428 = vtanh.pop %v4412
        %v4429 = vtanh.pop %v4413
        %v4430 = vtanh.pop %v4414
        %v4431 = vtanh.pop %v4415
        %v4432 = vtanh.pop %v4416
        %v4433 = vtanh.pop %v4417
        %v4434 = vmul.f32 %v4418, %v779
        %v4435 = vmul.f32 %v4419, %v780
        %v4436 = vmul.f32 %v4420, %v781
        %v4437 = vmul.f32 %v4421, %v782
        %v4438 = vmul.f32 %v4422, %v783
        %v4439 = vmul.f32 %v4423, %v784
        %v4440 = vmul.f32 %v4424, %v785
        %v4441 = vmul.f32 %v4425, %v786
        %v4442 = vmul.f32 %v4426, %v787
        %v4443 = vmul.f32 %v4427, %v788
        %v4444 = vmul.f32 %v4428, %v789
        %v4445 = vmul.f32 %v4429, %v790
        %v4446 = vmul.f32 %v4430, %v791
        %v4447 = vmul.f32 %v4431, %v792
        %v4448 = vmul.f32 %v4432, %v793
        %v4449 = vmul.f32 %v4433, %v794
        %4450 = vmatprep.subr.mxu0 0.0
        %4451 = vmatpush1.msra.mxu0 %v4434
        %4452 = vmatprep.subr.mxu0 0.0
        %4453 = vmatpush1.msra.mxu0 %v4435
        %4454 = vmatprep.subr.mxu0 0.0
        %4455 = vmatpush1.msra.mxu0 %v4436
        %4456 = vmatprep.subr.mxu0 0.0
        %4457 = vmatpush1.msra.mxu0 %v4437
        %4458 = vmatprep.subr.mxu0 0.0
        %4459 = vmatpush1.msra.mxu0 %v4438
        %4460 = vmatprep.subr.mxu0 0.0
        %4461 = vmatpush1.msra.mxu0 %v4439
        %4462 = vmatprep.subr.mxu0 0.0
        %4463 = vmatpush1.msra.mxu0 %v4440
        %4464 = vmatprep.subr.mxu0 0.0
        %4465 = vmatpush1.msra.mxu0 %v4441
        %4466 = vmatprep.subr.mxu0 0.0
        %4467 = vmatpush1.msra.mxu0 %v4442
        %4468 = vmatprep.subr.mxu0 0.0
        %4469 = vmatpush1.msra.mxu0 %v4443
        %4470 = vmatprep.subr.mxu0 0.0
        %4471 = vmatpush1.msra.mxu0 %v4444
        %4472 = vmatprep.subr.mxu0 0.0
        %4473 = vmatpush1.msra.mxu0 %v4445
        %4474 = vmatprep.subr.mxu0 0.0
        %4475 = vmatpush1.msra.mxu0 %v4446
        %4476 = vmatprep.subr.mxu0 0.0
        %4477 = vmatpush1.msra.mxu0 %v4447
        %4478 = vmatprep.subr.mxu0 0.0
        %4479 = vmatpush1.msra.mxu0 %v4448
        %4480 = vmatprep.subr.mxu0 0.0
        %4481 = vmatpush1.msra.mxu0 %v4449
        %4482 = vmatprep.subr.mxu0 0.0
        %4483 = vmatpush1.msra.mxu0 0.0
        %4484 = vmatprep.subr.mxu0 0.0
        %4485 = vmatpush1.msra.mxu0 0.0
        %4486 = vmatprep.subr.mxu0 0.0
        %4487 = vmatpush1.msra.mxu0 0.0
        %4488 = vmatprep.subr.mxu0 0.0
        %4489 = vmatpush1.msra.mxu0 0.0
        %4490 = vmatprep.subr.mxu0 0.0
        %4491 = vmatpush1.msra.mxu0 0.0
        %4492 = vmatprep.subr.mxu0 0.0
        %4493 = vmatpush1.msra.mxu0 0.0
        %4494 = vmatprep.subr.mxu0 0.0
        %4495 = vmatpush1.msra.mxu0 0.0
        %4496 = vmatprep.subr.mxu0 0.0
        %4497 = vmatpush1.msra.mxu0 0.0
        %4498 = vmatprep.subr.mxu0 0.0
        %4499 = vmatpush1.msra.mxu0 0.0
        %4500 = vmatprep.subr.mxu0 0.0
        %4501 = vmatpush1.msra.mxu0 0.0
        %4502 = vmatprep.subr.mxu0 0.0
        %4503 = vmatpush1.msra.mxu0 0.0
        %4504 = vmatprep.subr.mxu0 0.0
        %4505 = vmatpush1.msra.mxu0 0.0
        %4506 = vmatprep.subr.mxu0 0.0
        %4507 = vmatpush1.msra.mxu0 0.0
        %4508 = vmatprep.subr.mxu0 0.0
        %4509 = vmatpush1.msra.mxu0 0.0
        %4510 = vmatprep.subr.mxu0 0.0
        %4511 = vmatpush1.msra.mxu0 0.0
        %4512 = vmatprep.subr.mxu0 0.0
        %4513 = vmatpush1.msra.mxu0 0.0
        %4514 = vmatprep.mubr.f32.mxu0 0.0
        %4515 = vmatmul.mubr.f32.gmra.mrb[0].mxu0 %v1210
        %v4516 = vpop.f32.mrb[0].mxu0
        %v4517 = vadd.f32 0.0, %v4516
        %v4518 = vpop.f32.mrb[0].mxu0
        %4519 = vdwg.mxu0
        %v4520 = vadd.f32 %v4313, %v4517
        %v4521 = vld [vmem:[%s349] sm:$0xff]
        %v4522 = vadd.f32 %v4521, %v4520
        %4523 = vst [vmem:[%s349] sm:$0xff] %v4522
        %s4524 = sand.u32 %s198, 1
        %s4525 = scalar_lea.sflag [#allocation3], %s4524
        %s4526 = sand.u32 %s198, 1
        %s4527 = smul.addr %s4526, 8
        %s4528 = scalar_lea.vmem [#allocation7], %s4527
        // Predicated region
        $region57: #{tpu_custom_call.1} parent=43 // pred_check
          %p4529 = pneg %p208
        $region58: #{tpu_custom_call.1} parent=43 // pred_check_branch
          %4531 = sbr.rel (%p4529) target = $region60
        $region59: #{tpu_custom_call.1} parent=43 // pred_region
          %s4533 = ssub.s32 128, 128
          %4534 = vsyncadd %s4525, %s4533
          %s4535 = smul.addr %s27, 2
          %s4536 = sadd.s32 %s28, %s4535
          %s4537 = smul.addr %s4536, 128
          %s4538 = scalar_lea.hbm %s6, %s4537
          %s4540 = sshll.u32 %s4528, 4
          %s4541 = int_to_ptr.vmem [resolvable:$true] %s4540
          %4543 = dma.vmem_to_hbm [thread:$0]  %s4541, 128, %s4538, %s4525
        $region60: #{tpu_custom_call.1} parent=43 // pred_fallthru
          _
      $region44: #{tpu_custom_call.1} parent=5 // pred_fallthru
        _
      %p4544 = scmp.le.s32.totalorder 2, %s17
      // Predicated region
      $region61: #{tpu_custom_call.1} parent=5 // pred_check
        %p4545 = pneg %p4544
      $region62: #{tpu_custom_call.1} parent=5 // pred_check_branch
        %4547 = sbr.rel (%p4545) target = $region64
      $region63: #{tpu_custom_call.1} parent=5 // pred_region
        %s4548 = ssub.s32 %s17, 2
        // Predicated region
        $region65: #{tpu_custom_call.1} parent=63 // pred_check
          %p4549 = pneg %p214
        $region66: #{tpu_custom_call.1} parent=63 // pred_check_branch
          %4551 = sbr.rel (%p4549) target = $region68
        $region67: #{tpu_custom_call.1} parent=63 // pred_region
          %s4552 = sand.u32 %s199, 1
          %s4553 = scalar_lea.sflag [#allocation3], %s4552
          %s4554 = sand.u32 %s199, 1
          %s4555 = smul.addr %s4554, 8
          %s4556 = scalar_lea.vmem [#allocation7], %s4555
          %4557 = dma.done %s4553, 128
        $region68: #{tpu_custom_call.1} parent=63 // pred_fallthru
          _
      $region64: #{tpu_custom_call.1} parent=5 // pred_fallthru
        _
    $region6: #{tpu_custom_call.1} parent=1 // loop_footer
      %s21 = sadd.s32 1, %s17
    $region7: #{tpu_custom_call.1} parent=1 // loop_footer_branch
      %16 = sbr.rel target = $region3
    $region8: #{tpu_custom_call.1} parent=1 // loop_exit
      _
    %4558 = vsyncpa [#allocation3], 1
    %s4559 = scalar_lea.sflag [#allocation3], 1
    %4560 = vsyncpa %s4559, 1
    %4561 = vsyncpa [#allocation4], 1
    %s4562 = scalar_lea.sflag [#allocation4], 1
    %4563 = vsyncpa %s4562, 1
    %4564 = vsyncpa [#allocation6], 1

</llo_original>
